<compile_context>
chip_gen: v5e
topology: v5e:2x2
jax: 0.10.0
libtpu: 0.0.40
codegen_flags: <defaults>
</compile_context>

<pallas_src>
import functools

import jax
import jax.numpy as jnp
from jax import lax
from jax.experimental import pallas as pl
from jax.experimental.pallas import tpu as pltpu

F32 = jnp.float32
BF16 = jnp.bfloat16


def _round_up(x, m):
    return (x + m - 1) // m * m


def _pad_to(x, shape, dtype):
    pads = [(0, t - s) for s, t in zip(x.shape, shape)]
    return jnp.pad(x, pads).astype(dtype)


def _full(shape):
    """Full-array block, VMEM-resident across the (trivial) grid."""
    return pl.BlockSpec(shape, lambda i: (0,) * len(shape))


# ----------------------------------------------------------------------------
# Kernels
# ----------------------------------------------------------------------------
def _fused_forward_kernel(oh_ref, bert_sym_ref, sym_emb_ref, bert_herb_ref, herb_emb_ref,
                          wb1_ref, bb1_ref, wb2_ref, bb2_ref,
                          wbh1_ref, bbh1_ref, wbh2_ref, bbh2_ref,
                          ws1_ref, bs1_ref, ws2_ref, bs2_ref, ws3_ref, bs3_ref,
                          wh1_ref, bh1_ref, wh2_ref, bh2_ref, wh3_ref, bh3_ref,
                          wd_ref, bd_ref,
                          judge_herb_ref, judge_dosage_ref):
    """Entire forward in one kernel (uncached path)."""
    # --- sym table: mlp_bert_2(mlp_bert_1(bert_sym)) + sym_embedding ---
    x = jnp.dot(bert_sym_ref[...], wb1_ref[...], preferred_element_type=F32) + bb1_ref[...]
    x = jnp.dot(x.astype(BF16), wb2_ref[...], preferred_element_type=F32) + bb2_ref[...]
    sym_table = (x + sym_emb_ref[...].astype(F32)).astype(BF16)                 # [S, Dp]

    # --- herb representation h ---
    y = jnp.dot(bert_herb_ref[...], wbh1_ref[...], preferred_element_type=F32) + bbh1_ref[...]
    y = jnp.dot(y.astype(BF16), wbh2_ref[...], preferred_element_type=F32) + bbh2_ref[...]
    h = y + herb_emb_ref[...].astype(F32)
    h = jnp.tanh(jnp.dot(h.astype(BF16), wh1_ref[...], preferred_element_type=F32) + bh1_ref[...])
    h = jnp.tanh(jnp.dot(h.astype(BF16), wh2_ref[...], preferred_element_type=F32) + bh2_ref[...])
    h = jnp.dot(h.astype(BF16), wh3_ref[...], preferred_element_type=F32) + bh3_ref[...]  # [Hp, Dp]

    # --- inference head ---
    get_sym = jnp.dot(oh_ref[...].astype(BF16), sym_table, preferred_element_type=F32)   # [B, Dp]
    s = jnp.tanh(jnp.dot(get_sym.astype(BF16), ws1_ref[...],
                         preferred_element_type=F32) + bs1_ref[...])
    s = jnp.tanh(jnp.dot(s.astype(BF16), ws2_ref[...],
                         preferred_element_type=F32) + bs2_ref[...])
    sym_agg = jnp.dot(s.astype(BF16), ws3_ref[...],
                      preferred_element_type=F32) + bs3_ref[...]                # [B, Dp]

    # judge_herb = sym_agg @ h.T (h already in registers, contract last dims).
    judge_herb = lax.dot_general(sym_agg.astype(BF16), h.astype(BF16),
                                 (((1,), (1,)), ((), ())),
                                 preferred_element_type=F32)                    # [B, Hp]
    judge_herb_ref[...] = judge_herb

    # Same mlp_dosage layer applied twice (matches the torch forward).
    jd = jnp.dot(judge_herb.astype(BF16), wd_ref[...],
                 preferred_element_type=F32) + bd_ref[...]
    jd = jnp.dot(jnp.maximum(jd, 0.0).astype(BF16), wd_ref[...],
                 preferred_element_type=F32) + bd_ref[...]
    judge_dosage_ref[...] = jd


def _tables_kernel(bert_sym_ref, sym_emb_ref, bert_herb_ref, herb_emb_ref,
                   wb1_ref, bb1_ref, wb2_ref, bb2_ref,
                   wbh1_ref, bbh1_ref, wbh2_ref, bbh2_ref,
                   wh1_ref, bh1_ref, wh2_ref, bh2_ref, wh3_ref, bh3_ref,
                   sym_table_ref, herb_table_t_ref):
    """Batch-independent sub-graphs in ONE kernel (cacheable across calls).

    herb table is written pre-transposed ([Dp, Hp]) so the hot infer kernel does a
    plain matmul (transpose cost paid once, here).
    """
    x = jnp.dot(bert_sym_ref[...], wb1_ref[...], preferred_element_type=F32) + bb1_ref[...]
    x = jnp.dot(x.astype(BF16), wb2_ref[...], preferred_element_type=F32) + bb2_ref[...]
    sym_table_ref[...] = (x + sym_emb_ref[...].astype(F32)).astype(BF16)        # [S, Dp]

    y = jnp.dot(bert_herb_ref[...], wbh1_ref[...], preferred_element_type=F32) + bbh1_ref[...]
    y = jnp.dot(y.astype(BF16), wbh2_ref[...], preferred_element_type=F32) + bbh2_ref[...]
    h = y + herb_emb_ref[...].astype(F32)
    h = jnp.tanh(jnp.dot(h.astype(BF16), wh1_ref[...], preferred_element_type=F32) + bh1_ref[...])
    h = jnp.tanh(jnp.dot(h.astype(BF16), wh2_ref[...], preferred_element_type=F32) + bh2_ref[...])
    h = jnp.dot(h.astype(BF16), wh3_ref[...], preferred_element_type=F32) + bh3_ref[...]  # [Hp, Dp]
    herb_table_t_ref[...] = h.T.astype(BF16)                                    # [Dp, Hp]


def _infer_kernel(oh_ref, tbl_ref,
                  ws1_ref, bs1_ref, ws2_ref, bs2_ref, ws3_ref, bs3_ref,
                  ht_ref, wd_ref, bd_ref,
                  judge_herb_ref, judge_dosage_ref):
    """Per-batch hot path (cached-tables mode): get_sym -> mlp_sym -> judge -> dosage."""
    get_sym = jnp.dot(oh_ref[...].astype(BF16), tbl_ref[...],
                      preferred_element_type=F32)                               # [bb, Dp]
    s = jnp.tanh(jnp.dot(get_sym.astype(BF16), ws1_ref[...],
                         preferred_element_type=F32) + bs1_ref[...])
    s = jnp.tanh(jnp.dot(s.astype(BF16), ws2_ref[...],
                         preferred_element_type=F32) + bs2_ref[...])
    sym_agg = jnp.dot(s.astype(BF16), ws3_ref[...],
                      preferred_element_type=F32) + bs3_ref[...]                # [bb, Dp]

    # herb table is pre-transposed -> plain lane-major matmul (no XLU work here).
    judge_herb = jnp.dot(sym_agg.astype(BF16), ht_ref[...],
                         preferred_element_type=F32)                            # [bb, Hp]
    judge_herb_ref[...] = judge_herb

    jd = jnp.dot(judge_herb.astype(BF16), wd_ref[...],
                 preferred_element_type=F32) + bd_ref[...]
    jd = jnp.dot(jnp.maximum(jd, 0.0).astype(BF16), wd_ref[...],
                 preferred_element_type=F32) + bd_ref[...]
    judge_dosage_ref[...] = jd


# ----------------------------------------------------------------------------
# Wrappers
# ----------------------------------------------------------------------------
def prepare_params(p):
    """Zero-pad lane dims to 128 and cast matmul operands to bf16 (done once).

    Symptom axis is left UNPADDED (it is only a contraction dim); herb_cnt and
    embedding_dim are padded to 128 for lane-dense stores and clean MXU tiles.
    """
    S, E = p["bert_sym_w"].shape
    H = p["bert_herb_w"].shape[0]
    D = p["sym_w"].shape[1]
    Dp = _round_up(D, 128)
    Hp = _round_up(H, 128)

    pp = {}
    pp["bert_sym"] = p["bert_sym_w"].astype(BF16)                      # [S, E]
    pp["sym_emb"] = _pad_to(p["sym_w"], (S, Dp), BF16)                 # [S, Dp]
    pp["bert_herb"] = _pad_to(p["bert_herb_w"], (Hp, E), BF16)         # [Hp, E]
    pp["herb_emb"] = _pad_to(p["herb_w"], (Hp, Dp), BF16)              # [Hp, Dp]

    pp["wb1"] = p["wb1"].astype(BF16);                pp["bb1"] = p["bb1"].astype(F32)
    pp["wb2"] = _pad_to(p["wb2"], (256, Dp), BF16);   pp["bb2"] = _pad_to(p["bb2"], (1, Dp), F32)
    pp["wbh1"] = p["wbh1"].astype(BF16);              pp["bbh1"] = p["bbh1"].astype(F32)
    pp["wbh2"] = _pad_to(p["wbh2"], (256, Dp), BF16); pp["bbh2"] = _pad_to(p["bbh2"], (1, Dp), F32)

    pp["ws1"] = _pad_to(p["ws1"], (Dp, 256), BF16);   pp["bs1"] = p["bs1"].astype(F32)
    pp["ws2"] = p["ws2"].astype(BF16);                pp["bs2"] = p["bs2"].astype(F32)
    pp["ws3"] = _pad_to(p["ws3"], (256, Dp), BF16);   pp["bs3"] = _pad_to(p["bs3"], (1, Dp), F32)

    pp["wh1"] = _pad_to(p["wh1"], (Dp, 256), BF16);   pp["bh1"] = p["bh1"].astype(F32)
    pp["wh2"] = p["wh2"].astype(BF16);                pp["bh2"] = p["bh2"].astype(F32)
    pp["wh3"] = _pad_to(p["wh3"], (256, Dp), BF16);   pp["bh3"] = _pad_to(p["bh3"], (1, Dp), F32)

    # wd/bd padding MUST stay exactly zero (masks garbage in padded herb columns).
    pp["wd"] = _pad_to(p["wd"], (Hp, Hp), BF16);      pp["bd"] = _pad_to(p["bd"], (1, Hp), F32)
    return pp


def presrecrf_forward(symptom_oh, pp, *, herb_cnt):
    """Full forward, fused into a single pallas_call (same semantics as torch forward)."""
    B, S = symptom_oh.shape
    E = pp["bert_sym"].shape[1]
    Dp = pp["sym_emb"].shape[1]
    Hp = pp["wd"].shape[0]

    operands = (symptom_oh, pp["bert_sym"], pp["sym_emb"], pp["bert_herb"], pp["herb_emb"],
                pp["wb1"], pp["bb1"], pp["wb2"], pp["bb2"],
                pp["wbh1"], pp["bbh1"], pp["wbh2"], pp["bbh2"],
                pp["ws1"], pp["bs1"], pp["ws2"], pp["bs2"], pp["ws3"], pp["bs3"],
                pp["wh1"], pp["bh1"], pp["wh2"], pp["bh2"], pp["wh3"], pp["bh3"],
                pp["wd"], pp["bd"])

    flops = 2 * (S * (E * 256 + 256 * Dp)
                 + Hp * (E * 256 + 256 * Dp + Dp * 256 + 256 * 256 + 256 * Dp)
                 + B * (S * Dp + Dp * 256 + 256 * 256 + 256 * Dp + Dp * Hp + 2 * Hp * Hp))
    bytes_accessed = sum(int(a.size) * a.dtype.itemsize for a in operands) + 2 * B * Hp * 4
    cost = pl.CostEstimate(flops=int(flops),
                           transcendentals=int(2 * Hp * 256 + 2 * B * 256),
                           bytes_accessed=int(bytes_accessed))

    judge_herb, judge_dosage = pl.pallas_call(
        _fused_forward_kernel,
        out_shape=(jax.ShapeDtypeStruct((B, Hp), F32),
                   jax.ShapeDtypeStruct((B, Hp), F32)),
        grid=(1,),
        in_specs=[_full(a.shape) for a in operands],
        out_specs=(_full((B, Hp)), _full((B, Hp))),
        compiler_params=pltpu.CompilerParams(dimension_semantics=("arbitrary",)),
        cost_estimate=cost,
    )(*operands)

    return judge_herb[:, :herb_cnt], judge_dosage[:, :herb_cnt]


def precompute_tables(pp):
    """Batch-independent sub-graphs (single kernel). Outputs can be cached across calls.

    Returns (sym_table [S, Dp] bf16, herb_table_T [Dp, Hp] bf16).
    Note: herb_table_T columns >= herb_cnt are non-zero garbage (bias propagation) —
    harmless for presrecrf_infer, but do not consume them elsewhere.
    """
    S, E = pp["bert_sym"].shape
    Hp = pp["bert_herb"].shape[0]
    Dp = pp["sym_emb"].shape[1]

    operands = (pp["bert_sym"], pp["sym_emb"], pp["bert_herb"], pp["herb_emb"],
                pp["wb1"], pp["bb1"], pp["wb2"], pp["bb2"],
                pp["wbh1"], pp["bbh1"], pp["wbh2"], pp["bbh2"],
                pp["wh1"], pp["bh1"], pp["wh2"], pp["bh2"], pp["wh3"], pp["bh3"])

    sym_table, herb_table_t = pl.pallas_call(
        _tables_kernel,
        out_shape=(jax.ShapeDtypeStruct((S, Dp), BF16),
                   jax.ShapeDtypeStruct((Dp, Hp), BF16)),
        grid=(1,),
        in_specs=[_full(a.shape) for a in operands],
        out_specs=(_full((S, Dp)), _full((Dp, Hp))),
        compiler_params=pltpu.CompilerParams(dimension_semantics=("arbitrary",)),
    )(*operands)
    return sym_table, herb_table_t


def presrecrf_infer(symptom_oh, sym_table, herb_table_t, pp, *, herb_cnt):
    """Per-inference hot path using cached tables (only symptom_oh-dependent work)."""
    B, S = symptom_oh.shape
    Dp = sym_table.shape[1]
    Hp = herb_table_t.shape[1]

    if B <= 512:
        BB, Bp, oh = B, B, symptom_oh                   # no pad / no convert in the wrapper
    else:
        BB = 512                                        # large tile: amortize per-step overhead
        Bp = _round_up(B, BB)
        oh = jnp.pad(symptom_oh, ((0, Bp - B), (0, 0)))

    const = lambda shape: pl.BlockSpec(shape, lambda i: (0, 0))   # VMEM-resident weight
    row = lambda shape: pl.BlockSpec(shape, lambda i: (i, 0))     # batch-tiled

    cost = pl.CostEstimate(
        flops=int(2 * Bp * (S * Dp + Dp * 256 + 256 * 256 + 256 * Dp + Dp * Hp + 2 * Hp * Hp)),
        transcendentals=int(2 * Bp * 256),
        bytes_accessed=int(4 * Bp * S + 2 * (S * Dp + Dp * Hp + Dp * 256 + 256 * 256
                                             + 256 * Dp + Hp * Hp) + 4 * 2 * Bp * Hp),
    )

    judge_herb, judge_dosage = pl.pallas_call(
        _infer_kernel,
        out_shape=(jax.ShapeDtypeStruct((Bp, Hp), F32),
                   jax.ShapeDtypeStruct((Bp, Hp), F32)),
        grid=(Bp // BB,),
        in_specs=[row((BB, S)), const((S, Dp)),
                  const((Dp, 256)), const((1, 256)),
                  const((256, 256)), const((1, 256)),
                  const((256, Dp)), const((1, Dp)),
                  const((Dp, Hp)),
                  const((Hp, Hp)), const((1, Hp))],
        out_specs=(row((BB, Hp)), row((BB, Hp))),
        compiler_params=pltpu.CompilerParams(dimension_semantics=("parallel",)),
        cost_estimate=cost,
    )(oh, sym_table,
      pp["ws1"], pp["bs1"], pp["ws2"], pp["bs2"], pp["ws3"], pp["bs3"],
      herb_table_t, pp["wd"], pp["bd"])

    return judge_herb[:B, :herb_cnt], judge_dosage[:B, :herb_cnt]


# ----------------------------------------------------------------------------
# References
# ----------------------------------------------------------------------------
def reference_forward_f32(symptom_oh, p):
    """Pure-JAX f32 reference mirroring the PyTorch forward (eval mode)."""
    lin = lambda x, w, b: x @ w + b
    bert_sym = lin(lin(p["bert_sym_w"], p["wb1"], p["bb1"]), p["wb2"], p["bb2"])
    bert_herb = lin(lin(p["bert_herb_w"], p["wbh1"], p["bbh1"]), p["wbh2"], p["bbh2"])
    get_sym = symptom_oh @ (bert_sym + p["sym_w"])
    s = jnp.tanh(lin(get_sym, p["ws1"], p["bs1"]))
    s = jnp.tanh(lin(s, p["ws2"], p["bs2"]))
    sym_agg = lin(s, p["ws3"], p["bs3"])
    h = bert_herb + p["herb_w"]
    h = jnp.tanh(lin(h, p["wh1"], p["bh1"]))
    h = jnp.tanh(lin(h, p["wh2"], p["bh2"]))
    h = lin(h, p["wh3"], p["bh3"])
    judge_herb = sym_agg @ h.T
    jd = lin(judge_herb, p["wd"], p["bd"])
    jd = lin(jnp.maximum(jd, 0.0), p["wd"], p["bd"])
    return judge_herb, jd


def reference_forward_bf16(symptom_oh, p):
    """Mirrors the kernel's exact bf16-operand / f32-accumulate casting."""
    def lin(x, w, b):
        return jnp.dot(x.astype(BF16), w.astype(BF16),
                       preferred_element_type=F32) + b.astype(F32)
    bert_sym = lin(lin(p["bert_sym_w"], p["wb1"], p["bb1"]), p["wb2"], p["bb2"])
    sym_table = (bert_sym + p["sym_w"].astype(BF16).astype(F32)).astype(BF16)
    get_sym = jnp.dot(symptom_oh.astype(BF16), sym_table, preferred_element_type=F32)
    s = jnp.tanh(lin(get_sym, p["ws1"], p["bs1"]))
    s = jnp.tanh(lin(s, p["ws2"], p["bs2"]))
    sym_agg = lin(s, p["ws3"], p["bs3"])
    bert_herb = lin(lin(p["bert_herb_w"], p["wbh1"], p["bbh1"]), p["wbh2"], p["bbh2"])
    h = bert_herb + p["herb_w"].astype(BF16).astype(F32)
    h = jnp.tanh(lin(h, p["wh1"], p["bh1"]))
    h = jnp.tanh(lin(h, p["wh2"], p["bh2"]))
    h = lin(h, p["wh3"], p["bh3"]).astype(BF16)
    judge_herb = jnp.dot(sym_agg.astype(BF16), h.T, preferred_element_type=F32)
    jd = lin(judge_herb, p["wd"], p["bd"])
    jd = lin(jnp.maximum(jd, 0.0), p["wd"], p["bd"])
    return judge_herb, jd


def init_params(key, *, embedding_dim, symptom_cnt, herb_cnt, bert_dim):
    """Deterministic synthetic parameters (Linear weights stored as [in, out])."""
    ks = iter(jax.random.split(key, 64))

    def linear(in_dim, out_dim):
        bound = 1.0 / jnp.sqrt(jnp.float32(in_dim))
        w = jax.random.uniform(next(ks), (in_dim, out_dim), jnp.float32, -bound, bound)
        b = jax.random.uniform(next(ks), (1, out_dim), jnp.float32, -bound, bound)
        return w, b

    p = {}
    p["bert_sym_w"] = jax.random.normal(next(ks), (symptom_cnt, bert_dim), jnp.float32) * 0.05
    p["bert_herb_w"] = jax.random.normal(next(ks), (herb_cnt, bert_dim), jnp.float32) * 0.05
    p["sym_w"] = jax.random.normal(next(ks), (symptom_cnt, embedding_dim), jnp.float32) * 0.05
    p["herb_w"] = jax.random.normal(next(ks), (herb_cnt, embedding_dim), jnp.float32) * 0.05

    p["wb1"], p["bb1"] = linear(bert_dim, 256)
    p["wb2"], p["bb2"] = linear(256, embedding_dim)
    p["wbh1"], p["bbh1"] = linear(bert_dim, 256)
    p["wbh2"], p["bbh2"] = linear(256, embedding_dim)
    p["ws1"], p["bs1"] = linear(embedding_dim, 256)
    p["ws2"], p["bs2"] = linear(256, 256)
    p["ws3"], p["bs3"] = linear(256, embedding_dim)
    p["wh1"], p["bh1"] = linear(embedding_dim, 256)
    p["wh2"], p["bh2"] = linear(256, 256)
    p["wh3"], p["bh3"] = linear(256, embedding_dim)
    p["wd"], p["bd"] = linear(herb_cnt, herb_cnt)
    return p


if __name__ == "__main__":
    batch = 8
    embedding_dim = 64
    symptom_cnt = 32
    herb_cnt = 16
    bert_dim = 768  # semantic='Bert'

    key = jax.random.PRNGKey(0)
    k_param, k_oh = jax.random.split(key)
    params = init_params(
        k_param,
        embedding_dim=embedding_dim,
        symptom_cnt=symptom_cnt,
        herb_cnt=herb_cnt,
        bert_dim=bert_dim,
    )
    symptom_oh = (jax.random.uniform(k_oh, (batch, symptom_cnt)) < 0.3).astype(jnp.float32)

    pp = prepare_params(params)  # one-time: pad lane dims + bf16-cast

    # ---- Uncached path: fully fused single kernel ----
    fwd = jax.jit(functools.partial(presrecrf_forward, herb_cnt=herb_cnt))
    judge_herb, judge_dosage = jax.block_until_ready(fwd(symptom_oh, pp))
    assert judge_herb.shape == (batch, herb_cnt)
    assert judge_dosage.shape == (batch, herb_cnt)

    # ---- Cached path: one-time table kernel + lean per-inference kernel ----
    sym_table, herb_table_t = jax.block_until_ready(jax.jit(precompute_tables)(pp))
    infer = jax.jit(functools.partial(presrecrf_infer, herb_cnt=herb_cnt))
    jh_c, jd_c = jax.block_until_ready(infer(symptom_oh, sym_table, herb_table_t, pp))
    assert jh_c.shape == (batch, herb_cnt)
    assert jd_c.shape == (batch, herb_cnt)

    # Fused and cached paths must agree.
    assert jnp.allclose(judge_herb, jh_c, rtol=1e-2, atol=1e-2)
    assert jnp.allclose(judge_dosage, jd_c, rtol=1e-2, atol=1e-2)

    # Tight check against a reference that uses the exact same bf16/f32 casting.
    ref_h_bf, ref_d_bf = reference_forward_bf16(symptom_oh, params)
    assert jnp.allclose(judge_herb, ref_h_bf, rtol=5e-3, atol=5e-3)
    assert jnp.allclose(judge_dosage, ref_d_bf, rtol=5e-3, atol=5e-3)
    assert jnp.allclose(jh_c, ref_h_bf, rtol=5e-3, atol=5e-3)
    assert jnp.allclose(jd_c, ref_d_bf, rtol=5e-3, atol=5e-3)

    # Sanity check against the full-f32 reference; tolerance sized for bf16 operands.
    ref_h_f32, ref_d_f32 = reference_forward_f32(symptom_oh, params)
    assert jnp.allclose(judge_herb, ref_h_f32, rtol=5e-2, atol=5e-2)
    assert jnp.allclose(judge_dosage, ref_d_f32, rtol=5e-2, atol=5e-2)

    print("KERNEL_OK")
</pallas_src>

<mosaic_0001>
module attributes {stable_mosaic.version = 11 : i64} {
  func.func @_fused_forward_kernel(%arg0: i32, %arg1: memref<8x32xf32, #tpu.memory_space<vmem>>, %arg2: memref<32x768xbf16, #tpu.memory_space<vmem>>, %arg3: memref<32x128xbf16, #tpu.memory_space<vmem>>, %arg4: memref<128x768xbf16, #tpu.memory_space<vmem>>, %arg5: memref<128x128xbf16, #tpu.memory_space<vmem>>, %arg6: memref<768x256xbf16, #tpu.memory_space<vmem>>, %arg7: memref<1x256xf32, #tpu.memory_space<vmem>>, %arg8: memref<256x128xbf16, #tpu.memory_space<vmem>>, %arg9: memref<1x128xf32, #tpu.memory_space<vmem>>, %arg10: memref<768x256xbf16, #tpu.memory_space<vmem>>, %arg11: memref<1x256xf32, #tpu.memory_space<vmem>>, %arg12: memref<256x128xbf16, #tpu.memory_space<vmem>>, %arg13: memref<1x128xf32, #tpu.memory_space<vmem>>, %arg14: memref<128x256xbf16, #tpu.memory_space<vmem>>, %arg15: memref<1x256xf32, #tpu.memory_space<vmem>>, %arg16: memref<256x256xbf16, #tpu.memory_space<vmem>>, %arg17: memref<1x256xf32, #tpu.memory_space<vmem>>, %arg18: memref<256x128xbf16, #tpu.memory_space<vmem>>, %arg19: memref<1x128xf32, #tpu.memory_space<vmem>>, %arg20: memref<128x256xbf16, #tpu.memory_space<vmem>>, %arg21: memref<1x256xf32, #tpu.memory_space<vmem>>, %arg22: memref<256x256xbf16, #tpu.memory_space<vmem>>, %arg23: memref<1x256xf32, #tpu.memory_space<vmem>>, %arg24: memref<256x128xbf16, #tpu.memory_space<vmem>>, %arg25: memref<1x128xf32, #tpu.memory_space<vmem>>, %arg26: memref<128x128xbf16, #tpu.memory_space<vmem>>, %arg27: memref<1x128xf32, #tpu.memory_space<vmem>>, %arg28: memref<8x128xf32, #tpu.memory_space<vmem>>, %arg29: memref<8x128xf32, #tpu.memory_space<vmem>>) attributes {dimension_semantics = [#tpu.dimension_semantics<arbitrary>], iteration_bounds = array<i64: 1>, scalar_prefetch = 0 : i64, scratch_operands = 0 : i64, tpu.core_type = #tpu.core_type<tc>, window_params = [{pipeline_mode = #tpu.pipeline_mode<synchronous>, transform_indices = @transform_0, window_bounds = array<i64: 8, 32>}, {pipeline_mode = #tpu.pipeline_mode<synchronous>, transform_indices = @transform_1, window_bounds = array<i64: 32, 768>}, {pipeline_mode = #tpu.pipeline_mode<synchronous>, transform_indices = @transform_2, window_bounds = array<i64: 32, 128>}, {pipeline_mode = #tpu.pipeline_mode<synchronous>, transform_indices = @transform_3, window_bounds = array<i64: 128, 768>}, {pipeline_mode = #tpu.pipeline_mode<synchronous>, transform_indices = @transform_4, window_bounds = array<i64: 128, 128>}, {pipeline_mode = #tpu.pipeline_mode<synchronous>, transform_indices = @transform_5, window_bounds = array<i64: 768, 256>}, {pipeline_mode = #tpu.pipeline_mode<synchronous>, transform_indices = @transform_6, window_bounds = array<i64: 1, 256>}, {pipeline_mode = #tpu.pipeline_mode<synchronous>, transform_indices = @transform_7, window_bounds = array<i64: 256, 128>}, {pipeline_mode = #tpu.pipeline_mode<synchronous>, transform_indices = @transform_8, window_bounds = array<i64: 1, 128>}, {pipeline_mode = #tpu.pipeline_mode<synchronous>, transform_indices = @transform_9, window_bounds = array<i64: 768, 256>}, {pipeline_mode = #tpu.pipeline_mode<synchronous>, transform_indices = @transform_10, window_bounds = array<i64: 1, 256>}, {pipeline_mode = #tpu.pipeline_mode<synchronous>, transform_indices = @transform_11, window_bounds = array<i64: 256, 128>}, {pipeline_mode = #tpu.pipeline_mode<synchronous>, transform_indices = @transform_12, window_bounds = array<i64: 1, 128>}, {pipeline_mode = #tpu.pipeline_mode<synchronous>, transform_indices = @transform_13, window_bounds = array<i64: 128, 256>}, {pipeline_mode = #tpu.pipeline_mode<synchronous>, transform_indices = @transform_14, window_bounds = array<i64: 1, 256>}, {pipeline_mode = #tpu.pipeline_mode<synchronous>, transform_indices = @transform_15, window_bounds = array<i64: 256, 256>}, {pipeline_mode = #tpu.pipeline_mode<synchronous>, transform_indices = @transform_16, window_bounds = array<i64: 1, 256>}, {pipeline_mode = #tpu.pipeline_mode<synchronous>, transform_indices = @transform_17, window_bounds = array<i64: 256, 128>}, {pipeline_mode = #tpu.pipeline_mode<synchronous>, transform_indices = @transform_18, window_bounds = array<i64: 1, 128>}, {pipeline_mode = #tpu.pipeline_mode<synchronous>, transform_indices = @transform_19, window_bounds = array<i64: 128, 256>}, {pipeline_mode = #tpu.pipeline_mode<synchronous>, transform_indices = @transform_20, window_bounds = array<i64: 1, 256>}, {pipeline_mode = #tpu.pipeline_mode<synchronous>, transform_indices = @transform_21, window_bounds = array<i64: 256, 256>}, {pipeline_mode = #tpu.pipeline_mode<synchronous>, transform_indices = @transform_22, window_bounds = array<i64: 1, 256>}, {pipeline_mode = #tpu.pipeline_mode<synchronous>, transform_indices = @transform_23, window_bounds = array<i64: 256, 128>}, {pipeline_mode = #tpu.pipeline_mode<synchronous>, transform_indices = @transform_24, window_bounds = array<i64: 1, 128>}, {pipeline_mode = #tpu.pipeline_mode<synchronous>, transform_indices = @transform_25, window_bounds = array<i64: 128, 128>}, {pipeline_mode = #tpu.pipeline_mode<synchronous>, transform_indices = @transform_26, window_bounds = array<i64: 1, 128>}, {pipeline_mode = #tpu.pipeline_mode<synchronous>, transform_indices = @transform_27, window_bounds = array<i64: 8, 128>}, {pipeline_mode = #tpu.pipeline_mode<synchronous>, transform_indices = @transform_28, window_bounds = array<i64: 8, 128>}]} {
    %c0 = arith.constant 0 : index
    %c0_0 = arith.constant 0 : index
    %0 = vector.load %arg2[%c0, %c0_0] : memref<32x768xbf16, #tpu.memory_space<vmem>>, vector<32x768xbf16>
    %c0_1 = arith.constant 0 : index
    %c0_2 = arith.constant 0 : index
    %1 = vector.load %arg6[%c0_1, %c0_2] : memref<768x256xbf16, #tpu.memory_space<vmem>>, vector<768x256xbf16>
    %cst = arith.constant dense<0.000000e+00> : vector<32x256xf32>
    %2 = tpu.matmul %0, %1, %cst {dimension_numbers = #tpu.dot_dimension_numbers<[1], [0], [0], [1], [0, 0, 1, 1], [], []>} : vector<32x768xbf16>, vector<768x256xbf16>, vector<32x256xf32> -> vector<32x256xf32>
    %c0_3 = arith.constant 0 : index
    %c0_4 = arith.constant 0 : index
    %3 = vector.load %arg7[%c0_3, %c0_4] : memref<1x256xf32, #tpu.memory_space<vmem>>, vector<1x256xf32>
    %4 = vector.broadcast %3 : vector<1x256xf32> to vector<32x256xf32>
    %5 = arith.addf %2, %4 : vector<32x256xf32>
    %6 = arith.truncf %5 : vector<32x256xf32> to vector<32x256xbf16>
    %c0_5 = arith.constant 0 : index
    %c0_6 = arith.constant 0 : index
    %7 = vector.load %arg8[%c0_5, %c0_6] : memref<256x128xbf16, #tpu.memory_space<vmem>>, vector<256x128xbf16>
    %cst_7 = arith.constant dense<0.000000e+00> : vector<32x128xf32>
    %8 = tpu.matmul %6, %7, %cst_7 {dimension_numbers = #tpu.dot_dimension_numbers<[1], [0], [0], [1], [0, 0, 1, 1], [], []>} : vector<32x256xbf16>, vector<256x128xbf16>, vector<32x128xf32> -> vector<32x128xf32>
    %c0_8 = arith.constant 0 : index
    %c0_9 = arith.constant 0 : index
    %9 = vector.load %arg9[%c0_8, %c0_9] : memref<1x128xf32, #tpu.memory_space<vmem>>, vector<1x128xf32>
    %10 = vector.broadcast %9 : vector<1x128xf32> to vector<32x128xf32>
    %11 = arith.addf %8, %10 : vector<32x128xf32>
    %c0_10 = arith.constant 0 : index
    %c0_11 = arith.constant 0 : index
    %12 = vector.load %arg3[%c0_10, %c0_11] : memref<32x128xbf16, #tpu.memory_space<vmem>>, vector<32x128xbf16>
    %13 = arith.extf %12 : vector<32x128xbf16> to vector<32x128xf32>
    %14 = arith.addf %11, %13 : vector<32x128xf32>
    %15 = arith.truncf %14 : vector<32x128xf32> to vector<32x128xbf16>
    %c0_12 = arith.constant 0 : index
    %c0_13 = arith.constant 0 : index
    %16 = vector.load %arg4[%c0_12, %c0_13] : memref<128x768xbf16, #tpu.memory_space<vmem>>, vector<128x768xbf16>
    %c0_14 = arith.constant 0 : index
    %c0_15 = arith.constant 0 : index
    %17 = vector.load %arg10[%c0_14, %c0_15] : memref<768x256xbf16, #tpu.memory_space<vmem>>, vector<768x256xbf16>
    %cst_16 = arith.constant dense<0.000000e+00> : vector<128x256xf32>
    %18 = tpu.matmul %16, %17, %cst_16 {dimension_numbers = #tpu.dot_dimension_numbers<[1], [0], [0], [1], [0, 0, 1, 1], [], []>} : vector<128x768xbf16>, vector<768x256xbf16>, vector<128x256xf32> -> vector<128x256xf32>
    %c0_17 = arith.constant 0 : index
    %c0_18 = arith.constant 0 : index
    %19 = vector.load %arg11[%c0_17, %c0_18] : memref<1x256xf32, #tpu.memory_space<vmem>>, vector<1x256xf32>
    %20 = vector.broadcast %19 : vector<1x256xf32> to vector<128x256xf32>
    %21 = arith.addf %18, %20 : vector<128x256xf32>
    %22 = arith.truncf %21 : vector<128x256xf32> to vector<128x256xbf16>
    %c0_19 = arith.constant 0 : index
    %c0_20 = arith.constant 0 : index
    %23 = vector.load %arg12[%c0_19, %c0_20] : memref<256x128xbf16, #tpu.memory_space<vmem>>, vector<256x128xbf16>
    %cst_21 = arith.constant dense<0.000000e+00> : vector<128x128xf32>
    %24 = tpu.matmul %22, %23, %cst_21 {dimension_numbers = #tpu.dot_dimension_numbers<[1], [0], [0], [1], [0, 0, 1, 1], [], []>} : vector<128x256xbf16>, vector<256x128xbf16>, vector<128x128xf32> -> vector<128x128xf32>
    %c0_22 = arith.constant 0 : index
    %c0_23 = arith.constant 0 : index
    %25 = vector.load %arg13[%c0_22, %c0_23] : memref<1x128xf32, #tpu.memory_space<vmem>>, vector<1x128xf32>
    %26 = vector.broadcast %25 : vector<1x128xf32> to vector<128x128xf32>
    %27 = arith.addf %24, %26 : vector<128x128xf32>
    %c0_24 = arith.constant 0 : index
    %c0_25 = arith.constant 0 : index
    %28 = vector.load %arg5[%c0_24, %c0_25] : memref<128x128xbf16, #tpu.memory_space<vmem>>, vector<128x128xbf16>
    %29 = arith.extf %28 : vector<128x128xbf16> to vector<128x128xf32>
    %30 = arith.addf %27, %29 : vector<128x128xf32>
    %31 = arith.truncf %30 : vector<128x128xf32> to vector<128x128xbf16>
    %c0_26 = arith.constant 0 : index
    %c0_27 = arith.constant 0 : index
    %32 = vector.load %arg20[%c0_26, %c0_27] : memref<128x256xbf16, #tpu.memory_space<vmem>>, vector<128x256xbf16>
    %cst_28 = arith.constant dense<0.000000e+00> : vector<128x256xf32>
    %33 = tpu.matmul %31, %32, %cst_28 {dimension_numbers = #tpu.dot_dimension_numbers<[1], [0], [0], [1], [0, 0, 1, 1], [], []>} : vector<128x128xbf16>, vector<128x256xbf16>, vector<128x256xf32> -> vector<128x256xf32>
    %c0_29 = arith.constant 0 : index
    %c0_30 = arith.constant 0 : index
    %34 = vector.load %arg21[%c0_29, %c0_30] : memref<1x256xf32, #tpu.memory_space<vmem>>, vector<1x256xf32>
    %35 = vector.broadcast %34 : vector<1x256xf32> to vector<128x256xf32>
    %36 = arith.addf %33, %35 : vector<128x256xf32>
    %37 = math.tanh %36 : vector<128x256xf32>
    %38 = arith.truncf %37 : vector<128x256xf32> to vector<128x256xbf16>
    %c0_31 = arith.constant 0 : index
    %c0_32 = arith.constant 0 : index
    %39 = vector.load %arg22[%c0_31, %c0_32] : memref<256x256xbf16, #tpu.memory_space<vmem>>, vector<256x256xbf16>
    %cst_33 = arith.constant dense<0.000000e+00> : vector<128x256xf32>
    %40 = tpu.matmul %38, %39, %cst_33 {dimension_numbers = #tpu.dot_dimension_numbers<[1], [0], [0], [1], [0, 0, 1, 1], [], []>} : vector<128x256xbf16>, vector<256x256xbf16>, vector<128x256xf32> -> vector<128x256xf32>
    %c0_34 = arith.constant 0 : index
    %c0_35 = arith.constant 0 : index
    %41 = vector.load %arg23[%c0_34, %c0_35] : memref<1x256xf32, #tpu.memory_space<vmem>>, vector<1x256xf32>
    %42 = vector.broadcast %41 : vector<1x256xf32> to vector<128x256xf32>
    %43 = arith.addf %40, %42 : vector<128x256xf32>
    %44 = math.tanh %43 : vector<128x256xf32>
    %45 = arith.truncf %44 : vector<128x256xf32> to vector<128x256xbf16>
    %c0_36 = arith.constant 0 : index
    %c0_37 = arith.constant 0 : index
    %46 = vector.load %arg24[%c0_36, %c0_37] : memref<256x128xbf16, #tpu.memory_space<vmem>>, vector<256x128xbf16>
    %cst_38 = arith.constant dense<0.000000e+00> : vector<128x128xf32>
    %47 = tpu.matmul %45, %46, %cst_38 {dimension_numbers = #tpu.dot_dimension_numbers<[1], [0], [0], [1], [0, 0, 1, 1], [], []>} : vector<128x256xbf16>, vector<256x128xbf16>, vector<128x128xf32> -> vector<128x128xf32>
    %c0_39 = arith.constant 0 : index
    %c0_40 = arith.constant 0 : index
    %48 = vector.load %arg25[%c0_39, %c0_40] : memref<1x128xf32, #tpu.memory_space<vmem>>, vector<1x128xf32>
    %49 = vector.broadcast %48 : vector<1x128xf32> to vector<128x128xf32>
    %50 = arith.addf %47, %49 : vector<128x128xf32>
    %c0_41 = arith.constant 0 : index
    %c0_42 = arith.constant 0 : index
    %51 = vector.load %arg1[%c0_41, %c0_42] : memref<8x32xf32, #tpu.memory_space<vmem>>, vector<8x32xf32>
    %52 = arith.truncf %51 : vector<8x32xf32> to vector<8x32xbf16>
    %cst_43 = arith.constant dense<0.000000e+00> : vector<8x128xf32>
    %53 = tpu.matmul %52, %15, %cst_43 {dimension_numbers = #tpu.dot_dimension_numbers<[1], [0], [0], [1], [0, 0, 1, 1], [], []>} : vector<8x32xbf16>, vector<32x128xbf16>, vector<8x128xf32> -> vector<8x128xf32>
    %54 = arith.truncf %53 : vector<8x128xf32> to vector<8x128xbf16>
    %c0_44 = arith.constant 0 : index
    %c0_45 = arith.constant 0 : index
    %55 = vector.load %arg14[%c0_44, %c0_45] : memref<128x256xbf16, #tpu.memory_space<vmem>>, vector<128x256xbf16>
    %cst_46 = arith.constant dense<0.000000e+00> : vector<8x256xf32>
    %56 = tpu.matmul %54, %55, %cst_46 {dimension_numbers = #tpu.dot_dimension_numbers<[1], [0], [0], [1], [0, 0, 1, 1], [], []>} : vector<8x128xbf16>, vector<128x256xbf16>, vector<8x256xf32> -> vector<8x256xf32>
    %c0_47 = arith.constant 0 : index
    %c0_48 = arith.constant 0 : index
    %57 = vector.load %arg15[%c0_47, %c0_48] : memref<1x256xf32, #tpu.memory_space<vmem>>, vector<1x256xf32>
    %58 = vector.broadcast %57 : vector<1x256xf32> to vector<8x256xf32>
    %59 = arith.addf %56, %58 : vector<8x256xf32>
    %60 = math.tanh %59 : vector<8x256xf32>
    %61 = arith.truncf %60 : vector<8x256xf32> to vector<8x256xbf16>
    %c0_49 = arith.constant 0 : index
    %c0_50 = arith.constant 0 : index
    %62 = vector.load %arg16[%c0_49, %c0_50] : memref<256x256xbf16, #tpu.memory_space<vmem>>, vector<256x256xbf16>
    %cst_51 = arith.constant dense<0.000000e+00> : vector<8x256xf32>
    %63 = tpu.matmul %61, %62, %cst_51 {dimension_numbers = #tpu.dot_dimension_numbers<[1], [0], [0], [1], [0, 0, 1, 1], [], []>} : vector<8x256xbf16>, vector<256x256xbf16>, vector<8x256xf32> -> vector<8x256xf32>
    %c0_52 = arith.constant 0 : index
    %c0_53 = arith.constant 0 : index
    %64 = vector.load %arg17[%c0_52, %c0_53] : memref<1x256xf32, #tpu.memory_space<vmem>>, vector<1x256xf32>
    %65 = vector.broadcast %64 : vector<1x256xf32> to vector<8x256xf32>
    %66 = arith.addf %63, %65 : vector<8x256xf32>
    %67 = math.tanh %66 : vector<8x256xf32>
    %68 = arith.truncf %67 : vector<8x256xf32> to vector<8x256xbf16>
    %c0_54 = arith.constant 0 : index
    %c0_55 = arith.constant 0 : index
    %69 = vector.load %arg18[%c0_54, %c0_55] : memref<256x128xbf16, #tpu.memory_space<vmem>>, vector<256x128xbf16>
    %cst_56 = arith.constant dense<0.000000e+00> : vector<8x128xf32>
    %70 = tpu.matmul %68, %69, %cst_56 {dimension_numbers = #tpu.dot_dimension_numbers<[1], [0], [0], [1], [0, 0, 1, 1], [], []>} : vector<8x256xbf16>, vector<256x128xbf16>, vector<8x128xf32> -> vector<8x128xf32>
    %c0_57 = arith.constant 0 : index
    %c0_58 = arith.constant 0 : index
    %71 = vector.load %arg19[%c0_57, %c0_58] : memref<1x128xf32, #tpu.memory_space<vmem>>, vector<1x128xf32>
    %72 = vector.broadcast %71 : vector<1x128xf32> to vector<8x128xf32>
    %73 = arith.addf %70, %72 : vector<8x128xf32>
    %74 = arith.truncf %73 : vector<8x128xf32> to vector<8x128xbf16>
    %75 = arith.truncf %50 : vector<128x128xf32> to vector<128x128xbf16>
    %cst_59 = arith.constant dense<0.000000e+00> : vector<8x128xf32>
    %76 = tpu.matmul %74, %75, %cst_59 {dimension_numbers = #tpu.dot_dimension_numbers<[1], [1], [0], [0], [0, 0, 1, 0], [], []>} : vector<8x128xbf16>, vector<128x128xbf16>, vector<8x128xf32> -> vector<8x128xf32>
    %c0_60 = arith.constant 0 : index
    %c0_61 = arith.constant 0 : index
    %77 = vector.load %arg28[%c0_60, %c0_61] : memref<8x128xf32, #tpu.memory_space<vmem>>, vector<8x128xf32>
    tpu.vector_store %arg28[%c0_60, %c0_61], %76 {strides = array<i32>} : memref<8x128xf32, #tpu.memory_space<vmem>>, vector<8x128xf32>,
    %78 = arith.truncf %76 : vector<8x128xf32> to vector<8x128xbf16>
    %c0_62 = arith.constant 0 : index
    %c0_63 = arith.constant 0 : index
    %79 = vector.load %arg26[%c0_62, %c0_63] : memref<128x128xbf16, #tpu.memory_space<vmem>>, vector<128x128xbf16>
    %cst_64 = arith.constant dense<0.000000e+00> : vector<8x128xf32>
    %80 = tpu.matmul %78, %79, %cst_64 {dimension_numbers = #tpu.dot_dimension_numbers<[1], [0], [0], [1], [0, 0, 1, 1], [], []>} : vector<8x128xbf16>, vector<128x128xbf16>, vector<8x128xf32> -> vector<8x128xf32>
    %c0_65 = arith.constant 0 : index
    %c0_66 = arith.constant 0 : index
    %81 = vector.load %arg27[%c0_65, %c0_66] : memref<1x128xf32, #tpu.memory_space<vmem>>, vector<1x128xf32>
    %82 = vector.broadcast %81 : vector<1x128xf32> to vector<8x128xf32>
    %83 = arith.addf %80, %82 : vector<8x128xf32>
    %cst_67 = arith.constant 0.000000e+00 : f32
    %84 = vector.broadcast %cst_67 : f32 to vector<8x128xf32>
    %85 = arith.maximumf %83, %84 : vector<8x128xf32>
    %86 = arith.truncf %85 : vector<8x128xf32> to vector<8x128xbf16>
    %c0_68 = arith.constant 0 : index
    %c0_69 = arith.constant 0 : index
    %87 = vector.load %arg26[%c0_68, %c0_69] : memref<128x128xbf16, #tpu.memory_space<vmem>>, vector<128x128xbf16>
    %cst_70 = arith.constant dense<0.000000e+00> : vector<8x128xf32>
    %88 = tpu.matmul %86, %87, %cst_70 {dimension_numbers = #tpu.dot_dimension_numbers<[1], [0], [0], [1], [0, 0, 1, 1], [], []>} : vector<8x128xbf16>, vector<128x128xbf16>, vector<8x128xf32> -> vector<8x128xf32>
    %c0_71 = arith.constant 0 : index
    %c0_72 = arith.constant 0 : index
    %89 = vector.load %arg27[%c0_71, %c0_72] : memref<1x128xf32, #tpu.memory_space<vmem>>, vector<1x128xf32>
    %90 = vector.broadcast %89 : vector<1x128xf32> to vector<8x128xf32>
    %91 = arith.addf %88, %90 : vector<8x128xf32>
    %c0_73 = arith.constant 0 : index
    %c0_74 = arith.constant 0 : index
    %92 = vector.load %arg29[%c0_73, %c0_74] : memref<8x128xf32, #tpu.memory_space<vmem>>, vector<8x128xf32>
    tpu.vector_store %arg29[%c0_73, %c0_74], %91 {strides = array<i32>} : memref<8x128xf32, #tpu.memory_space<vmem>>, vector<8x128xf32>,
    return
  }
  func.func @transform_0(%arg0: i32) -> (i32, i32) {
    %c0_i32 = arith.constant 0 : i32
    %c0_i32_0 = arith.constant 0 : i32
    %c0_i32_1 = arith.constant 0 : i32
    return %c0_i32, %c0_i32_0 : i32, i32
  }
  func.func @transform_1(%arg0: i32) -> (i32, i32) {
    %c0_i32 = arith.constant 0 : i32
    %c0_i32_0 = arith.constant 0 : i32
    %c0_i32_1 = arith.constant 0 : i32
    return %c0_i32, %c0_i32_0 : i32, i32
  }
  func.func @transform_2(%arg0: i32) -> (i32, i32) {
    %c0_i32 = arith.constant 0 : i32
    %c0_i32_0 = arith.constant 0 : i32
    %c0_i32_1 = arith.constant 0 : i32
    return %c0_i32, %c0_i32_0 : i32, i32
  }
  func.func @transform_3(%arg0: i32) -> (i32, i32) {
    %c0_i32 = arith.constant 0 : i32
    %c0_i32_0 = arith.constant 0 : i32
    %c0_i32_1 = arith.constant 0 : i32
    return %c0_i32, %c0_i32_0 : i32, i32
  }
  func.func @transform_4(%arg0: i32) -> (i32, i32) {
    %c0_i32 = arith.constant 0 : i32
    %c0_i32_0 = arith.constant 0 : i32
    %c0_i32_1 = arith.constant 0 : i32
    return %c0_i32, %c0_i32_0 : i32, i32
  }
  func.func @transform_5(%arg0: i32) -> (i32, i32) {
    %c0_i32 = arith.constant 0 : i32
    %c0_i32_0 = arith.constant 0 : i32
    %c0_i32_1 = arith.constant 0 : i32
    return %c0_i32, %c0_i32_0 : i32, i32
  }
  func.func @transform_6(%arg0: i32) -> (i32, i32) {
    %c0_i32 = arith.constant 0 : i32
    %c0_i32_0 = arith.constant 0 : i32
    %c0_i32_1 = arith.constant 0 : i32
    return %c0_i32, %c0_i32_0 : i32, i32
  }
  func.func @transform_7(%arg0: i32) -> (i32, i32) {
    %c0_i32 = arith.constant 0 : i32
    %c0_i32_0 = arith.constant 0 : i32
    %c0_i32_1 = arith.constant 0 : i32
    return %c0_i32, %c0_i32_0 : i32, i32
  }
  func.func @transform_8(%arg0: i32) -> (i32, i32) {
    %c0_i32 = arith.constant 0 : i32
    %c0_i32_0 = arith.constant 0 : i32
    %c0_i32_1 = arith.constant 0 : i32
    return %c0_i32, %c0_i32_0 : i32, i32
  }
  func.func @transform_9(%arg0: i32) -> (i32, i32) {
    %c0_i32 = arith.constant 0 : i32
    %c0_i32_0 = arith.constant 0 : i32
    %c0_i32_1 = arith.constant 0 : i32
    return %c0_i32, %c0_i32_0 : i32, i32
  }
  func.func @transform_10(%arg0: i32) -> (i32, i32) {
    %c0_i32 = arith.constant 0 : i32
    %c0_i32_0 = arith.constant 0 : i32
    %c0_i32_1 = arith.constant 0 : i32
    return %c0_i32, %c0_i32_0 : i32, i32
  }
  func.func @transform_11(%arg0: i32) -> (i32, i32) {
    %c0_i32 = arith.constant 0 : i32
    %c0_i32_0 = arith.constant 0 : i32
    %c0_i32_1 = arith.constant 0 : i32
    return %c0_i32, %c0_i32_0 : i32, i32
  }
  func.func @transform_12(%arg0: i32) -> (i32, i32) {
    %c0_i32 = arith.constant 0 : i32
    %c0_i32_0 = arith.constant 0 : i32
    %c0_i32_1 = arith.constant 0 : i32
    return %c0_i32, %c0_i32_0 : i32, i32
  }
  func.func @transform_13(%arg0: i32) -> (i32, i32) {
    %c0_i32 = arith.constant 0 : i32
    %c0_i32_0 = arith.constant 0 : i32
    %c0_i32_1 = arith.constant 0 : i32
    return %c0_i32, %c0_i32_0 : i32, i32
  }
  func.func @transform_14(%arg0: i32) -> (i32, i32) {
    %c0_i32 = arith.constant 0 : i32
    %c0_i32_0 = arith.constant 0 : i32
    %c0_i32_1 = arith.constant 0 : i32
    return %c0_i32, %c0_i32_0 : i32, i32
  }
  func.func @transform_15(%arg0: i32) -> (i32, i32) {
    %c0_i32 = arith.constant 0 : i32
    %c0_i32_0 = arith.constant 0 : i32
    %c0_i32_1 = arith.constant 0 : i32
    return %c0_i32, %c0_i32_0 : i32, i32
  }
  func.func @transform_16(%arg0: i32) -> (i32, i32) {
    %c0_i32 = arith.constant 0 : i32
    %c0_i32_0 = arith.constant 0 : i32
    %c0_i32_1 = arith.constant 0 : i32
    return %c0_i32, %c0_i32_0 : i32, i32
  }
  func.func @transform_17(%arg0: i32) -> (i32, i32) {
    %c0_i32 = arith.constant 0 : i32
    %c0_i32_0 = arith.constant 0 : i32
    %c0_i32_1 = arith.constant 0 : i32
    return %c0_i32, %c0_i32_0 : i32, i32
  }
  func.func @transform_18(%arg0: i32) -> (i32, i32) {
    %c0_i32 = arith.constant 0 : i32
    %c0_i32_0 = arith.constant 0 : i32
    %c0_i32_1 = arith.constant 0 : i32
    return %c0_i32, %c0_i32_0 : i32, i32
  }
  func.func @transform_19(%arg0: i32) -> (i32, i32) {
    %c0_i32 = arith.constant 0 : i32
    %c0_i32_0 = arith.constant 0 : i32
    %c0_i32_1 = arith.constant 0 : i32
    return %c0_i32, %c0_i32_0 : i32, i32
  }
  func.func @transform_20(%arg0: i32) -> (i32, i32) {
    %c0_i32 = arith.constant 0 : i32
    %c0_i32_0 = arith.constant 0 : i32
    %c0_i32_1 = arith.constant 0 : i32
    return %c0_i32, %c0_i32_0 : i32, i32
  }
  func.func @transform_21(%arg0: i32) -> (i32, i32) {
    %c0_i32 = arith.constant 0 : i32
    %c0_i32_0 = arith.constant 0 : i32
    %c0_i32_1 = arith.constant 0 : i32
    return %c0_i32, %c0_i32_0 : i32, i32
  }
  func.func @transform_22(%arg0: i32) -> (i32, i32) {
    %c0_i32 = arith.constant 0 : i32
    %c0_i32_0 = arith.constant 0 : i32
    %c0_i32_1 = arith.constant 0 : i32
    return %c0_i32, %c0_i32_0 : i32, i32
  }
  func.func @transform_23(%arg0: i32) -> (i32, i32) {
    %c0_i32 = arith.constant 0 : i32
    %c0_i32_0 = arith.constant 0 : i32
    %c0_i32_1 = arith.constant 0 : i32
    return %c0_i32, %c0_i32_0 : i32, i32
  }
  func.func @transform_24(%arg0: i32) -> (i32, i32) {
    %c0_i32 = arith.constant 0 : i32
    %c0_i32_0 = arith.constant 0 : i32
    %c0_i32_1 = arith.constant 0 : i32
    return %c0_i32, %c0_i32_0 : i32, i32
  }
  func.func @transform_25(%arg0: i32) -> (i32, i32) {
    %c0_i32 = arith.constant 0 : i32
    %c0_i32_0 = arith.constant 0 : i32
    %c0_i32_1 = arith.constant 0 : i32
    return %c0_i32, %c0_i32_0 : i32, i32
  }
  func.func @transform_26(%arg0: i32) -> (i32, i32) {
    %c0_i32 = arith.constant 0 : i32
    %c0_i32_0 = arith.constant 0 : i32
    %c0_i32_1 = arith.constant 0 : i32
    return %c0_i32, %c0_i32_0 : i32, i32
  }
  func.func @transform_27(%arg0: i32) -> (i32, i32) {
    %c0_i32 = arith.constant 0 : i32
    %c0_i32_0 = arith.constant 0 : i32
    %c0_i32_1 = arith.constant 0 : i32
    return %c0_i32, %c0_i32_0 : i32, i32
  }
  func.func @transform_28(%arg0: i32) -> (i32, i32) {
    %c0_i32 = arith.constant 0 : i32
    %c0_i32_0 = arith.constant 0 : i32
    %c0_i32_1 = arith.constant 0 : i32
    return %c0_i32, %c0_i32_0 : i32, i32
  }
}

</mosaic_0001>

<llo_original>
// kernel: presrecrf_forward.1
$region0: #{presrecrf_forward.1}
  #allocation0 [shape = 'u32[]', space=smem, size = 0x4, offset = 0x4, fixed_abs, tag = 'smem constant byte address 0x4 - core index']
  #allocation1 [shape = 'u32[72,128]{1,0:T(1,128)}', space=vmem, size = 0x9000, scoped, tag = 'internal scratch']
  %s0 = inlined_call_operand.hbm [shape: f32[8,32], index: 0, kind: input, shape index: {}]
  %s1 = inlined_call_operand.hbm [shape: bf16[32,768], index: 1, kind: input, shape index: {}]
  %s2 = inlined_call_operand.hbm [shape: bf16[32,128], index: 2, kind: input, shape index: {}]
  %s3 = inlined_call_operand.hbm [shape: bf16[128,768], index: 3, kind: input, shape index: {}]
  %s4 = inlined_call_operand.hbm [shape: bf16[128,128], index: 4, kind: input, shape index: {}]
  %s5 = inlined_call_operand.hbm [shape: bf16[768,256], index: 5, kind: input, shape index: {}]
  %s6 = inlined_call_operand.hbm [shape: f32[1,256], index: 6, kind: input, shape index: {}]
  %s7 = inlined_call_operand.hbm [shape: bf16[256,128], index: 7, kind: input, shape index: {}]
  %s8 = inlined_call_operand.hbm [shape: f32[1,128], index: 8, kind: input, shape index: {}]
  %s9 = inlined_call_operand.hbm [shape: bf16[768,256], index: 9, kind: input, shape index: {}]
  %s10 = inlined_call_operand.vmem [shape: f32[1,256], index: 10, kind: input, shape index: {}]
  %s11 = inlined_call_operand.hbm [shape: bf16[256,128], index: 11, kind: input, shape index: {}]
  %s12 = inlined_call_operand.hbm [shape: f32[1,128], index: 12, kind: input, shape index: {}]
  %s13 = inlined_call_operand.hbm [shape: bf16[128,256], index: 13, kind: input, shape index: {}]
  %s14 = inlined_call_operand.vmem [shape: f32[1,256], index: 14, kind: input, shape index: {}]
  %s15 = inlined_call_operand.hbm [shape: bf16[256,256], index: 15, kind: input, shape index: {}]
  %s16 = inlined_call_operand.vmem [shape: f32[1,256], index: 16, kind: input, shape index: {}]
  %s17 = inlined_call_operand.hbm [shape: bf16[256,128], index: 17, kind: input, shape index: {}]
  %s18 = inlined_call_operand.vmem [shape: f32[1,128], index: 18, kind: input, shape index: {}]
  %s19 = inlined_call_operand.hbm [shape: bf16[128,256], index: 19, kind: input, shape index: {}]
  %s20 = inlined_call_operand.hbm [shape: f32[1,256], index: 20, kind: input, shape index: {}]
  %s21 = inlined_call_operand.hbm [shape: bf16[256,256], index: 21, kind: input, shape index: {}]
  %s22 = inlined_call_operand.vmem [shape: f32[1,256], index: 22, kind: input, shape index: {}]
  %s23 = inlined_call_operand.hbm [shape: bf16[256,128], index: 23, kind: input, shape index: {}]
  %s24 = inlined_call_operand.hbm [shape: f32[1,128], index: 24, kind: input, shape index: {}]
  %s25 = inlined_call_operand.hbm [shape: bf16[128,128], index: 25, kind: input, shape index: {}]
  %s26 = inlined_call_operand.hbm [shape: f32[1,128], index: 26, kind: input, shape index: {}]
  %s27 = inlined_call_operand.hbm [shape: f32[8,128], index: 27, kind: output, shape index: {0}]
  %s28 = inlined_call_operand.hbm [shape: f32[8,128], index: 28, kind: output, shape index: {1}]
  %29 = xla_tuple %s27, %s28
  %s30 = sld [smem:[#allocation0]]
  $region214: #{presrecrf_forward.1} parent=0
    _
  %s32 = ssub.s32 1, %s30
  %s33 = scalar_select 0, %s32, %s30
  $region1: #{presrecrf_forward.1} parent=0
    #allocation2 [shape = 'u8[4096]{0}', space=vmem, size = 0x1000, scoped, tag = 'input window, operand 0, single buffered']
    #allocation3 [shape = 's32[1]{0}', space=sflag, size = 0x4, scoped, tag = 'scoped memory for presrecrf_forward.1']
    #allocation4 [shape = 's32[1]{0}', space=sflag, size = 0x4, scoped, tag = 'scoped memory for presrecrf_forward.1']
    #allocation5 [shape = 'u8[49152]{0}', space=vmem, size = 0xc000, scoped, tag = 'input window, operand 1, single buffered']
    #allocation6 [shape = 's32[1]{0}', space=sflag, size = 0x4, scoped, tag = 'scoped memory for presrecrf_forward.1']
    #allocation7 [shape = 'u8[8192]{0}', space=vmem, size = 0x2000, scoped, tag = 'input window, operand 2, single buffered']
    #allocation8 [shape = 'u8[196608]{0}', space=vmem, size = 0x30000, scoped, tag = 'input window, operand 3, single buffered']
    #allocation9 [shape = 's32[1]{0}', space=sflag, size = 0x4, scoped, tag = 'scoped memory for presrecrf_forward.1']
    #allocation10 [shape = 'u8[32768]{0}', space=vmem, size = 0x8000, scoped, tag = 'input window, operand 4, single buffered']
    #allocation11 [shape = 'u8[393216]{0}', space=vmem, size = 0x60000, scoped, tag = 'input window, operand 5, single buffered']
    #allocation12 [shape = 's32[1]{0}', space=sflag, size = 0x4, scoped, tag = 'scoped memory for presrecrf_forward.1']
    #allocation13 [shape = 'u8[1024]{0}', space=vmem, size = 0x400, scoped, tag = 'input window, operand 6, single buffered']
    #allocation14 [shape = 'u8[65536]{0}', space=vmem, size = 0x10000, scoped, tag = 'input window, operand 7, single buffered']
    #allocation15 [shape = 's32[1]{0}', space=sflag, size = 0x4, scoped, tag = 'scoped memory for presrecrf_forward.1']
    #allocation16 [shape = 'u8[512]{0}', space=vmem, size = 0x400, scoped, tag = 'input window, operand 8, single buffered']
    #allocation17 [shape = 'u8[393216]{0}', space=vmem, size = 0x60000, scoped, tag = 'input window, operand 9, single buffered']
    #allocation18 [shape = 's32[1]{0}', space=sflag, size = 0x4, scoped, tag = 'scoped memory for presrecrf_forward.1']
    #allocation19 [shape = 'u8[65536]{0}', space=vmem, size = 0x10000, scoped, tag = 'input window, operand 11, single buffered']
    #allocation20 [shape = 'u8[512]{0}', space=vmem, size = 0x400, scoped, tag = 'input window, operand 12, single buffered']
    #allocation21 [shape = 's32[1]{0}', space=sflag, size = 0x4, scoped, tag = 'scoped memory for presrecrf_forward.1']
    #allocation22 [shape = 'u8[65536]{0}', space=vmem, size = 0x10000, scoped, tag = 'input window, operand 13, single buffered']
    #allocation23 [shape = 'u8[131072]{0}', space=vmem, size = 0x20000, scoped, tag = 'input window, operand 15, single buffered']
    #allocation24 [shape = 's32[1]{0}', space=sflag, size = 0x4, scoped, tag = 'scoped memory for presrecrf_forward.1']
    #allocation25 [shape = 'u8[65536]{0}', space=vmem, size = 0x10000, scoped, tag = 'input window, operand 17, single buffered']
    #allocation26 [shape = 'u8[65536]{0}', space=vmem, size = 0x10000, scoped, tag = 'input window, operand 19, single buffered']
    #allocation27 [shape = 's32[1]{0}', space=sflag, size = 0x4, scoped, tag = 'scoped memory for presrecrf_forward.1']
    #allocation28 [shape = 'u8[1024]{0}', space=vmem, size = 0x400, scoped, tag = 'input window, operand 20, single buffered']
    #allocation29 [shape = 'u8[131072]{0}', space=vmem, size = 0x20000, scoped, tag = 'input window, operand 21, single buffered']
    #allocation30 [shape = 's32[1]{0}', space=sflag, size = 0x4, scoped, tag = 'scoped memory for presrecrf_forward.1']
    #allocation31 [shape = 'u8[65536]{0}', space=vmem, size = 0x10000, scoped, tag = 'input window, operand 23, single buffered']
    #allocation32 [shape = 'u8[512]{0}', space=vmem, size = 0x400, scoped, tag = 'input window, operand 24, single buffered']
    #allocation33 [shape = 's32[1]{0}', space=sflag, size = 0x4, scoped, tag = 'scoped memory for presrecrf_forward.1']
    #allocation34 [shape = 'u8[32768]{0}', space=vmem, size = 0x8000, scoped, tag = 'input window, operand 25, single buffered']
    #allocation35 [shape = 'u8[512]{0}', space=vmem, size = 0x400, scoped, tag = 'input window, operand 26, single buffered']
    #allocation36 [shape = 's32[1]{0}', space=sflag, size = 0x4, scoped, tag = 'scoped memory for presrecrf_forward.1']
    #allocation37 [shape = 'u8[4096]{0}', space=vmem, size = 0x1000, scoped, tag = 'output window, operand 0, single buffered']
    #allocation38 [shape = 'u8[4096]{0}', space=vmem, size = 0x1000, scoped, tag = 'output window, operand 1, single buffered']
    #allocation39 [shape = 's32[1]{0}', space=sflag, size = 0x4, scoped, tag = 'scoped memory for presrecrf_forward.1']
    %34 = vsyncpa [#allocation3], 0
    %35 = vsyncpa [#allocation6], 0
    %36 = vsyncpa [#allocation9], 0
    %37 = vsyncpa [#allocation12], 0
    %38 = vsyncpa [#allocation15], 0
    %39 = vsyncpa [#allocation18], 0
    %40 = vsyncpa [#allocation21], 0
    %41 = vsyncpa [#allocation24], 0
    %42 = vsyncpa [#allocation27], 0
    %43 = vsyncpa [#allocation30], 0
    %44 = vsyncpa [#allocation33], 0
    %45 = vsyncpa [#allocation36], 0
    %46 = vsyncpa [#allocation4], 0
    %47 = vsyncpa [#allocation39], 0
    // Predicated region
    $region2: #{presrecrf_forward.1} parent=1 // pred_check
      _
    $region3: #{presrecrf_forward.1} parent=1 // pred_check_branch
      %49 = sbr.rel (0) target = $region5
    $region4: #{presrecrf_forward.1} parent=1 // pred_region
      %51 = vsyncadd [#allocation3], 0
      %s53 = sshll.u32 %s0, 4
      %s54 = int_to_ptr.hbm [resolvable:$true] %s53
      %s55 = sshll.u32 [#allocation2], 4
      %s56 = int_to_ptr.vmem [resolvable:$true] %s55
      %58 = dma.hbm_to_vmem [thread:$0]  %s54, 128, %s56, [#allocation3]
    $region5: #{presrecrf_forward.1} parent=1 // pred_fallthru
      _
    // Predicated region
    $region6: #{presrecrf_forward.1} parent=1 // pred_check
      _
    $region7: #{presrecrf_forward.1} parent=1 // pred_check_branch
      %60 = sbr.rel (0) target = $region9
    $region8: #{presrecrf_forward.1} parent=1 // pred_region
      %62 = vsyncadd [#allocation6], 0
      %s63 = sshll.u32 %s1, 4
      %s64 = int_to_ptr.hbm [resolvable:$true] %s63
      %s65 = sshll.u32 [#allocation5], 4
      %s66 = int_to_ptr.vmem [resolvable:$true] %s65
      %71 = dma.hbm_to_vmem [thread:$0]  %s64, 1536, %s66, [#allocation6], 384, 384, 24
    $region9: #{presrecrf_forward.1} parent=1 // pred_fallthru
      _
    // Predicated region
    $region10: #{presrecrf_forward.1} parent=1 // pred_check
      _
    $region11: #{presrecrf_forward.1} parent=1 // pred_check_branch
      %73 = sbr.rel (0) target = $region13
    $region12: #{presrecrf_forward.1} parent=1 // pred_region
      %75 = vsyncadd [#allocation6], 0
      %s76 = sshll.u32 %s2, 4
      %s77 = int_to_ptr.hbm [resolvable:$true] %s76
      %s78 = sshll.u32 [#allocation7], 4
      %s79 = int_to_ptr.vmem [resolvable:$true] %s78
      %84 = dma.hbm_to_vmem [thread:$0]  %s77, 256, %s79, [#allocation6], 64, 64, 4
    $region13: #{presrecrf_forward.1} parent=1 // pred_fallthru
      _
    // Predicated region
    $region14: #{presrecrf_forward.1} parent=1 // pred_check
      _
    $region15: #{presrecrf_forward.1} parent=1 // pred_check_branch
      %86 = sbr.rel (0) target = $region17
    $region16: #{presrecrf_forward.1} parent=1 // pred_region
      %88 = vsyncadd [#allocation9], 0
      %s89 = sshll.u32 %s3, 4
      %s90 = int_to_ptr.hbm [resolvable:$true] %s89
      %s91 = sshll.u32 [#allocation8], 4
      %s92 = int_to_ptr.vmem [resolvable:$true] %s91
      %97 = dma.hbm_to_vmem [thread:$0]  %s90, 6144, %s92, [#allocation9], 384, 384, 24
    $region17: #{presrecrf_forward.1} parent=1 // pred_fallthru
      _
    // Predicated region
    $region18: #{presrecrf_forward.1} parent=1 // pred_check
      _
    $region19: #{presrecrf_forward.1} parent=1 // pred_check_branch
      %99 = sbr.rel (0) target = $region21
    $region20: #{presrecrf_forward.1} parent=1 // pred_region
      %101 = vsyncadd [#allocation9], 0
      %s102 = sshll.u32 %s4, 4
      %s103 = int_to_ptr.hbm [resolvable:$true] %s102
      %s104 = sshll.u32 [#allocation10], 4
      %s105 = int_to_ptr.vmem [resolvable:$true] %s104
      %110 = dma.hbm_to_vmem [thread:$0]  %s103, 1024, %s105, [#allocation9], 64, 64, 4
    $region21: #{presrecrf_forward.1} parent=1 // pred_fallthru
      _
    // Predicated region
    $region22: #{presrecrf_forward.1} parent=1 // pred_check
      _
    $region23: #{presrecrf_forward.1} parent=1 // pred_check_branch
      %112 = sbr.rel (0) target = $region25
    $region24: #{presrecrf_forward.1} parent=1 // pred_region
      %114 = vsyncadd [#allocation12], 0
      %s115 = sshll.u32 %s5, 4
      %s116 = int_to_ptr.hbm [resolvable:$true] %s115
      %s117 = sshll.u32 [#allocation11], 4
      %s118 = int_to_ptr.vmem [resolvable:$true] %s117
      %123 = dma.hbm_to_vmem [thread:$0]  %s116, 12288, %s118, [#allocation12], 128, 128, 8
    $region25: #{presrecrf_forward.1} parent=1 // pred_fallthru
      _
    // Predicated region
    $region26: #{presrecrf_forward.1} parent=1 // pred_check
      _
    $region27: #{presrecrf_forward.1} parent=1 // pred_check_branch
      %125 = sbr.rel (0) target = $region29
    $region28: #{presrecrf_forward.1} parent=1 // pred_region
      %127 = vsyncadd [#allocation12], 0
      %s129 = sshll.u32 %s6, 4
      %s130 = int_to_ptr.hbm [resolvable:$true] %s129
      %s131 = sshll.u32 [#allocation13], 4
      %s132 = int_to_ptr.vmem [resolvable:$true] %s131
      %134 = dma.hbm_to_vmem [thread:$0]  %s130, 32, %s132, [#allocation12]
    $region29: #{presrecrf_forward.1} parent=1 // pred_fallthru
      _
    // Predicated region
    $region30: #{presrecrf_forward.1} parent=1 // pred_check
      _
    $region31: #{presrecrf_forward.1} parent=1 // pred_check_branch
      %136 = sbr.rel (0) target = $region33
    $region32: #{presrecrf_forward.1} parent=1 // pred_region
      %138 = vsyncadd [#allocation15], 0
      %s139 = sshll.u32 %s7, 4
      %s140 = int_to_ptr.hbm [resolvable:$true] %s139
      %s141 = sshll.u32 [#allocation14], 4
      %s142 = int_to_ptr.vmem [resolvable:$true] %s141
      %147 = dma.hbm_to_vmem [thread:$0]  %s140, 2048, %s142, [#allocation15], 64, 64, 4
    $region33: #{presrecrf_forward.1} parent=1 // pred_fallthru
      _
    // Predicated region
    $region34: #{presrecrf_forward.1} parent=1 // pred_check
      _
    $region35: #{presrecrf_forward.1} parent=1 // pred_check_branch
      %149 = sbr.rel (0) target = $region37
    $region36: #{presrecrf_forward.1} parent=1 // pred_region
      %151 = vsyncadd [#allocation15], 0
      %s153 = sshll.u32 %s8, 4
      %s154 = int_to_ptr.hbm [resolvable:$true] %s153
      %s155 = sshll.u32 [#allocation16], 4
      %s156 = int_to_ptr.vmem [resolvable:$true] %s155
      %158 = dma.hbm_to_vmem [thread:$0]  %s154, 16, %s156, [#allocation15]
    $region37: #{presrecrf_forward.1} parent=1 // pred_fallthru
      _
    // Predicated region
    $region38: #{presrecrf_forward.1} parent=1 // pred_check
      _
    $region39: #{presrecrf_forward.1} parent=1 // pred_check_branch
      %160 = sbr.rel (0) target = $region41
    $region40: #{presrecrf_forward.1} parent=1 // pred_region
      %162 = vsyncadd [#allocation18], 0
      %s163 = sshll.u32 %s9, 4
      %s164 = int_to_ptr.hbm [resolvable:$true] %s163
      %s165 = sshll.u32 [#allocation17], 4
      %s166 = int_to_ptr.vmem [resolvable:$true] %s165
      %171 = dma.hbm_to_vmem [thread:$0]  %s164, 12288, %s166, [#allocation18], 128, 128, 8
    $region41: #{presrecrf_forward.1} parent=1 // pred_fallthru
      _
    // Predicated region
    $region42: #{presrecrf_forward.1} parent=1 // pred_check
      _
    $region43: #{presrecrf_forward.1} parent=1 // pred_check_branch
      %173 = sbr.rel (0) target = $region45
    $region44: #{presrecrf_forward.1} parent=1 // pred_region
      _
    $region45: #{presrecrf_forward.1} parent=1 // pred_fallthru
      _
    // Predicated region
    $region46: #{presrecrf_forward.1} parent=1 // pred_check
      _
    $region47: #{presrecrf_forward.1} parent=1 // pred_check_branch
      %175 = sbr.rel (0) target = $region49
    $region48: #{presrecrf_forward.1} parent=1 // pred_region
      %177 = vsyncadd [#allocation18], 0
      %s178 = sshll.u32 %s11, 4
      %s179 = int_to_ptr.hbm [resolvable:$true] %s178
      %s180 = sshll.u32 [#allocation19], 4
      %s181 = int_to_ptr.vmem [resolvable:$true] %s180
      %186 = dma.hbm_to_vmem [thread:$0]  %s179, 2048, %s181, [#allocation18], 64, 64, 4
    $region49: #{presrecrf_forward.1} parent=1 // pred_fallthru
      _
    // Predicated region
    $region50: #{presrecrf_forward.1} parent=1 // pred_check
      _
    $region51: #{presrecrf_forward.1} parent=1 // pred_check_branch
      %188 = sbr.rel (0) target = $region53
    $region52: #{presrecrf_forward.1} parent=1 // pred_region
      %190 = vsyncadd [#allocation21], 0
      %s192 = sshll.u32 %s12, 4
      %s193 = int_to_ptr.hbm [resolvable:$true] %s192
      %s194 = sshll.u32 [#allocation20], 4
      %s195 = int_to_ptr.vmem [resolvable:$true] %s194
      %197 = dma.hbm_to_vmem [thread:$0]  %s193, 16, %s195, [#allocation21]
    $region53: #{presrecrf_forward.1} parent=1 // pred_fallthru
      _
    // Predicated region
    $region54: #{presrecrf_forward.1} parent=1 // pred_check
      _
    $region55: #{presrecrf_forward.1} parent=1 // pred_check_branch
      %199 = sbr.rel (0) target = $region57
    $region56: #{presrecrf_forward.1} parent=1 // pred_region
      %201 = vsyncadd [#allocation21], 0
      %s202 = sshll.u32 %s13, 4
      %s203 = int_to_ptr.hbm [resolvable:$true] %s202
      %s204 = sshll.u32 [#allocation22], 4
      %s205 = int_to_ptr.vmem [resolvable:$true] %s204
      %210 = dma.hbm_to_vmem [thread:$0]  %s203, 2048, %s205, [#allocation21], 128, 128, 8
    $region57: #{presrecrf_forward.1} parent=1 // pred_fallthru
      _
    // Predicated region
    $region58: #{presrecrf_forward.1} parent=1 // pred_check
      _
    $region59: #{presrecrf_forward.1} parent=1 // pred_check_branch
      %212 = sbr.rel (0) target = $region61
    $region60: #{presrecrf_forward.1} parent=1 // pred_region
      _
    $region61: #{presrecrf_forward.1} parent=1 // pred_fallthru
      _
    // Predicated region
    $region62: #{presrecrf_forward.1} parent=1 // pred_check
      _
    $region63: #{presrecrf_forward.1} parent=1 // pred_check_branch
      %214 = sbr.rel (0) target = $region65
    $region64: #{presrecrf_forward.1} parent=1 // pred_region
      %216 = vsyncadd [#allocation24], 0
      %s217 = sshll.u32 %s15, 4
      %s218 = int_to_ptr.hbm [resolvable:$true] %s217
      %s219 = sshll.u32 [#allocation23], 4
      %s220 = int_to_ptr.vmem [resolvable:$true] %s219
      %225 = dma.hbm_to_vmem [thread:$0]  %s218, 4096, %s220, [#allocation24], 128, 128, 8
    $region65: #{presrecrf_forward.1} parent=1 // pred_fallthru
      _
    // Predicated region
    $region66: #{presrecrf_forward.1} parent=1 // pred_check
      _
    $region67: #{presrecrf_forward.1} parent=1 // pred_check_branch
      %227 = sbr.rel (0) target = $region69
    $region68: #{presrecrf_forward.1} parent=1 // pred_region
      _
    $region69: #{presrecrf_forward.1} parent=1 // pred_fallthru
      _
    // Predicated region
    $region70: #{presrecrf_forward.1} parent=1 // pred_check
      _
    $region71: #{presrecrf_forward.1} parent=1 // pred_check_branch
      %229 = sbr.rel (0) target = $region73
    $region72: #{presrecrf_forward.1} parent=1 // pred_region
      %231 = vsyncadd [#allocation24], 0
      %s232 = sshll.u32 %s17, 4
      %s233 = int_to_ptr.hbm [resolvable:$true] %s232
      %s234 = sshll.u32 [#allocation25], 4
      %s235 = int_to_ptr.vmem [resolvable:$true] %s234
      %240 = dma.hbm_to_vmem [thread:$0]  %s233, 2048, %s235, [#allocation24], 64, 64, 4
    $region73: #{presrecrf_forward.1} parent=1 // pred_fallthru
      _
    // Predicated region
    $region74: #{presrecrf_forward.1} parent=1 // pred_check
      _
    $region75: #{presrecrf_forward.1} parent=1 // pred_check_branch
      %242 = sbr.rel (0) target = $region77
    $region76: #{presrecrf_forward.1} parent=1 // pred_region
      _
    $region77: #{presrecrf_forward.1} parent=1 // pred_fallthru
      _
    // Predicated region
    $region78: #{presrecrf_forward.1} parent=1 // pred_check
      _
    $region79: #{presrecrf_forward.1} parent=1 // pred_check_branch
      %244 = sbr.rel (0) target = $region81
    $region80: #{presrecrf_forward.1} parent=1 // pred_region
      %246 = vsyncadd [#allocation27], 0
      %s247 = sshll.u32 %s19, 4
      %s248 = int_to_ptr.hbm [resolvable:$true] %s247
      %s249 = sshll.u32 [#allocation26], 4
      %s250 = int_to_ptr.vmem [resolvable:$true] %s249
      %255 = dma.hbm_to_vmem [thread:$0]  %s248, 2048, %s250, [#allocation27], 128, 128, 8
    $region81: #{presrecrf_forward.1} parent=1 // pred_fallthru
      _
    // Predicated region
    $region82: #{presrecrf_forward.1} parent=1 // pred_check
      _
    $region83: #{presrecrf_forward.1} parent=1 // pred_check_branch
      %257 = sbr.rel (0) target = $region85
    $region84: #{presrecrf_forward.1} parent=1 // pred_region
      %259 = vsyncadd [#allocation27], 0
      %s261 = sshll.u32 %s20, 4
      %s262 = int_to_ptr.hbm [resolvable:$true] %s261
      %s263 = sshll.u32 [#allocation28], 4
      %s264 = int_to_ptr.vmem [resolvable:$true] %s263
      %266 = dma.hbm_to_vmem [thread:$0]  %s262, 32, %s264, [#allocation27]
    $region85: #{presrecrf_forward.1} parent=1 // pred_fallthru
      _
    // Predicated region
    $region86: #{presrecrf_forward.1} parent=1 // pred_check
      _
    $region87: #{presrecrf_forward.1} parent=1 // pred_check_branch
      %268 = sbr.rel (0) target = $region89
    $region88: #{presrecrf_forward.1} parent=1 // pred_region
      %270 = vsyncadd [#allocation30], 0
      %s271 = sshll.u32 %s21, 4
      %s272 = int_to_ptr.hbm [resolvable:$true] %s271
      %s273 = sshll.u32 [#allocation29], 4
      %s274 = int_to_ptr.vmem [resolvable:$true] %s273
      %279 = dma.hbm_to_vmem [thread:$0]  %s272, 4096, %s274, [#allocation30], 128, 128, 8
    $region89: #{presrecrf_forward.1} parent=1 // pred_fallthru
      _
    // Predicated region
    $region90: #{presrecrf_forward.1} parent=1 // pred_check
      _
    $region91: #{presrecrf_forward.1} parent=1 // pred_check_branch
      %281 = sbr.rel (0) target = $region93
    $region92: #{presrecrf_forward.1} parent=1 // pred_region
      _
    $region93: #{presrecrf_forward.1} parent=1 // pred_fallthru
      _
    // Predicated region
    $region94: #{presrecrf_forward.1} parent=1 // pred_check
      _
    $region95: #{presrecrf_forward.1} parent=1 // pred_check_branch
      %283 = sbr.rel (0) target = $region97
    $region96: #{presrecrf_forward.1} parent=1 // pred_region
      %285 = vsyncadd [#allocation30], 0
      %s286 = sshll.u32 %s23, 4
      %s287 = int_to_ptr.hbm [resolvable:$true] %s286
      %s288 = sshll.u32 [#allocation31], 4
      %s289 = int_to_ptr.vmem [resolvable:$true] %s288
      %294 = dma.hbm_to_vmem [thread:$0]  %s287, 2048, %s289, [#allocation30], 64, 64, 4
    $region97: #{presrecrf_forward.1} parent=1 // pred_fallthru
      _
    // Predicated region
    $region98: #{presrecrf_forward.1} parent=1 // pred_check
      _
    $region99: #{presrecrf_forward.1} parent=1 // pred_check_branch
      %296 = sbr.rel (0) target = $region101
    $region100: #{presrecrf_forward.1} parent=1 // pred_region
      %298 = vsyncadd [#allocation33], 0
      %s300 = sshll.u32 %s24, 4
      %s301 = int_to_ptr.hbm [resolvable:$true] %s300
      %s302 = sshll.u32 [#allocation32], 4
      %s303 = int_to_ptr.vmem [resolvable:$true] %s302
      %305 = dma.hbm_to_vmem [thread:$0]  %s301, 16, %s303, [#allocation33]
    $region101: #{presrecrf_forward.1} parent=1 // pred_fallthru
      _
    // Predicated region
    $region102: #{presrecrf_forward.1} parent=1 // pred_check
      _
    $region103: #{presrecrf_forward.1} parent=1 // pred_check_branch
      %307 = sbr.rel (0) target = $region105
    $region104: #{presrecrf_forward.1} parent=1 // pred_region
      %309 = vsyncadd [#allocation33], 0
      %s310 = sshll.u32 %s25, 4
      %s311 = int_to_ptr.hbm [resolvable:$true] %s310
      %s312 = sshll.u32 [#allocation34], 4
      %s313 = int_to_ptr.vmem [resolvable:$true] %s312
      %318 = dma.hbm_to_vmem [thread:$0]  %s311, 1024, %s313, [#allocation33], 64, 64, 4
    $region105: #{presrecrf_forward.1} parent=1 // pred_fallthru
      _
    // Predicated region
    $region106: #{presrecrf_forward.1} parent=1 // pred_check
      _
    $region107: #{presrecrf_forward.1} parent=1 // pred_check_branch
      %320 = sbr.rel (0) target = $region109
    $region108: #{presrecrf_forward.1} parent=1 // pred_region
      %322 = vsyncadd [#allocation36], 0
      %s324 = sshll.u32 %s26, 4
      %s325 = int_to_ptr.hbm [resolvable:$true] %s324
      %s326 = sshll.u32 [#allocation35], 4
      %s327 = int_to_ptr.vmem [resolvable:$true] %s326
      %329 = dma.hbm_to_vmem [thread:$0]  %s325, 16, %s327, [#allocation36]
    $region109: #{presrecrf_forward.1} parent=1 // pred_fallthru
      _
    // Predicated region
    $region110: #{presrecrf_forward.1} parent=1 // pred_check
      _
    $region111: #{presrecrf_forward.1} parent=1 // pred_check_branch
      %331 = sbr.rel (0) target = $region113
    $region112: #{presrecrf_forward.1} parent=1 // pred_region
      %333 = dma.done [#allocation3], 128
    $region113: #{presrecrf_forward.1} parent=1 // pred_fallthru
      _
    // Predicated region
    $region114: #{presrecrf_forward.1} parent=1 // pred_check
      _
    $region115: #{presrecrf_forward.1} parent=1 // pred_check_branch
      %335 = sbr.rel (0) target = $region117
    $region116: #{presrecrf_forward.1} parent=1 // pred_region
      %337 = dma.done [#allocation6], 1536
    $region117: #{presrecrf_forward.1} parent=1 // pred_fallthru
      _
    // Predicated region
    $region118: #{presrecrf_forward.1} parent=1 // pred_check
      _
    $region119: #{presrecrf_forward.1} parent=1 // pred_check_branch
      %339 = sbr.rel (0) target = $region121
    $region120: #{presrecrf_forward.1} parent=1 // pred_region
      %341 = dma.done [#allocation6], 256
    $region121: #{presrecrf_forward.1} parent=1 // pred_fallthru
      _
    // Predicated region
    $region122: #{presrecrf_forward.1} parent=1 // pred_check
      _
    $region123: #{presrecrf_forward.1} parent=1 // pred_check_branch
      %343 = sbr.rel (0) target = $region125
    $region124: #{presrecrf_forward.1} parent=1 // pred_region
      %345 = dma.done [#allocation9], 6144
    $region125: #{presrecrf_forward.1} parent=1 // pred_fallthru
      _
    // Predicated region
    $region126: #{presrecrf_forward.1} parent=1 // pred_check
      _
    $region127: #{presrecrf_forward.1} parent=1 // pred_check_branch
      %347 = sbr.rel (0) target = $region129
    $region128: #{presrecrf_forward.1} parent=1 // pred_region
      %349 = dma.done [#allocation9], 1024
    $region129: #{presrecrf_forward.1} parent=1 // pred_fallthru
      _
    // Predicated region
    $region130: #{presrecrf_forward.1} parent=1 // pred_check
      _
    $region131: #{presrecrf_forward.1} parent=1 // pred_check_branch
      %351 = sbr.rel (0) target = $region133
    $region132: #{presrecrf_forward.1} parent=1 // pred_region
      %353 = dma.done [#allocation12], 12288
    $region133: #{presrecrf_forward.1} parent=1 // pred_fallthru
      _
    // Predicated region
    $region134: #{presrecrf_forward.1} parent=1 // pred_check
      _
    $region135: #{presrecrf_forward.1} parent=1 // pred_check_branch
      %355 = sbr.rel (0) target = $region137
    $region136: #{presrecrf_forward.1} parent=1 // pred_region
      %357 = dma.done [#allocation12], 32
    $region137: #{presrecrf_forward.1} parent=1 // pred_fallthru
      _
    // Predicated region
    $region138: #{presrecrf_forward.1} parent=1 // pred_check
      _
    $region139: #{presrecrf_forward.1} parent=1 // pred_check_branch
      %359 = sbr.rel (0) target = $region141
    $region140: #{presrecrf_forward.1} parent=1 // pred_region
      %361 = dma.done [#allocation15], 2048
    $region141: #{presrecrf_forward.1} parent=1 // pred_fallthru
      _
    // Predicated region
    $region142: #{presrecrf_forward.1} parent=1 // pred_check
      _
    $region143: #{presrecrf_forward.1} parent=1 // pred_check_branch
      %363 = sbr.rel (0) target = $region145
    $region144: #{presrecrf_forward.1} parent=1 // pred_region
      %365 = dma.done [#allocation15], 16
    $region145: #{presrecrf_forward.1} parent=1 // pred_fallthru
      _
    // Predicated region
    $region146: #{presrecrf_forward.1} parent=1 // pred_check
      _
    $region147: #{presrecrf_forward.1} parent=1 // pred_check_branch
      %367 = sbr.rel (0) target = $region149
    $region148: #{presrecrf_forward.1} parent=1 // pred_region
      %369 = dma.done [#allocation18], 12288
    $region149: #{presrecrf_forward.1} parent=1 // pred_fallthru
      _
    // Predicated region
    $region150: #{presrecrf_forward.1} parent=1 // pred_check
      _
    $region151: #{presrecrf_forward.1} parent=1 // pred_check_branch
      %371 = sbr.rel (0) target = $region153
    $region152: #{presrecrf_forward.1} parent=1 // pred_region
      %373 = dma.done [#allocation18], 2048
    $region153: #{presrecrf_forward.1} parent=1 // pred_fallthru
      _
    // Predicated region
    $region154: #{presrecrf_forward.1} parent=1 // pred_check
      _
    $region155: #{presrecrf_forward.1} parent=1 // pred_check_branch
      %375 = sbr.rel (0) target = $region157
    $region156: #{presrecrf_forward.1} parent=1 // pred_region
      %377 = dma.done [#allocation21], 16
    $region157: #{presrecrf_forward.1} parent=1 // pred_fallthru
      _
    // Predicated region
    $region158: #{presrecrf_forward.1} parent=1 // pred_check
      _
    $region159: #{presrecrf_forward.1} parent=1 // pred_check_branch
      %379 = sbr.rel (0) target = $region161
    $region160: #{presrecrf_forward.1} parent=1 // pred_region
      %381 = dma.done [#allocation21], 2048
    $region161: #{presrecrf_forward.1} parent=1 // pred_fallthru
      _
    // Predicated region
    $region162: #{presrecrf_forward.1} parent=1 // pred_check
      _
    $region163: #{presrecrf_forward.1} parent=1 // pred_check_branch
      %383 = sbr.rel (0) target = $region165
    $region164: #{presrecrf_forward.1} parent=1 // pred_region
      %385 = dma.done [#allocation24], 4096
    $region165: #{presrecrf_forward.1} parent=1 // pred_fallthru
      _
    // Predicated region
    $region166: #{presrecrf_forward.1} parent=1 // pred_check
      _
    $region167: #{presrecrf_forward.1} parent=1 // pred_check_branch
      %387 = sbr.rel (0) target = $region169
    $region168: #{presrecrf_forward.1} parent=1 // pred_region
      %389 = dma.done [#allocation24], 2048
    $region169: #{presrecrf_forward.1} parent=1 // pred_fallthru
      _
    // Predicated region
    $region170: #{presrecrf_forward.1} parent=1 // pred_check
      _
    $region171: #{presrecrf_forward.1} parent=1 // pred_check_branch
      %391 = sbr.rel (0) target = $region173
    $region172: #{presrecrf_forward.1} parent=1 // pred_region
      %393 = dma.done [#allocation27], 2048
    $region173: #{presrecrf_forward.1} parent=1 // pred_fallthru
      _
    // Predicated region
    $region174: #{presrecrf_forward.1} parent=1 // pred_check
      _
    $region175: #{presrecrf_forward.1} parent=1 // pred_check_branch
      %395 = sbr.rel (0) target = $region177
    $region176: #{presrecrf_forward.1} parent=1 // pred_region
      %397 = dma.done [#allocation27], 32
    $region177: #{presrecrf_forward.1} parent=1 // pred_fallthru
      _
    // Predicated region
    $region178: #{presrecrf_forward.1} parent=1 // pred_check
      _
    $region179: #{presrecrf_forward.1} parent=1 // pred_check_branch
      %399 = sbr.rel (0) target = $region181
    $region180: #{presrecrf_forward.1} parent=1 // pred_region
      %401 = dma.done [#allocation30], 4096
    $region181: #{presrecrf_forward.1} parent=1 // pred_fallthru
      _
    // Predicated region
    $region182: #{presrecrf_forward.1} parent=1 // pred_check
      _
    $region183: #{presrecrf_forward.1} parent=1 // pred_check_branch
      %403 = sbr.rel (0) target = $region185
    $region184: #{presrecrf_forward.1} parent=1 // pred_region
      %405 = dma.done [#allocation30], 2048
    $region185: #{presrecrf_forward.1} parent=1 // pred_fallthru
      _
    // Predicated region
    $region186: #{presrecrf_forward.1} parent=1 // pred_check
      _
    $region187: #{presrecrf_forward.1} parent=1 // pred_check_branch
      %407 = sbr.rel (0) target = $region189
    $region188: #{presrecrf_forward.1} parent=1 // pred_region
      %409 = dma.done [#allocation33], 16
    $region189: #{presrecrf_forward.1} parent=1 // pred_fallthru
      _
    // Predicated region
    $region190: #{presrecrf_forward.1} parent=1 // pred_check
      _
    $region191: #{presrecrf_forward.1} parent=1 // pred_check_branch
      %411 = sbr.rel (0) target = $region193
    $region192: #{presrecrf_forward.1} parent=1 // pred_region
      %413 = dma.done [#allocation33], 1024
    $region193: #{presrecrf_forward.1} parent=1 // pred_fallthru
      _
    // Predicated region
    $region194: #{presrecrf_forward.1} parent=1 // pred_check
      _
    $region195: #{presrecrf_forward.1} parent=1 // pred_check_branch
      %415 = sbr.rel (0) target = $region197
    $region196: #{presrecrf_forward.1} parent=1 // pred_region
      %417 = dma.done [#allocation36], 16
    $region197: #{presrecrf_forward.1} parent=1 // pred_fallthru
      _
    %v419 = vld [vmem:[#allocation5] sm:$0xff]
    %v420 = vld [vmem:[#allocation5 + $0x8] sm:$0xff]
    %v421 = vld [vmem:[#allocation5 + $0x10] sm:$0xff]
    %v422 = vld [vmem:[#allocation5 + $0x18] sm:$0xff]
    %v423 = vld [vmem:[#allocation5 + $0x20] sm:$0xff]
    %v424 = vld [vmem:[#allocation5 + $0x28] sm:$0xff]
    %v425 = vld [vmem:[#allocation5 + $0x30] sm:$0xff]
    %v426 = vld [vmem:[#allocation5 + $0x38] sm:$0xff]
    %v427 = vld [vmem:[#allocation5 + $0x40] sm:$0xff]
    %v428 = vld [vmem:[#allocation5 + $0x48] sm:$0xff]
    %v429 = vld [vmem:[#allocation5 + $0x50] sm:$0xff]
    %v430 = vld [vmem:[#allocation5 + $0x58] sm:$0xff]
    %v431 = vld [vmem:[#allocation11] sm:$0xff]
    %v432 = vld [vmem:[#allocation11 + $0x8] sm:$0xff]
    %v433 = vld [vmem:[#allocation11 + $0x10] sm:$0xff]
    %v434 = vld [vmem:[#allocation11 + $0x18] sm:$0xff]
    %v435 = vld [vmem:[#allocation11 + $0x20] sm:$0xff]
    %v436 = vld [vmem:[#allocation11 + $0x28] sm:$0xff]
    %v437 = vld [vmem:[#allocation11 + $0x30] sm:$0xff]
    %v438 = vld [vmem:[#allocation11 + $0x38] sm:$0xff]
    %v439 = vld [vmem:[#allocation11 + $0x40] sm:$0xff]
    %v440 = vld [vmem:[#allocation11 + $0x48] sm:$0xff]
    %v441 = vld [vmem:[#allocation11 + $0x50] sm:$0xff]
    %v442 = vld [vmem:[#allocation11 + $0x58] sm:$0xff]
    %v443 = vld [vmem:[#allocation11 + $0x60] sm:$0xff]
    %v444 = vld [vmem:[#allocation11 + $0x68] sm:$0xff]
    %v445 = vld [vmem:[#allocation11 + $0x70] sm:$0xff]
    %v446 = vld [vmem:[#allocation11 + $0x78] sm:$0xff]
    %v447 = vld [vmem:[#allocation11 + $0x80] sm:$0xff]
    %v448 = vld [vmem:[#allocation11 + $0x88] sm:$0xff]
    %v449 = vld [vmem:[#allocation11 + $0x90] sm:$0xff]
    %v450 = vld [vmem:[#allocation11 + $0x98] sm:$0xff]
    %v451 = vld [vmem:[#allocation11 + $0xa0] sm:$0xff]
    %v452 = vld [vmem:[#allocation11 + $0xa8] sm:$0xff]
    %v453 = vld [vmem:[#allocation11 + $0xb0] sm:$0xff]
    %v454 = vld [vmem:[#allocation11 + $0xb8] sm:$0xff]
    %v455 = vld [vmem:[#allocation11 + $0xc0] sm:$0xff]
    %v456 = vld [vmem:[#allocation11 + $0xc8] sm:$0xff]
    %v457 = vld [vmem:[#allocation11 + $0xd0] sm:$0xff]
    %v458 = vld [vmem:[#allocation11 + $0xd8] sm:$0xff]
    %v459 = vld [vmem:[#allocation11 + $0xe0] sm:$0xff]
    %v460 = vld [vmem:[#allocation11 + $0xe8] sm:$0xff]
    %v461 = vld [vmem:[#allocation11 + $0xf0] sm:$0xff]
    %v462 = vld [vmem:[#allocation11 + $0xf8] sm:$0xff]
    %v463 = vld [vmem:[#allocation11 + $0x100] sm:$0xff]
    %v464 = vld [vmem:[#allocation11 + $0x108] sm:$0xff]
    %v465 = vld [vmem:[#allocation11 + $0x110] sm:$0xff]
    %v466 = vld [vmem:[#allocation11 + $0x118] sm:$0xff]
    %v467 = vld [vmem:[#allocation11 + $0x120] sm:$0xff]
    %v468 = vld [vmem:[#allocation11 + $0x128] sm:$0xff]
    %v469 = vld [vmem:[#allocation11 + $0x130] sm:$0xff]
    %v470 = vld [vmem:[#allocation11 + $0x138] sm:$0xff]
    %v471 = vld [vmem:[#allocation11 + $0x140] sm:$0xff]
    %v472 = vld [vmem:[#allocation11 + $0x148] sm:$0xff]
    %v473 = vld [vmem:[#allocation11 + $0x150] sm:$0xff]
    %v474 = vld [vmem:[#allocation11 + $0x158] sm:$0xff]
    %v475 = vld [vmem:[#allocation11 + $0x160] sm:$0xff]
    %v476 = vld [vmem:[#allocation11 + $0x168] sm:$0xff]
    %v477 = vld [vmem:[#allocation11 + $0x170] sm:$0xff]
    %v478 = vld [vmem:[#allocation11 + $0x178] sm:$0xff]
    %v479 = vld [vmem:[#allocation11 + $0x180] sm:$0xff]
    %v480 = vld [vmem:[#allocation11 + $0x188] sm:$0xff]
    %v481 = vld [vmem:[#allocation11 + $0x190] sm:$0xff]
    %v482 = vld [vmem:[#allocation11 + $0x198] sm:$0xff]
    %v483 = vld [vmem:[#allocation11 + $0x1a0] sm:$0xff]
    %v484 = vld [vmem:[#allocation11 + $0x1a8] sm:$0xff]
    %v485 = vld [vmem:[#allocation11 + $0x1b0] sm:$0xff]
    %v486 = vld [vmem:[#allocation11 + $0x1b8] sm:$0xff]
    %v487 = vld [vmem:[#allocation11 + $0x1c0] sm:$0xff]
    %v488 = vld [vmem:[#allocation11 + $0x1c8] sm:$0xff]
    %v489 = vld [vmem:[#allocation11 + $0x1d0] sm:$0xff]
    %v490 = vld [vmem:[#allocation11 + $0x1d8] sm:$0xff]
    %v491 = vld [vmem:[#allocation11 + $0x1e0] sm:$0xff]
    %v492 = vld [vmem:[#allocation11 + $0x1e8] sm:$0xff]
    %v493 = vld [vmem:[#allocation11 + $0x1f0] sm:$0xff]
    %v494 = vld [vmem:[#allocation11 + $0x1f8] sm:$0xff]
    %v495 = vld [vmem:[#allocation11 + $0x200] sm:$0xff]
    %v496 = vld [vmem:[#allocation11 + $0x208] sm:$0xff]
    %v497 = vld [vmem:[#allocation11 + $0x210] sm:$0xff]
    %v498 = vld [vmem:[#allocation11 + $0x218] sm:$0xff]
    %v499 = vld [vmem:[#allocation11 + $0x220] sm:$0xff]
    %v500 = vld [vmem:[#allocation11 + $0x228] sm:$0xff]
    %v501 = vld [vmem:[#allocation11 + $0x230] sm:$0xff]
    %v502 = vld [vmem:[#allocation11 + $0x238] sm:$0xff]
    %v503 = vld [vmem:[#allocation11 + $0x240] sm:$0xff]
    %v504 = vld [vmem:[#allocation11 + $0x248] sm:$0xff]
    %v505 = vld [vmem:[#allocation11 + $0x250] sm:$0xff]
    %v506 = vld [vmem:[#allocation11 + $0x258] sm:$0xff]
    %v507 = vld [vmem:[#allocation11 + $0x260] sm:$0xff]
    %v508 = vld [vmem:[#allocation11 + $0x268] sm:$0xff]
    %v509 = vld [vmem:[#allocation11 + $0x270] sm:$0xff]
    %v510 = vld [vmem:[#allocation11 + $0x278] sm:$0xff]
    %v511 = vld [vmem:[#allocation11 + $0x280] sm:$0xff]
    %v512 = vld [vmem:[#allocation11 + $0x288] sm:$0xff]
    %v513 = vld [vmem:[#allocation11 + $0x290] sm:$0xff]
    %v514 = vld [vmem:[#allocation11 + $0x298] sm:$0xff]
    %v515 = vld [vmem:[#allocation11 + $0x2a0] sm:$0xff]
    %v516 = vld [vmem:[#allocation11 + $0x2a8] sm:$0xff]
    %v517 = vld [vmem:[#allocation11 + $0x2b0] sm:$0xff]
    %v518 = vld [vmem:[#allocation11 + $0x2b8] sm:$0xff]
    %v519 = vld [vmem:[#allocation11 + $0x2c0] sm:$0xff]
    %v520 = vld [vmem:[#allocation11 + $0x2c8] sm:$0xff]
    %v521 = vld [vmem:[#allocation11 + $0x2d0] sm:$0xff]
    %v522 = vld [vmem:[#allocation11 + $0x2d8] sm:$0xff]
    %v523 = vld [vmem:[#allocation11 + $0x2e0] sm:$0xff]
    %v524 = vld [vmem:[#allocation11 + $0x2e8] sm:$0xff]
    %v525 = vld [vmem:[#allocation11 + $0x2f0] sm:$0xff]
    %v526 = vld [vmem:[#allocation11 + $0x2f8] sm:$0xff]
    %v527 = vld [vmem:[#allocation13] sm:$0x3]
    %v529 = vperm.slane %v527, 0
    %v530 = vperm.slane %v527, 1
    %v545 = vunpack.c.l.b16 %v419
    %v546 = vunpack.c.h.b16 %v419
    %v547 = vunpack.c.l.b16 %v420
    %v548 = vunpack.c.h.b16 %v420
    %v549 = vunpack.c.l.b16 %v421
    %v550 = vunpack.c.h.b16 %v421
    %v551 = vunpack.c.l.b16 %v422
    %v552 = vunpack.c.h.b16 %v422
    %v553 = vunpack.c.l.b16 %v423
    %v554 = vunpack.c.h.b16 %v423
    %v555 = vunpack.c.l.b16 %v424
    %v556 = vunpack.c.h.b16 %v424
    %v557 = vunpack.c.l.b16 %v425
    %v558 = vunpack.c.h.b16 %v425
    %v559 = vunpack.c.l.b16 %v426
    %v560 = vunpack.c.h.b16 %v426
    %v561 = vunpack.c.l.b16 %v427
    %v562 = vunpack.c.h.b16 %v427
    %v563 = vunpack.c.l.b16 %v428
    %v564 = vunpack.c.h.b16 %v428
    %v565 = vunpack.c.l.b16 %v429
    %v566 = vunpack.c.h.b16 %v429
    %v567 = vunpack.c.l.b16 %v430
    %v568 = vunpack.c.h.b16 %v430
    %v569 = vpack.c.b16 %v551, %v545
    %v570 = vpack.c.b16 %v552, %v546
    %v571 = vpack.c.b16 %v553, %v547
    %v572 = vpack.c.b16 %v554, %v548
    %v573 = vpack.c.b16 %v555, %v549
    %v574 = vpack.c.b16 %v556, %v550
    %v575 = vpack.c.b16 %v563, %v557
    %v576 = vpack.c.b16 %v564, %v558
    %v577 = vpack.c.b16 %v565, %v559
    %v578 = vpack.c.b16 %v566, %v560
    %v579 = vpack.c.b16 %v567, %v561
    %v580 = vpack.c.b16 %v568, %v562
    %v689 = vunpack.c.l.b16 %v431
    %v690 = vunpack.c.h.b16 %v431
    %v691 = vunpack.c.l.b16 %v432
    %v692 = vunpack.c.h.b16 %v432
    %v693 = vunpack.c.l.b16 %v433
    %v694 = vunpack.c.h.b16 %v433
    %v695 = vunpack.c.l.b16 %v434
    %v696 = vunpack.c.h.b16 %v434
    %v697 = vunpack.c.l.b16 %v435
    %v698 = vunpack.c.h.b16 %v435
    %v699 = vunpack.c.l.b16 %v436
    %v700 = vunpack.c.h.b16 %v436
    %v701 = vunpack.c.l.b16 %v437
    %v702 = vunpack.c.h.b16 %v437
    %v703 = vunpack.c.l.b16 %v438
    %v704 = vunpack.c.h.b16 %v438
    %v705 = vunpack.c.l.b16 %v439
    %v706 = vunpack.c.h.b16 %v439
    %v707 = vunpack.c.l.b16 %v440
    %v708 = vunpack.c.h.b16 %v440
    %v709 = vunpack.c.l.b16 %v441
    %v710 = vunpack.c.h.b16 %v441
    %v711 = vunpack.c.l.b16 %v442
    %v712 = vunpack.c.h.b16 %v442
    %v713 = vunpack.c.l.b16 %v443
    %v714 = vunpack.c.h.b16 %v443
    %v715 = vunpack.c.l.b16 %v444
    %v716 = vunpack.c.h.b16 %v444
    %v717 = vunpack.c.l.b16 %v445
    %v718 = vunpack.c.h.b16 %v445
    %v719 = vunpack.c.l.b16 %v446
    %v720 = vunpack.c.h.b16 %v446
    %v721 = vunpack.c.l.b16 %v447
    %v722 = vunpack.c.h.b16 %v447
    %v723 = vunpack.c.l.b16 %v448
    %v724 = vunpack.c.h.b16 %v448
    %v725 = vunpack.c.l.b16 %v449
    %v726 = vunpack.c.h.b16 %v449
    %v727 = vunpack.c.l.b16 %v450
    %v728 = vunpack.c.h.b16 %v450
    %v729 = vunpack.c.l.b16 %v451
    %v730 = vunpack.c.h.b16 %v451
    %v731 = vunpack.c.l.b16 %v452
    %v732 = vunpack.c.h.b16 %v452
    %v733 = vunpack.c.l.b16 %v453
    %v734 = vunpack.c.h.b16 %v453
    %v735 = vunpack.c.l.b16 %v454
    %v736 = vunpack.c.h.b16 %v454
    %v737 = vunpack.c.l.b16 %v455
    %v738 = vunpack.c.h.b16 %v455
    %v739 = vunpack.c.l.b16 %v456
    %v740 = vunpack.c.h.b16 %v456
    %v741 = vunpack.c.l.b16 %v457
    %v742 = vunpack.c.h.b16 %v457
    %v743 = vunpack.c.l.b16 %v458
    %v744 = vunpack.c.h.b16 %v458
    %v745 = vunpack.c.l.b16 %v459
    %v746 = vunpack.c.h.b16 %v459
    %v747 = vunpack.c.l.b16 %v460
    %v748 = vunpack.c.h.b16 %v460
    %v749 = vunpack.c.l.b16 %v461
    %v750 = vunpack.c.h.b16 %v461
    %v751 = vunpack.c.l.b16 %v462
    %v752 = vunpack.c.h.b16 %v462
    %v753 = vunpack.c.l.b16 %v463
    %v754 = vunpack.c.h.b16 %v463
    %v755 = vunpack.c.l.b16 %v464
    %v756 = vunpack.c.h.b16 %v464
    %v757 = vunpack.c.l.b16 %v465
    %v758 = vunpack.c.h.b16 %v465
    %v759 = vunpack.c.l.b16 %v466
    %v760 = vunpack.c.h.b16 %v466
    %v761 = vunpack.c.l.b16 %v467
    %v762 = vunpack.c.h.b16 %v467
    %v763 = vunpack.c.l.b16 %v468
    %v764 = vunpack.c.h.b16 %v468
    %v765 = vunpack.c.l.b16 %v469
    %v766 = vunpack.c.h.b16 %v469
    %v767 = vunpack.c.l.b16 %v470
    %v768 = vunpack.c.h.b16 %v470
    %v769 = vunpack.c.l.b16 %v471
    %v770 = vunpack.c.h.b16 %v471
    %v771 = vunpack.c.l.b16 %v472
    %v772 = vunpack.c.h.b16 %v472
    %v773 = vunpack.c.l.b16 %v473
    %v774 = vunpack.c.h.b16 %v473
    %v775 = vunpack.c.l.b16 %v474
    %v776 = vunpack.c.h.b16 %v474
    %v777 = vunpack.c.l.b16 %v475
    %v778 = vunpack.c.h.b16 %v475
    %v779 = vunpack.c.l.b16 %v476
    %v780 = vunpack.c.h.b16 %v476
    %v781 = vunpack.c.l.b16 %v477
    %v782 = vunpack.c.h.b16 %v477
    %v783 = vunpack.c.l.b16 %v478
    %v784 = vunpack.c.h.b16 %v478
    %v785 = vunpack.c.l.b16 %v479
    %v786 = vunpack.c.h.b16 %v479
    %v787 = vunpack.c.l.b16 %v480
    %v788 = vunpack.c.h.b16 %v480
    %v789 = vunpack.c.l.b16 %v481
    %v790 = vunpack.c.h.b16 %v481
    %v791 = vunpack.c.l.b16 %v482
    %v792 = vunpack.c.h.b16 %v482
    %v793 = vunpack.c.l.b16 %v483
    %v794 = vunpack.c.h.b16 %v483
    %v795 = vunpack.c.l.b16 %v484
    %v796 = vunpack.c.h.b16 %v484
    %v797 = vunpack.c.l.b16 %v485
    %v798 = vunpack.c.h.b16 %v485
    %v799 = vunpack.c.l.b16 %v486
    %v800 = vunpack.c.h.b16 %v486
    %v801 = vunpack.c.l.b16 %v487
    %v802 = vunpack.c.h.b16 %v487
    %v803 = vunpack.c.l.b16 %v488
    %v804 = vunpack.c.h.b16 %v488
    %v805 = vunpack.c.l.b16 %v489
    %v806 = vunpack.c.h.b16 %v489
    %v807 = vunpack.c.l.b16 %v490
    %v808 = vunpack.c.h.b16 %v490
    %v809 = vunpack.c.l.b16 %v491
    %v810 = vunpack.c.h.b16 %v491
    %v811 = vunpack.c.l.b16 %v492
    %v812 = vunpack.c.h.b16 %v492
    %v813 = vunpack.c.l.b16 %v493
    %v814 = vunpack.c.h.b16 %v493
    %v815 = vunpack.c.l.b16 %v494
    %v816 = vunpack.c.h.b16 %v494
    %v817 = vunpack.c.l.b16 %v495
    %v818 = vunpack.c.h.b16 %v495
    %v819 = vunpack.c.l.b16 %v496
    %v820 = vunpack.c.h.b16 %v496
    %v821 = vunpack.c.l.b16 %v497
    %v822 = vunpack.c.h.b16 %v497
    %v823 = vunpack.c.l.b16 %v498
    %v824 = vunpack.c.h.b16 %v498
    %v825 = vunpack.c.l.b16 %v499
    %v826 = vunpack.c.h.b16 %v499
    %v827 = vunpack.c.l.b16 %v500
    %v828 = vunpack.c.h.b16 %v500
    %v829 = vunpack.c.l.b16 %v501
    %v830 = vunpack.c.h.b16 %v501
    %v831 = vunpack.c.l.b16 %v502
    %v832 = vunpack.c.h.b16 %v502
    %v833 = vunpack.c.l.b16 %v503
    %v834 = vunpack.c.h.b16 %v503
    %v835 = vunpack.c.l.b16 %v504
    %v836 = vunpack.c.h.b16 %v504
    %v837 = vunpack.c.l.b16 %v505
    %v838 = vunpack.c.h.b16 %v505
    %v839 = vunpack.c.l.b16 %v506
    %v840 = vunpack.c.h.b16 %v506
    %v841 = vunpack.c.l.b16 %v507
    %v842 = vunpack.c.h.b16 %v507
    %v843 = vunpack.c.l.b16 %v508
    %v844 = vunpack.c.h.b16 %v508
    %v845 = vunpack.c.l.b16 %v509
    %v846 = vunpack.c.h.b16 %v509
    %v847 = vunpack.c.l.b16 %v510
    %v848 = vunpack.c.h.b16 %v510
    %v849 = vunpack.c.l.b16 %v511
    %v850 = vunpack.c.h.b16 %v511
    %v851 = vunpack.c.l.b16 %v512
    %v852 = vunpack.c.h.b16 %v512
    %v853 = vunpack.c.l.b16 %v513
    %v854 = vunpack.c.h.b16 %v513
    %v855 = vunpack.c.l.b16 %v514
    %v856 = vunpack.c.h.b16 %v514
    %v857 = vunpack.c.l.b16 %v515
    %v858 = vunpack.c.h.b16 %v515
    %v859 = vunpack.c.l.b16 %v516
    %v860 = vunpack.c.h.b16 %v516
    %v861 = vunpack.c.l.b16 %v517
    %v862 = vunpack.c.h.b16 %v517
    %v863 = vunpack.c.l.b16 %v518
    %v864 = vunpack.c.h.b16 %v518
    %v865 = vunpack.c.l.b16 %v519
    %v866 = vunpack.c.h.b16 %v519
    %v867 = vunpack.c.l.b16 %v520
    %v868 = vunpack.c.h.b16 %v520
    %v869 = vunpack.c.l.b16 %v521
    %v870 = vunpack.c.h.b16 %v521
    %v871 = vunpack.c.l.b16 %v522
    %v872 = vunpack.c.h.b16 %v522
    %v873 = vunpack.c.l.b16 %v523
    %v874 = vunpack.c.h.b16 %v523
    %v875 = vunpack.c.l.b16 %v524
    %v876 = vunpack.c.h.b16 %v524
    %v877 = vunpack.c.l.b16 %v525
    %v878 = vunpack.c.h.b16 %v525
    %v879 = vunpack.c.l.b16 %v526
    %v880 = vunpack.c.h.b16 %v526
    %v881 = vpack.c.b16 %v691, %v689
    %v882 = vpack.c.b16 %v692, %v690
    %v883 = vpack.c.b16 %v695, %v693
    %v884 = vpack.c.b16 %v696, %v694
    %v885 = vpack.c.b16 %v699, %v697
    %v886 = vpack.c.b16 %v700, %v698
    %v887 = vpack.c.b16 %v703, %v701
    %v888 = vpack.c.b16 %v704, %v702
    %v889 = vpack.c.b16 %v707, %v705
    %v890 = vpack.c.b16 %v708, %v706
    %v891 = vpack.c.b16 %v711, %v709
    %v892 = vpack.c.b16 %v712, %v710
    %v893 = vpack.c.b16 %v715, %v713
    %v894 = vpack.c.b16 %v716, %v714
    %v895 = vpack.c.b16 %v719, %v717
    %v896 = vpack.c.b16 %v720, %v718
    %v897 = vpack.c.b16 %v723, %v721
    %v898 = vpack.c.b16 %v724, %v722
    %v899 = vpack.c.b16 %v727, %v725
    %v900 = vpack.c.b16 %v728, %v726
    %v901 = vpack.c.b16 %v731, %v729
    %v902 = vpack.c.b16 %v732, %v730
    %v903 = vpack.c.b16 %v735, %v733
    %v904 = vpack.c.b16 %v736, %v734
    %v905 = vpack.c.b16 %v739, %v737
    %v906 = vpack.c.b16 %v740, %v738
    %v907 = vpack.c.b16 %v743, %v741
    %v908 = vpack.c.b16 %v744, %v742
    %v909 = vpack.c.b16 %v747, %v745
    %v910 = vpack.c.b16 %v748, %v746
    %v911 = vpack.c.b16 %v751, %v749
    %v912 = vpack.c.b16 %v752, %v750
    %v913 = vpack.c.b16 %v755, %v753
    %v914 = vpack.c.b16 %v756, %v754
    %v915 = vpack.c.b16 %v759, %v757
    %v916 = vpack.c.b16 %v760, %v758
    %v917 = vpack.c.b16 %v763, %v761
    %v918 = vpack.c.b16 %v764, %v762
    %v919 = vpack.c.b16 %v767, %v765
    %v920 = vpack.c.b16 %v768, %v766
    %v921 = vpack.c.b16 %v771, %v769
    %v922 = vpack.c.b16 %v772, %v770
    %v923 = vpack.c.b16 %v775, %v773
    %v924 = vpack.c.b16 %v776, %v774
    %v925 = vpack.c.b16 %v779, %v777
    %v926 = vpack.c.b16 %v780, %v778
    %v927 = vpack.c.b16 %v783, %v781
    %v928 = vpack.c.b16 %v784, %v782
    %v929 = vpack.c.b16 %v787, %v785
    %v930 = vpack.c.b16 %v788, %v786
    %v931 = vpack.c.b16 %v791, %v789
    %v932 = vpack.c.b16 %v792, %v790
    %v933 = vpack.c.b16 %v795, %v793
    %v934 = vpack.c.b16 %v796, %v794
    %v935 = vpack.c.b16 %v799, %v797
    %v936 = vpack.c.b16 %v800, %v798
    %v937 = vpack.c.b16 %v803, %v801
    %v938 = vpack.c.b16 %v804, %v802
    %v939 = vpack.c.b16 %v807, %v805
    %v940 = vpack.c.b16 %v808, %v806
    %v941 = vpack.c.b16 %v811, %v809
    %v942 = vpack.c.b16 %v812, %v810
    %v943 = vpack.c.b16 %v815, %v813
    %v944 = vpack.c.b16 %v816, %v814
    %v945 = vpack.c.b16 %v819, %v817
    %v946 = vpack.c.b16 %v820, %v818
    %v947 = vpack.c.b16 %v823, %v821
    %v948 = vpack.c.b16 %v824, %v822
    %v949 = vpack.c.b16 %v827, %v825
    %v950 = vpack.c.b16 %v828, %v826
    %v951 = vpack.c.b16 %v831, %v829
    %v952 = vpack.c.b16 %v832, %v830
    %v953 = vpack.c.b16 %v835, %v833
    %v954 = vpack.c.b16 %v836, %v834
    %v955 = vpack.c.b16 %v839, %v837
    %v956 = vpack.c.b16 %v840, %v838
    %v957 = vpack.c.b16 %v843, %v841
    %v958 = vpack.c.b16 %v844, %v842
    %v959 = vpack.c.b16 %v847, %v845
    %v960 = vpack.c.b16 %v848, %v846
    %v961 = vpack.c.b16 %v851, %v849
    %v962 = vpack.c.b16 %v852, %v850
    %v963 = vpack.c.b16 %v855, %v853
    %v964 = vpack.c.b16 %v856, %v854
    %v965 = vpack.c.b16 %v859, %v857
    %v966 = vpack.c.b16 %v860, %v858
    %v967 = vpack.c.b16 %v863, %v861
    %v968 = vpack.c.b16 %v864, %v862
    %v969 = vpack.c.b16 %v867, %v865
    %v970 = vpack.c.b16 %v868, %v866
    %v971 = vpack.c.b16 %v871, %v869
    %v972 = vpack.c.b16 %v872, %v870
    %v973 = vpack.c.b16 %v875, %v873
    %v974 = vpack.c.b16 %v876, %v874
    %v975 = vpack.c.b16 %v879, %v877
    %v976 = vpack.c.b16 %v880, %v878
    %1073 = vmatpush.bf16.msra.mxu0 %v895
    %1074 = vmatpush.bf16.msra.mxu0 %v893
    %1075 = vmatpush.bf16.msra.mxu0 %v891
    %1076 = vmatpush.bf16.msra.mxu0 %v889
    %1077 = vmatpush.bf16.msra.mxu0 %v887
    %1078 = vmatpush.bf16.msra.mxu0 %v885
    %1079 = vmatpush.bf16.msra.mxu0 %v883
    %1080 = vmatpush.bf16.msra.mxu0 %v881
    %1081 = vmatmul.bf16.gmra.mxu0 %v569
    %v1082 = vpop.f32.mrf.mxu0
    %v1083 = vadd.f32 %v529, %v1082
    %v1084 = vpop.f32.mrf.mxu0
    %v1085 = vadd.f32 %v529, %v1084
    %1086 = vmatmul.bf16.gmra.mxu0 %v575
    %v1087 = vpop.f32.mrf.mxu0
    %v1088 = vadd.f32 %v529, %v1087
    %v1089 = vpop.f32.mrf.mxu0
    %v1090 = vadd.f32 %v529, %v1089
    %1091 = vdwg.mxu0
    %1092 = vmatpush.bf16.msra.mxu0 %v911
    %1093 = vmatpush.bf16.msra.mxu0 %v909
    %1094 = vmatpush.bf16.msra.mxu0 %v907
    %1095 = vmatpush.bf16.msra.mxu0 %v905
    %1096 = vmatpush.bf16.msra.mxu0 %v903
    %1097 = vmatpush.bf16.msra.mxu0 %v901
    %1098 = vmatpush.bf16.msra.mxu0 %v899
    %1099 = vmatpush.bf16.msra.mxu0 %v897
    %1100 = vmatmul.bf16.gmra.mxu0 %v570
    %v1101 = vpop.f32.mrf.mxu0
    %v1102 = vadd.f32 %v1083, %v1101
    %v1103 = vpop.f32.mrf.mxu0
    %v1104 = vadd.f32 %v1085, %v1103
    %1105 = vmatmul.bf16.gmra.mxu0 %v576
    %v1106 = vpop.f32.mrf.mxu0
    %v1107 = vadd.f32 %v1088, %v1106
    %v1108 = vpop.f32.mrf.mxu0
    %v1109 = vadd.f32 %v1090, %v1108
    %1110 = vdwg.mxu0
    %1111 = vmatpush.bf16.msra.mxu0 %v927
    %1112 = vmatpush.bf16.msra.mxu0 %v925
    %1113 = vmatpush.bf16.msra.mxu0 %v923
    %1114 = vmatpush.bf16.msra.mxu0 %v921
    %1115 = vmatpush.bf16.msra.mxu0 %v919
    %1116 = vmatpush.bf16.msra.mxu0 %v917
    %1117 = vmatpush.bf16.msra.mxu0 %v915
    %1118 = vmatpush.bf16.msra.mxu0 %v913
    %1119 = vmatmul.bf16.gmra.mxu0 %v571
    %v1120 = vpop.f32.mrf.mxu0
    %v1121 = vadd.f32 %v1102, %v1120
    %v1122 = vpop.f32.mrf.mxu0
    %v1123 = vadd.f32 %v1104, %v1122
    %1124 = vmatmul.bf16.gmra.mxu0 %v577
    %v1125 = vpop.f32.mrf.mxu0
    %v1126 = vadd.f32 %v1107, %v1125
    %v1127 = vpop.f32.mrf.mxu0
    %v1128 = vadd.f32 %v1109, %v1127
    %1129 = vdwg.mxu0
    %1130 = vmatpush.bf16.msra.mxu0 %v943
    %1131 = vmatpush.bf16.msra.mxu0 %v941
    %1132 = vmatpush.bf16.msra.mxu0 %v939
    %1133 = vmatpush.bf16.msra.mxu0 %v937
    %1134 = vmatpush.bf16.msra.mxu0 %v935
    %1135 = vmatpush.bf16.msra.mxu0 %v933
    %1136 = vmatpush.bf16.msra.mxu0 %v931
    %1137 = vmatpush.bf16.msra.mxu0 %v929
    %1138 = vmatmul.bf16.gmra.mxu0 %v572
    %v1139 = vpop.f32.mrf.mxu0
    %v1140 = vadd.f32 %v1121, %v1139
    %v1141 = vpop.f32.mrf.mxu0
    %v1142 = vadd.f32 %v1123, %v1141
    %1143 = vmatmul.bf16.gmra.mxu0 %v578
    %v1144 = vpop.f32.mrf.mxu0
    %v1145 = vadd.f32 %v1126, %v1144
    %v1146 = vpop.f32.mrf.mxu0
    %v1147 = vadd.f32 %v1128, %v1146
    %1148 = vdwg.mxu0
    %1149 = vmatpush.bf16.msra.mxu0 %v959
    %1150 = vmatpush.bf16.msra.mxu0 %v957
    %1151 = vmatpush.bf16.msra.mxu0 %v955
    %1152 = vmatpush.bf16.msra.mxu0 %v953
    %1153 = vmatpush.bf16.msra.mxu0 %v951
    %1154 = vmatpush.bf16.msra.mxu0 %v949
    %1155 = vmatpush.bf16.msra.mxu0 %v947
    %1156 = vmatpush.bf16.msra.mxu0 %v945
    %1157 = vmatmul.bf16.gmra.mxu0 %v573
    %v1158 = vpop.f32.mrf.mxu0
    %v1159 = vadd.f32 %v1140, %v1158
    %v1160 = vpop.f32.mrf.mxu0
    %v1161 = vadd.f32 %v1142, %v1160
    %1162 = vmatmul.bf16.gmra.mxu0 %v579
    %v1163 = vpop.f32.mrf.mxu0
    %v1164 = vadd.f32 %v1145, %v1163
    %v1165 = vpop.f32.mrf.mxu0
    %v1166 = vadd.f32 %v1147, %v1165
    %1167 = vdwg.mxu0
    %1168 = vmatpush.bf16.msra.mxu0 %v975
    %1169 = vmatpush.bf16.msra.mxu0 %v973
    %1170 = vmatpush.bf16.msra.mxu0 %v971
    %1171 = vmatpush.bf16.msra.mxu0 %v969
    %1172 = vmatpush.bf16.msra.mxu0 %v967
    %1173 = vmatpush.bf16.msra.mxu0 %v965
    %1174 = vmatpush.bf16.msra.mxu0 %v963
    %1175 = vmatpush.bf16.msra.mxu0 %v961
    %1176 = vmatmul.bf16.gmra.mxu0 %v574
    %v1177 = vpop.f32.mrf.mxu0
    %v1178 = vadd.f32 %v1159, %v1177
    %v1179 = vpop.f32.mrf.mxu0
    %v1180 = vadd.f32 %v1161, %v1179
    %1181 = vmatmul.bf16.gmra.mxu0 %v580
    %v1182 = vpop.f32.mrf.mxu0
    %v1183 = vadd.f32 %v1164, %v1182
    %v1184 = vpop.f32.mrf.mxu0
    %v1185 = vadd.f32 %v1166, %v1184
    %1186 = vdwg.mxu0
    %1187 = vmatpush.bf16.msra.mxu0 %v896
    %1188 = vmatpush.bf16.msra.mxu0 %v894
    %1189 = vmatpush.bf16.msra.mxu0 %v892
    %1190 = vmatpush.bf16.msra.mxu0 %v890
    %1191 = vmatpush.bf16.msra.mxu0 %v888
    %1192 = vmatpush.bf16.msra.mxu0 %v886
    %1193 = vmatpush.bf16.msra.mxu0 %v884
    %1194 = vmatpush.bf16.msra.mxu0 %v882
    %1195 = vmatmul.bf16.gmra.mxu0 %v569
    %v1196 = vpop.f32.mrf.mxu0
    %v1197 = vadd.f32 %v530, %v1196
    %v1198 = vpop.f32.mrf.mxu0
    %v1199 = vadd.f32 %v530, %v1198
    %1200 = vmatmul.bf16.gmra.mxu0 %v575
    %v1201 = vpop.f32.mrf.mxu0
    %v1202 = vadd.f32 %v530, %v1201
    %v1203 = vpop.f32.mrf.mxu0
    %v1204 = vadd.f32 %v530, %v1203
    %1205 = vdwg.mxu0
    %1206 = vmatpush.bf16.msra.mxu0 %v912
    %1207 = vmatpush.bf16.msra.mxu0 %v910
    %1208 = vmatpush.bf16.msra.mxu0 %v908
    %1209 = vmatpush.bf16.msra.mxu0 %v906
    %1210 = vmatpush.bf16.msra.mxu0 %v904
    %1211 = vmatpush.bf16.msra.mxu0 %v902
    %1212 = vmatpush.bf16.msra.mxu0 %v900
    %1213 = vmatpush.bf16.msra.mxu0 %v898
    %1214 = vmatmul.bf16.gmra.mxu0 %v570
    %v1215 = vpop.f32.mrf.mxu0
    %v1216 = vadd.f32 %v1197, %v1215
    %v1217 = vpop.f32.mrf.mxu0
    %v1218 = vadd.f32 %v1199, %v1217
    %1219 = vmatmul.bf16.gmra.mxu0 %v576
    %v1220 = vpop.f32.mrf.mxu0
    %v1221 = vadd.f32 %v1202, %v1220
    %v1222 = vpop.f32.mrf.mxu0
    %v1223 = vadd.f32 %v1204, %v1222
    %1224 = vdwg.mxu0
    %1225 = vmatpush.bf16.msra.mxu0 %v928
    %1226 = vmatpush.bf16.msra.mxu0 %v926
    %1227 = vmatpush.bf16.msra.mxu0 %v924
    %1228 = vmatpush.bf16.msra.mxu0 %v922
    %1229 = vmatpush.bf16.msra.mxu0 %v920
    %1230 = vmatpush.bf16.msra.mxu0 %v918
    %1231 = vmatpush.bf16.msra.mxu0 %v916
    %1232 = vmatpush.bf16.msra.mxu0 %v914
    %1233 = vmatmul.bf16.gmra.mxu0 %v571
    %v1234 = vpop.f32.mrf.mxu0
    %v1235 = vadd.f32 %v1216, %v1234
    %v1236 = vpop.f32.mrf.mxu0
    %v1237 = vadd.f32 %v1218, %v1236
    %1238 = vmatmul.bf16.gmra.mxu0 %v577
    %v1239 = vpop.f32.mrf.mxu0
    %v1240 = vadd.f32 %v1221, %v1239
    %v1241 = vpop.f32.mrf.mxu0
    %v1242 = vadd.f32 %v1223, %v1241
    %1243 = vdwg.mxu0
    %1244 = vmatpush.bf16.msra.mxu0 %v944
    %1245 = vmatpush.bf16.msra.mxu0 %v942
    %1246 = vmatpush.bf16.msra.mxu0 %v940
    %1247 = vmatpush.bf16.msra.mxu0 %v938
    %1248 = vmatpush.bf16.msra.mxu0 %v936
    %1249 = vmatpush.bf16.msra.mxu0 %v934
    %1250 = vmatpush.bf16.msra.mxu0 %v932
    %1251 = vmatpush.bf16.msra.mxu0 %v930
    %1252 = vmatmul.bf16.gmra.mxu0 %v572
    %v1253 = vpop.f32.mrf.mxu0
    %v1254 = vadd.f32 %v1235, %v1253
    %v1255 = vpop.f32.mrf.mxu0
    %v1256 = vadd.f32 %v1237, %v1255
    %1257 = vmatmul.bf16.gmra.mxu0 %v578
    %v1258 = vpop.f32.mrf.mxu0
    %v1259 = vadd.f32 %v1240, %v1258
    %v1260 = vpop.f32.mrf.mxu0
    %v1261 = vadd.f32 %v1242, %v1260
    %1262 = vdwg.mxu0
    %1263 = vmatpush.bf16.msra.mxu0 %v960
    %1264 = vmatpush.bf16.msra.mxu0 %v958
    %1265 = vmatpush.bf16.msra.mxu0 %v956
    %1266 = vmatpush.bf16.msra.mxu0 %v954
    %1267 = vmatpush.bf16.msra.mxu0 %v952
    %1268 = vmatpush.bf16.msra.mxu0 %v950
    %1269 = vmatpush.bf16.msra.mxu0 %v948
    %1270 = vmatpush.bf16.msra.mxu0 %v946
    %1271 = vmatmul.bf16.gmra.mxu0 %v573
    %v1272 = vpop.f32.mrf.mxu0
    %v1273 = vadd.f32 %v1254, %v1272
    %v1274 = vpop.f32.mrf.mxu0
    %v1275 = vadd.f32 %v1256, %v1274
    %1276 = vmatmul.bf16.gmra.mxu0 %v579
    %v1277 = vpop.f32.mrf.mxu0
    %v1278 = vadd.f32 %v1259, %v1277
    %v1279 = vpop.f32.mrf.mxu0
    %v1280 = vadd.f32 %v1261, %v1279
    %1281 = vdwg.mxu0
    %1282 = vmatpush.bf16.msra.mxu0 %v976
    %1283 = vmatpush.bf16.msra.mxu0 %v974
    %1284 = vmatpush.bf16.msra.mxu0 %v972
    %1285 = vmatpush.bf16.msra.mxu0 %v970
    %1286 = vmatpush.bf16.msra.mxu0 %v968
    %1287 = vmatpush.bf16.msra.mxu0 %v966
    %1288 = vmatpush.bf16.msra.mxu0 %v964
    %1289 = vmatpush.bf16.msra.mxu0 %v962
    %1290 = vmatmul.bf16.gmra.mxu0 %v574
    %v1291 = vpop.f32.mrf.mxu0
    %v1292 = vadd.f32 %v1273, %v1291
    %v1293 = vpop.f32.mrf.mxu0
    %v1294 = vadd.f32 %v1275, %v1293
    %1295 = vmatmul.bf16.gmra.mxu0 %v580
    %v1296 = vpop.f32.mrf.mxu0
    %v1297 = vadd.f32 %v1278, %v1296
    %v1298 = vpop.f32.mrf.mxu0
    %v1299 = vadd.f32 %v1280, %v1298
    %1300 = vdwg.mxu0
    %v1301 = vpack.c.bf16 %v1180, %v1178
    %v1302 = vpack.c.bf16 %v1294, %v1292
    %v1303 = vpack.c.bf16 %v1185, %v1183
    %v1304 = vpack.c.bf16 %v1299, %v1297
    %v1305 = vld [vmem:[#allocation14] sm:$0xf]
    %v1306 = vld [vmem:[#allocation14 + $0x4] sm:$0xf]
    %v1307 = vld [vmem:[#allocation14 + $0x8] sm:$0xf]
    %v1308 = vld [vmem:[#allocation14 + $0xc] sm:$0xf]
    %v1309 = vld [vmem:[#allocation14 + $0x10] sm:$0xf]
    %v1310 = vld [vmem:[#allocation14 + $0x14] sm:$0xf]
    %v1311 = vld [vmem:[#allocation14 + $0x18] sm:$0xf]
    %v1312 = vld [vmem:[#allocation14 + $0x1c] sm:$0xf]
    %v1313 = vld [vmem:[#allocation14 + $0x20] sm:$0xf]
    %v1314 = vld [vmem:[#allocation14 + $0x24] sm:$0xf]
    %v1315 = vld [vmem:[#allocation14 + $0x28] sm:$0xf]
    %v1316 = vld [vmem:[#allocation14 + $0x2c] sm:$0xf]
    %v1317 = vld [vmem:[#allocation14 + $0x30] sm:$0xf]
    %v1318 = vld [vmem:[#allocation14 + $0x34] sm:$0xf]
    %v1319 = vld [vmem:[#allocation14 + $0x38] sm:$0xf]
    %v1320 = vld [vmem:[#allocation14 + $0x3c] sm:$0xf]
    %v1321 = vld [vmem:[#allocation14 + $0x40] sm:$0xf]
    %v1322 = vld [vmem:[#allocation14 + $0x44] sm:$0xf]
    %v1323 = vld [vmem:[#allocation14 + $0x48] sm:$0xf]
    %v1324 = vld [vmem:[#allocation14 + $0x4c] sm:$0xf]
    %v1325 = vld [vmem:[#allocation14 + $0x50] sm:$0xf]
    %v1326 = vld [vmem:[#allocation14 + $0x54] sm:$0xf]
    %v1327 = vld [vmem:[#allocation14 + $0x58] sm:$0xf]
    %v1328 = vld [vmem:[#allocation14 + $0x5c] sm:$0xf]
    %v1329 = vld [vmem:[#allocation14 + $0x60] sm:$0xf]
    %v1330 = vld [vmem:[#allocation14 + $0x64] sm:$0xf]
    %v1331 = vld [vmem:[#allocation14 + $0x68] sm:$0xf]
    %v1332 = vld [vmem:[#allocation14 + $0x6c] sm:$0xf]
    %v1333 = vld [vmem:[#allocation14 + $0x70] sm:$0xf]
    %v1334 = vld [vmem:[#allocation14 + $0x74] sm:$0xf]
    %v1335 = vld [vmem:[#allocation14 + $0x78] sm:$0xf]
    %v1336 = vld [vmem:[#allocation14 + $0x7c] sm:$0xf]
    %v1337 = vld [vmem:[#allocation16] sm:$0x1]
    %v1339 = vperm.slane %v1337, 0
    %v1373 = vunpack.c.l.b16 %v1305
    %v1374 = vunpack.c.l.b16 %v1306
    %v1375 = vunpack.c.l.b16 %v1307
    %v1376 = vunpack.c.l.b16 %v1308
    %v1377 = vunpack.c.l.b16 %v1309
    %v1378 = vunpack.c.l.b16 %v1310
    %v1379 = vunpack.c.l.b16 %v1311
    %v1380 = vunpack.c.l.b16 %v1312
    %v1381 = vunpack.c.l.b16 %v1313
    %v1382 = vunpack.c.l.b16 %v1314
    %v1383 = vunpack.c.l.b16 %v1315
    %v1384 = vunpack.c.l.b16 %v1316
    %v1385 = vunpack.c.l.b16 %v1317
    %v1386 = vunpack.c.l.b16 %v1318
    %v1387 = vunpack.c.l.b16 %v1319
    %v1388 = vunpack.c.l.b16 %v1320
    %v1389 = vunpack.c.l.b16 %v1321
    %v1390 = vunpack.c.l.b16 %v1322
    %v1391 = vunpack.c.l.b16 %v1323
    %v1392 = vunpack.c.l.b16 %v1324
    %v1393 = vunpack.c.l.b16 %v1325
    %v1394 = vunpack.c.l.b16 %v1326
    %v1395 = vunpack.c.l.b16 %v1327
    %v1396 = vunpack.c.l.b16 %v1328
    %v1397 = vunpack.c.l.b16 %v1329
    %v1398 = vunpack.c.l.b16 %v1330
    %v1399 = vunpack.c.l.b16 %v1331
    %v1400 = vunpack.c.l.b16 %v1332
    %v1401 = vunpack.c.l.b16 %v1333
    %v1402 = vunpack.c.l.b16 %v1334
    %v1403 = vunpack.c.l.b16 %v1335
    %v1404 = vunpack.c.l.b16 %v1336
    %v1405 = vpack.c.b16 %v1374, %v1373
    %v1406 = vpack.c.b16 %v1376, %v1375
    %v1407 = vpack.c.b16 %v1378, %v1377
    %v1408 = vpack.c.b16 %v1380, %v1379
    %v1409 = vpack.c.b16 %v1382, %v1381
    %v1410 = vpack.c.b16 %v1384, %v1383
    %v1411 = vpack.c.b16 %v1386, %v1385
    %v1412 = vpack.c.b16 %v1388, %v1387
    %v1413 = vpack.c.b16 %v1390, %v1389
    %v1414 = vpack.c.b16 %v1392, %v1391
    %v1415 = vpack.c.b16 %v1394, %v1393
    %v1416 = vpack.c.b16 %v1396, %v1395
    %v1417 = vpack.c.b16 %v1398, %v1397
    %v1418 = vpack.c.b16 %v1400, %v1399
    %v1419 = vpack.c.b16 %v1402, %v1401
    %v1420 = vpack.c.b16 %v1404, %v1403
    %1437 = vmatpush.bf16.msra.mxu0 %v1412
    %1438 = vmatpush.bf16.msra.mxu0 %v1411
    %1439 = vmatpush.bf16.msra.mxu0 %v1410
    %1440 = vmatpush.bf16.msra.mxu0 %v1409
    %1441 = vmatpush.bf16.msra.mxu0 %v1408
    %1442 = vmatpush.bf16.msra.mxu0 %v1407
    %1443 = vmatpush.bf16.msra.mxu0 %v1406
    %1444 = vmatpush.bf16.msra.mxu0 %v1405
    %1445 = vmatmul.bf16.gmra.mxu0 %v1301
    %v1446 = vpop.f32.mrf.mxu0
    %v1447 = vadd.f32 %v1339, %v1446
    %v1448 = vpop.f32.mrf.mxu0
    %v1449 = vadd.f32 %v1339, %v1448
    %1450 = vmatmul.bf16.gmra.mxu0 %v1303
    %v1451 = vpop.f32.mrf.mxu0
    %v1452 = vadd.f32 %v1339, %v1451
    %v1453 = vpop.f32.mrf.mxu0
    %v1454 = vadd.f32 %v1339, %v1453
    %1455 = vdwg.mxu0
    %1456 = vmatpush.bf16.msra.mxu0 %v1420
    %1457 = vmatpush.bf16.msra.mxu0 %v1419
    %1458 = vmatpush.bf16.msra.mxu0 %v1418
    %1459 = vmatpush.bf16.msra.mxu0 %v1417
    %1460 = vmatpush.bf16.msra.mxu0 %v1416
    %1461 = vmatpush.bf16.msra.mxu0 %v1415
    %1462 = vmatpush.bf16.msra.mxu0 %v1414
    %1463 = vmatpush.bf16.msra.mxu0 %v1413
    %1464 = vmatmul.bf16.gmra.mxu0 %v1302
    %v1465 = vpop.f32.mrf.mxu0
    %v1466 = vadd.f32 %v1447, %v1465
    %v1467 = vpop.f32.mrf.mxu0
    %v1468 = vadd.f32 %v1449, %v1467
    %1469 = vmatmul.bf16.gmra.mxu0 %v1304
    %v1470 = vpop.f32.mrf.mxu0
    %v1471 = vadd.f32 %v1452, %v1470
    %v1472 = vpop.f32.mrf.mxu0
    %v1473 = vadd.f32 %v1454, %v1472
    %1474 = vdwg.mxu0
    %v1475 = vld [vmem:[#allocation7] sm:$0xf]
    %v1476 = vld [vmem:[#allocation7 + $0x4] sm:$0xf]
    %v1477 = vld [vmem:[#allocation7 + $0x8] sm:$0xf]
    %v1478 = vld [vmem:[#allocation7 + $0xc] sm:$0xf]
    %v1479 = vunpack.c.l.bf16 %v1475
    %v1480 = vunpack.c.l.bf16 %v1476
    %v1481 = vunpack.c.l.bf16 %v1477
    %v1482 = vunpack.c.l.bf16 %v1478
    %v1483 = vadd.f32 %v1466, %v1479
    %v1484 = vadd.f32 %v1468, %v1480
    %v1485 = vadd.f32 %v1471, %v1481
    %v1486 = vadd.f32 %v1473, %v1482
    %v1487 = vpack.c.bf16 %v1484, %v1483
    %v1488 = vpack.c.bf16 %v1486, %v1485
    %v1489 = vld [vmem:[#allocation8] sm:$0xff]
    %v1490 = vld [vmem:[#allocation8 + $0x8] sm:$0xff]
    %v1491 = vld [vmem:[#allocation8 + $0x10] sm:$0xff]
    %v1492 = vld [vmem:[#allocation8 + $0x18] sm:$0xff]
    %v1493 = vld [vmem:[#allocation8 + $0x20] sm:$0xff]
    %v1494 = vld [vmem:[#allocation8 + $0x28] sm:$0xff]
    %v1495 = vld [vmem:[#allocation8 + $0x30] sm:$0xff]
    %v1496 = vld [vmem:[#allocation8 + $0x38] sm:$0xff]
    %v1497 = vld [vmem:[#allocation8 + $0x40] sm:$0xff]
    %v1498 = vld [vmem:[#allocation8 + $0x48] sm:$0xff]
    %v1499 = vld [vmem:[#allocation8 + $0x50] sm:$0xff]
    %v1500 = vld [vmem:[#allocation8 + $0x58] sm:$0xff]
    %v1501 = vld [vmem:[#allocation8 + $0x60] sm:$0xff]
    %v1502 = vld [vmem:[#allocation8 + $0x68] sm:$0xff]
    %v1503 = vld [vmem:[#allocation8 + $0x70] sm:$0xff]
    %v1504 = vld [vmem:[#allocation8 + $0x78] sm:$0xff]
    %v1505 = vld [vmem:[#allocation8 + $0x80] sm:$0xff]
    %v1506 = vld [vmem:[#allocation8 + $0x88] sm:$0xff]
    %v1507 = vld [vmem:[#allocation8 + $0x90] sm:$0xff]
    %v1508 = vld [vmem:[#allocation8 + $0x98] sm:$0xff]
    %v1509 = vld [vmem:[#allocation8 + $0xa0] sm:$0xff]
    %v1510 = vld [vmem:[#allocation8 + $0xa8] sm:$0xff]
    %v1511 = vld [vmem:[#allocation8 + $0xb0] sm:$0xff]
    %v1512 = vld [vmem:[#allocation8 + $0xb8] sm:$0xff]
    %v1513 = vld [vmem:[#allocation8 + $0xc0] sm:$0xff]
    %v1514 = vld [vmem:[#allocation8 + $0xc8] sm:$0xff]
    %v1515 = vld [vmem:[#allocation8 + $0xd0] sm:$0xff]
    %v1516 = vld [vmem:[#allocation8 + $0xd8] sm:$0xff]
    %v1517 = vld [vmem:[#allocation8 + $0xe0] sm:$0xff]
    %v1518 = vld [vmem:[#allocation8 + $0xe8] sm:$0xff]
    %v1519 = vld [vmem:[#allocation8 + $0xf0] sm:$0xff]
    %v1520 = vld [vmem:[#allocation8 + $0xf8] sm:$0xff]
    %v1521 = vld [vmem:[#allocation8 + $0x100] sm:$0xff]
    %v1522 = vld [vmem:[#allocation8 + $0x108] sm:$0xff]
    %v1523 = vld [vmem:[#allocation8 + $0x110] sm:$0xff]
    %v1524 = vld [vmem:[#allocation8 + $0x118] sm:$0xff]
    %v1525 = vld [vmem:[#allocation8 + $0x120] sm:$0xff]
    %v1526 = vld [vmem:[#allocation8 + $0x128] sm:$0xff]
    %v1527 = vld [vmem:[#allocation8 + $0x130] sm:$0xff]
    %v1528 = vld [vmem:[#allocation8 + $0x138] sm:$0xff]
    %v1529 = vld [vmem:[#allocation8 + $0x140] sm:$0xff]
    %v1530 = vld [vmem:[#allocation8 + $0x148] sm:$0xff]
    %v1531 = vld [vmem:[#allocation8 + $0x150] sm:$0xff]
    %v1532 = vld [vmem:[#allocation8 + $0x158] sm:$0xff]
    %v1533 = vld [vmem:[#allocation8 + $0x160] sm:$0xff]
    %v1534 = vld [vmem:[#allocation8 + $0x168] sm:$0xff]
    %v1535 = vld [vmem:[#allocation8 + $0x170] sm:$0xff]
    %v1536 = vld [vmem:[#allocation8 + $0x178] sm:$0xff]
    %v1537 = vld [vmem:[#allocation17] sm:$0xff]
    %v1538 = vld [vmem:[#allocation17 + $0x8] sm:$0xff]
    %v1539 = vld [vmem:[#allocation17 + $0x10] sm:$0xff]
    %v1540 = vld [vmem:[#allocation17 + $0x18] sm:$0xff]
    %v1541 = vld [vmem:[#allocation17 + $0x20] sm:$0xff]
    %v1542 = vld [vmem:[#allocation17 + $0x28] sm:$0xff]
    %v1543 = vld [vmem:[#allocation17 + $0x30] sm:$0xff]
    %v1544 = vld [vmem:[#allocation17 + $0x38] sm:$0xff]
    %v1545 = vld [vmem:[#allocation17 + $0x40] sm:$0xff]
    %v1546 = vld [vmem:[#allocation17 + $0x48] sm:$0xff]
    %v1547 = vld [vmem:[#allocation17 + $0x50] sm:$0xff]
    %v1548 = vld [vmem:[#allocation17 + $0x58] sm:$0xff]
    %v1549 = vld [vmem:[#allocation17 + $0x60] sm:$0xff]
    %v1550 = vld [vmem:[#allocation17 + $0x68] sm:$0xff]
    %v1551 = vld [vmem:[#allocation17 + $0x70] sm:$0xff]
    %v1552 = vld [vmem:[#allocation17 + $0x78] sm:$0xff]
    %v1553 = vld [vmem:[#allocation17 + $0x80] sm:$0xff]
    %v1554 = vld [vmem:[#allocation17 + $0x88] sm:$0xff]
    %v1555 = vld [vmem:[#allocation17 + $0x90] sm:$0xff]
    %v1556 = vld [vmem:[#allocation17 + $0x98] sm:$0xff]
    %v1557 = vld [vmem:[#allocation17 + $0xa0] sm:$0xff]
    %v1558 = vld [vmem:[#allocation17 + $0xa8] sm:$0xff]
    %v1559 = vld [vmem:[#allocation17 + $0xb0] sm:$0xff]
    %v1560 = vld [vmem:[#allocation17 + $0xb8] sm:$0xff]
    %v1561 = vld [vmem:[#allocation17 + $0xc0] sm:$0xff]
    %v1562 = vld [vmem:[#allocation17 + $0xc8] sm:$0xff]
    %v1563 = vld [vmem:[#allocation17 + $0xd0] sm:$0xff]
    %v1564 = vld [vmem:[#allocation17 + $0xd8] sm:$0xff]
    %v1565 = vld [vmem:[#allocation17 + $0xe0] sm:$0xff]
    %v1566 = vld [vmem:[#allocation17 + $0xe8] sm:$0xff]
    %v1567 = vld [vmem:[#allocation17 + $0xf0] sm:$0xff]
    %v1568 = vld [vmem:[#allocation17 + $0xf8] sm:$0xff]
    %v1569 = vld [vmem:[#allocation17 + $0x100] sm:$0xff]
    %v1570 = vld [vmem:[#allocation17 + $0x108] sm:$0xff]
    %v1571 = vld [vmem:[#allocation17 + $0x110] sm:$0xff]
    %v1572 = vld [vmem:[#allocation17 + $0x118] sm:$0xff]
    %v1573 = vld [vmem:[#allocation17 + $0x120] sm:$0xff]
    %v1574 = vld [vmem:[#allocation17 + $0x128] sm:$0xff]
    %v1575 = vld [vmem:[#allocation17 + $0x130] sm:$0xff]
    %v1576 = vld [vmem:[#allocation17 + $0x138] sm:$0xff]
    %v1577 = vld [vmem:[#allocation17 + $0x140] sm:$0xff]
    %v1578 = vld [vmem:[#allocation17 + $0x148] sm:$0xff]
    %v1579 = vld [vmem:[#allocation17 + $0x150] sm:$0xff]
    %v1580 = vld [vmem:[#allocation17 + $0x158] sm:$0xff]
    %v1581 = vld [vmem:[#allocation17 + $0x160] sm:$0xff]
    %v1582 = vld [vmem:[#allocation17 + $0x168] sm:$0xff]
    %v1583 = vld [vmem:[#allocation17 + $0x170] sm:$0xff]
    %v1584 = vld [vmem:[#allocation17 + $0x178] sm:$0xff]
    %v1585 = vld [vmem:[#allocation17 + $0x180] sm:$0xff]
    %v1586 = vld [vmem:[#allocation17 + $0x188] sm:$0xff]
    %v1587 = vld [vmem:[#allocation17 + $0x190] sm:$0xff]
    %v1588 = vld [vmem:[#allocation17 + $0x198] sm:$0xff]
    %v1589 = vld [vmem:[#allocation17 + $0x1a0] sm:$0xff]
    %v1590 = vld [vmem:[#allocation17 + $0x1a8] sm:$0xff]
    %v1591 = vld [vmem:[#allocation17 + $0x1b0] sm:$0xff]
    %v1592 = vld [vmem:[#allocation17 + $0x1b8] sm:$0xff]
    %v1593 = vld [vmem:[#allocation17 + $0x1c0] sm:$0xff]
    %v1594 = vld [vmem:[#allocation17 + $0x1c8] sm:$0xff]
    %v1595 = vld [vmem:[#allocation17 + $0x1d0] sm:$0xff]
    %v1596 = vld [vmem:[#allocation17 + $0x1d8] sm:$0xff]
    %v1597 = vld [vmem:[#allocation17 + $0x1e0] sm:$0xff]
    %v1598 = vld [vmem:[#allocation17 + $0x1e8] sm:$0xff]
    %v1599 = vld [vmem:[#allocation17 + $0x1f0] sm:$0xff]
    %v1600 = vld [vmem:[#allocation17 + $0x1f8] sm:$0xff]
    %v1601 = vld [vmem:[#allocation17 + $0x200] sm:$0xff]
    %v1602 = vld [vmem:[#allocation17 + $0x208] sm:$0xff]
    %v1603 = vld [vmem:[#allocation17 + $0x210] sm:$0xff]
    %v1604 = vld [vmem:[#allocation17 + $0x218] sm:$0xff]
    %v1605 = vld [vmem:[#allocation17 + $0x220] sm:$0xff]
    %v1606 = vld [vmem:[#allocation17 + $0x228] sm:$0xff]
    %v1607 = vld [vmem:[#allocation17 + $0x230] sm:$0xff]
    %v1608 = vld [vmem:[#allocation17 + $0x238] sm:$0xff]
    %v1609 = vld [vmem:[#allocation17 + $0x240] sm:$0xff]
    %v1610 = vld [vmem:[#allocation17 + $0x248] sm:$0xff]
    %v1611 = vld [vmem:[#allocation17 + $0x250] sm:$0xff]
    %v1612 = vld [vmem:[#allocation17 + $0x258] sm:$0xff]
    %v1613 = vld [vmem:[#allocation17 + $0x260] sm:$0xff]
    %v1614 = vld [vmem:[#allocation17 + $0x268] sm:$0xff]
    %v1615 = vld [vmem:[#allocation17 + $0x270] sm:$0xff]
    %v1616 = vld [vmem:[#allocation17 + $0x278] sm:$0xff]
    %v1617 = vld [vmem:[#allocation17 + $0x280] sm:$0xff]
    %v1618 = vld [vmem:[#allocation17 + $0x288] sm:$0xff]
    %v1619 = vld [vmem:[#allocation17 + $0x290] sm:$0xff]
    %v1620 = vld [vmem:[#allocation17 + $0x298] sm:$0xff]
    %v1621 = vld [vmem:[#allocation17 + $0x2a0] sm:$0xff]
    %v1622 = vld [vmem:[#allocation17 + $0x2a8] sm:$0xff]
    %v1623 = vld [vmem:[#allocation17 + $0x2b0] sm:$0xff]
    %v1624 = vld [vmem:[#allocation17 + $0x2b8] sm:$0xff]
    %v1625 = vld [vmem:[#allocation17 + $0x2c0] sm:$0xff]
    %v1626 = vld [vmem:[#allocation17 + $0x2c8] sm:$0xff]
    %v1627 = vld [vmem:[#allocation17 + $0x2d0] sm:$0xff]
    %v1628 = vld [vmem:[#allocation17 + $0x2d8] sm:$0xff]
    %v1629 = vld [vmem:[#allocation17 + $0x2e0] sm:$0xff]
    %v1630 = vld [vmem:[#allocation17 + $0x2e8] sm:$0xff]
    %v1631 = vld [vmem:[#allocation17 + $0x2f0] sm:$0xff]
    %v1632 = vld [vmem:[#allocation17 + $0x2f8] sm:$0xff]
    %v1633 = vld [vmem:[%s10] sm:$0x3]
    %v1635 = vperm.slane %v1633, 0
    %v1636 = vperm.slane %v1633, 1
    %v1687 = vunpack.c.l.b16 %v1489
    %v1688 = vunpack.c.h.b16 %v1489
    %v1689 = vunpack.c.l.b16 %v1490
    %v1690 = vunpack.c.h.b16 %v1490
    %v1691 = vunpack.c.l.b16 %v1491
    %v1692 = vunpack.c.h.b16 %v1491
    %v1693 = vunpack.c.l.b16 %v1492
    %v1694 = vunpack.c.h.b16 %v1492
    %v1695 = vunpack.c.l.b16 %v1493
    %v1696 = vunpack.c.h.b16 %v1493
    %v1697 = vunpack.c.l.b16 %v1494
    %v1698 = vunpack.c.h.b16 %v1494
    %v1699 = vunpack.c.l.b16 %v1495
    %v1700 = vunpack.c.h.b16 %v1495
    %v1701 = vunpack.c.l.b16 %v1496
    %v1702 = vunpack.c.h.b16 %v1496
    %v1703 = vunpack.c.l.b16 %v1497
    %v1704 = vunpack.c.h.b16 %v1497
    %v1705 = vunpack.c.l.b16 %v1498
    %v1706 = vunpack.c.h.b16 %v1498
    %v1707 = vunpack.c.l.b16 %v1499
    %v1708 = vunpack.c.h.b16 %v1499
    %v1709 = vunpack.c.l.b16 %v1500
    %v1710 = vunpack.c.h.b16 %v1500
    %v1711 = vunpack.c.l.b16 %v1501
    %v1712 = vunpack.c.h.b16 %v1501
    %v1713 = vunpack.c.l.b16 %v1502
    %v1714 = vunpack.c.h.b16 %v1502
    %v1715 = vunpack.c.l.b16 %v1503
    %v1716 = vunpack.c.h.b16 %v1503
    %v1717 = vunpack.c.l.b16 %v1504
    %v1718 = vunpack.c.h.b16 %v1504
    %v1719 = vunpack.c.l.b16 %v1505
    %v1720 = vunpack.c.h.b16 %v1505
    %v1721 = vunpack.c.l.b16 %v1506
    %v1722 = vunpack.c.h.b16 %v1506
    %v1723 = vunpack.c.l.b16 %v1507
    %v1724 = vunpack.c.h.b16 %v1507
    %v1725 = vunpack.c.l.b16 %v1508
    %v1726 = vunpack.c.h.b16 %v1508
    %v1727 = vunpack.c.l.b16 %v1509
    %v1728 = vunpack.c.h.b16 %v1509
    %v1729 = vunpack.c.l.b16 %v1510
    %v1730 = vunpack.c.h.b16 %v1510
    %v1731 = vunpack.c.l.b16 %v1511
    %v1732 = vunpack.c.h.b16 %v1511
    %v1733 = vunpack.c.l.b16 %v1512
    %v1734 = vunpack.c.h.b16 %v1512
    %v1735 = vunpack.c.l.b16 %v1513
    %v1736 = vunpack.c.h.b16 %v1513
    %v1737 = vunpack.c.l.b16 %v1514
    %v1738 = vunpack.c.h.b16 %v1514
    %v1739 = vunpack.c.l.b16 %v1515
    %v1740 = vunpack.c.h.b16 %v1515
    %v1741 = vunpack.c.l.b16 %v1516
    %v1742 = vunpack.c.h.b16 %v1516
    %v1743 = vunpack.c.l.b16 %v1517
    %v1744 = vunpack.c.h.b16 %v1517
    %v1745 = vunpack.c.l.b16 %v1518
    %v1746 = vunpack.c.h.b16 %v1518
    %v1747 = vunpack.c.l.b16 %v1519
    %v1748 = vunpack.c.h.b16 %v1519
    %v1749 = vunpack.c.l.b16 %v1520
    %v1750 = vunpack.c.h.b16 %v1520
    %v1751 = vunpack.c.l.b16 %v1521
    %v1752 = vunpack.c.h.b16 %v1521
    %v1753 = vunpack.c.l.b16 %v1522
    %v1754 = vunpack.c.h.b16 %v1522
    %v1755 = vunpack.c.l.b16 %v1523
    %v1756 = vunpack.c.h.b16 %v1523
    %v1757 = vunpack.c.l.b16 %v1524
    %v1758 = vunpack.c.h.b16 %v1524
    %v1759 = vunpack.c.l.b16 %v1525
    %v1760 = vunpack.c.h.b16 %v1525
    %v1761 = vunpack.c.l.b16 %v1526
    %v1762 = vunpack.c.h.b16 %v1526
    %v1763 = vunpack.c.l.b16 %v1527
    %v1764 = vunpack.c.h.b16 %v1527
    %v1765 = vunpack.c.l.b16 %v1528
    %v1766 = vunpack.c.h.b16 %v1528
    %v1767 = vunpack.c.l.b16 %v1529
    %v1768 = vunpack.c.h.b16 %v1529
    %v1769 = vunpack.c.l.b16 %v1530
    %v1770 = vunpack.c.h.b16 %v1530
    %v1771 = vunpack.c.l.b16 %v1531
    %v1772 = vunpack.c.h.b16 %v1531
    %v1773 = vunpack.c.l.b16 %v1532
    %v1774 = vunpack.c.h.b16 %v1532
    %v1775 = vunpack.c.l.b16 %v1533
    %v1776 = vunpack.c.h.b16 %v1533
    %v1777 = vunpack.c.l.b16 %v1534
    %v1778 = vunpack.c.h.b16 %v1534
    %v1779 = vunpack.c.l.b16 %v1535
    %v1780 = vunpack.c.h.b16 %v1535
    %v1781 = vunpack.c.l.b16 %v1536
    %v1782 = vunpack.c.h.b16 %v1536
    %v1783 = vpack.c.b16 %v1693, %v1687
    %v1784 = vpack.c.b16 %v1694, %v1688
    %v1785 = vpack.c.b16 %v1695, %v1689
    %v1786 = vpack.c.b16 %v1696, %v1690
    %v1787 = vpack.c.b16 %v1697, %v1691
    %v1788 = vpack.c.b16 %v1698, %v1692
    %v1789 = vpack.c.b16 %v1705, %v1699
    %v1790 = vpack.c.b16 %v1706, %v1700
    %v1791 = vpack.c.b16 %v1707, %v1701
    %v1792 = vpack.c.b16 %v1708, %v1702
    %v1793 = vpack.c.b16 %v1709, %v1703
    %v1794 = vpack.c.b16 %v1710, %v1704
    %v1795 = vpack.c.b16 %v1717, %v1711
    %v1796 = vpack.c.b16 %v1718, %v1712
    %v1797 = vpack.c.b16 %v1719, %v1713
    %v1798 = vpack.c.b16 %v1720, %v1714
    %v1799 = vpack.c.b16 %v1721, %v1715
    %v1800 = vpack.c.b16 %v1722, %v1716
    %v1801 = vpack.c.b16 %v1729, %v1723
    %v1802 = vpack.c.b16 %v1730, %v1724
    %v1803 = vpack.c.b16 %v1731, %v1725
    %v1804 = vpack.c.b16 %v1732, %v1726
    %v1805 = vpack.c.b16 %v1733, %v1727
    %v1806 = vpack.c.b16 %v1734, %v1728
    %v1807 = vpack.c.b16 %v1741, %v1735
    %v1808 = vpack.c.b16 %v1742, %v1736
    %v1809 = vpack.c.b16 %v1743, %v1737
    %v1810 = vpack.c.b16 %v1744, %v1738
    %v1811 = vpack.c.b16 %v1745, %v1739
    %v1812 = vpack.c.b16 %v1746, %v1740
    %v1813 = vpack.c.b16 %v1753, %v1747
    %v1814 = vpack.c.b16 %v1754, %v1748
    %v1815 = vpack.c.b16 %v1755, %v1749
    %v1816 = vpack.c.b16 %v1756, %v1750
    %v1817 = vpack.c.b16 %v1757, %v1751
    %v1818 = vpack.c.b16 %v1758, %v1752
    %v1819 = vpack.c.b16 %v1765, %v1759
    %v1820 = vpack.c.b16 %v1766, %v1760
    %v1821 = vpack.c.b16 %v1767, %v1761
    %v1822 = vpack.c.b16 %v1768, %v1762
    %v1823 = vpack.c.b16 %v1769, %v1763
    %v1824 = vpack.c.b16 %v1770, %v1764
    %v1825 = vpack.c.b16 %v1777, %v1771
    %v1826 = vpack.c.b16 %v1778, %v1772
    %v1827 = vpack.c.b16 %v1779, %v1773
    %v1828 = vpack.c.b16 %v1780, %v1774
    %v1829 = vpack.c.b16 %v1781, %v1775
    %v1830 = vpack.c.b16 %v1782, %v1776
    %v1975 = vunpack.c.l.b16 %v1537
    %v1976 = vunpack.c.h.b16 %v1537
    %v1977 = vunpack.c.l.b16 %v1538
    %v1978 = vunpack.c.h.b16 %v1538
    %v1979 = vunpack.c.l.b16 %v1539
    %v1980 = vunpack.c.h.b16 %v1539
    %v1981 = vunpack.c.l.b16 %v1540
    %v1982 = vunpack.c.h.b16 %v1540
    %v1983 = vunpack.c.l.b16 %v1541
    %v1984 = vunpack.c.h.b16 %v1541
    %v1985 = vunpack.c.l.b16 %v1542
    %v1986 = vunpack.c.h.b16 %v1542
    %v1987 = vunpack.c.l.b16 %v1543
    %v1988 = vunpack.c.h.b16 %v1543
    %v1989 = vunpack.c.l.b16 %v1544
    %v1990 = vunpack.c.h.b16 %v1544
    %v1991 = vunpack.c.l.b16 %v1545
    %v1992 = vunpack.c.h.b16 %v1545
    %v1993 = vunpack.c.l.b16 %v1546
    %v1994 = vunpack.c.h.b16 %v1546
    %v1995 = vunpack.c.l.b16 %v1547
    %v1996 = vunpack.c.h.b16 %v1547
    %v1997 = vunpack.c.l.b16 %v1548
    %v1998 = vunpack.c.h.b16 %v1548
    %v1999 = vunpack.c.l.b16 %v1549
    %v2000 = vunpack.c.h.b16 %v1549
    %v2001 = vunpack.c.l.b16 %v1550
    %v2002 = vunpack.c.h.b16 %v1550
    %v2003 = vunpack.c.l.b16 %v1551
    %v2004 = vunpack.c.h.b16 %v1551
    %v2005 = vunpack.c.l.b16 %v1552
    %v2006 = vunpack.c.h.b16 %v1552
    %v2007 = vunpack.c.l.b16 %v1553
    %v2008 = vunpack.c.h.b16 %v1553
    %v2009 = vunpack.c.l.b16 %v1554
    %v2010 = vunpack.c.h.b16 %v1554
    %v2011 = vunpack.c.l.b16 %v1555
    %v2012 = vunpack.c.h.b16 %v1555
    %v2013 = vunpack.c.l.b16 %v1556
    %v2014 = vunpack.c.h.b16 %v1556
    %v2015 = vunpack.c.l.b16 %v1557
    %v2016 = vunpack.c.h.b16 %v1557
    %v2017 = vunpack.c.l.b16 %v1558
    %v2018 = vunpack.c.h.b16 %v1558
    %v2019 = vunpack.c.l.b16 %v1559
    %v2020 = vunpack.c.h.b16 %v1559
    %v2021 = vunpack.c.l.b16 %v1560
    %v2022 = vunpack.c.h.b16 %v1560
    %v2023 = vunpack.c.l.b16 %v1561
    %v2024 = vunpack.c.h.b16 %v1561
    %v2025 = vunpack.c.l.b16 %v1562
    %v2026 = vunpack.c.h.b16 %v1562
    %v2027 = vunpack.c.l.b16 %v1563
    %v2028 = vunpack.c.h.b16 %v1563
    %v2029 = vunpack.c.l.b16 %v1564
    %v2030 = vunpack.c.h.b16 %v1564
    %v2031 = vunpack.c.l.b16 %v1565
    %v2032 = vunpack.c.h.b16 %v1565
    %v2033 = vunpack.c.l.b16 %v1566
    %v2034 = vunpack.c.h.b16 %v1566
    %v2035 = vunpack.c.l.b16 %v1567
    %v2036 = vunpack.c.h.b16 %v1567
    %v2037 = vunpack.c.l.b16 %v1568
    %v2038 = vunpack.c.h.b16 %v1568
    %v2039 = vunpack.c.l.b16 %v1569
    %v2040 = vunpack.c.h.b16 %v1569
    %v2041 = vunpack.c.l.b16 %v1570
    %v2042 = vunpack.c.h.b16 %v1570
    %v2043 = vunpack.c.l.b16 %v1571
    %v2044 = vunpack.c.h.b16 %v1571
    %v2045 = vunpack.c.l.b16 %v1572
    %v2046 = vunpack.c.h.b16 %v1572
    %v2047 = vunpack.c.l.b16 %v1573
    %v2048 = vunpack.c.h.b16 %v1573
    %v2049 = vunpack.c.l.b16 %v1574
    %v2050 = vunpack.c.h.b16 %v1574
    %v2051 = vunpack.c.l.b16 %v1575
    %v2052 = vunpack.c.h.b16 %v1575
    %v2053 = vunpack.c.l.b16 %v1576
    %v2054 = vunpack.c.h.b16 %v1576
    %v2055 = vunpack.c.l.b16 %v1577
    %v2056 = vunpack.c.h.b16 %v1577
    %v2057 = vunpack.c.l.b16 %v1578
    %v2058 = vunpack.c.h.b16 %v1578
    %v2059 = vunpack.c.l.b16 %v1579
    %v2060 = vunpack.c.h.b16 %v1579
    %v2061 = vunpack.c.l.b16 %v1580
    %v2062 = vunpack.c.h.b16 %v1580
    %v2063 = vunpack.c.l.b16 %v1581
    %v2064 = vunpack.c.h.b16 %v1581
    %v2065 = vunpack.c.l.b16 %v1582
    %v2066 = vunpack.c.h.b16 %v1582
    %v2067 = vunpack.c.l.b16 %v1583
    %v2068 = vunpack.c.h.b16 %v1583
    %v2069 = vunpack.c.l.b16 %v1584
    %v2070 = vunpack.c.h.b16 %v1584
    %v2071 = vunpack.c.l.b16 %v1585
    %v2072 = vunpack.c.h.b16 %v1585
    %v2073 = vunpack.c.l.b16 %v1586
    %v2074 = vunpack.c.h.b16 %v1586
    %v2075 = vunpack.c.l.b16 %v1587
    %v2076 = vunpack.c.h.b16 %v1587
    %v2077 = vunpack.c.l.b16 %v1588
    %v2078 = vunpack.c.h.b16 %v1588
    %v2079 = vunpack.c.l.b16 %v1589
    %v2080 = vunpack.c.h.b16 %v1589
    %v2081 = vunpack.c.l.b16 %v1590
    %v2082 = vunpack.c.h.b16 %v1590
    %v2083 = vunpack.c.l.b16 %v1591
    %v2084 = vunpack.c.h.b16 %v1591
    %v2085 = vunpack.c.l.b16 %v1592
    %v2086 = vunpack.c.h.b16 %v1592
    %v2087 = vunpack.c.l.b16 %v1593
    %v2088 = vunpack.c.h.b16 %v1593
    %v2089 = vunpack.c.l.b16 %v1594
    %v2090 = vunpack.c.h.b16 %v1594
    %v2091 = vunpack.c.l.b16 %v1595
    %v2092 = vunpack.c.h.b16 %v1595
    %v2093 = vunpack.c.l.b16 %v1596
    %v2094 = vunpack.c.h.b16 %v1596
    %v2095 = vunpack.c.l.b16 %v1597
    %v2096 = vunpack.c.h.b16 %v1597
    %v2097 = vunpack.c.l.b16 %v1598
    %v2098 = vunpack.c.h.b16 %v1598
    %v2099 = vunpack.c.l.b16 %v1599
    %v2100 = vunpack.c.h.b16 %v1599
    %v2101 = vunpack.c.l.b16 %v1600
    %v2102 = vunpack.c.h.b16 %v1600
    %v2103 = vunpack.c.l.b16 %v1601
    %v2104 = vunpack.c.h.b16 %v1601
    %v2105 = vunpack.c.l.b16 %v1602
    %v2106 = vunpack.c.h.b16 %v1602
    %v2107 = vunpack.c.l.b16 %v1603
    %v2108 = vunpack.c.h.b16 %v1603
    %v2109 = vunpack.c.l.b16 %v1604
    %v2110 = vunpack.c.h.b16 %v1604
    %v2111 = vunpack.c.l.b16 %v1605
    %v2112 = vunpack.c.h.b16 %v1605
    %v2113 = vunpack.c.l.b16 %v1606
    %v2114 = vunpack.c.h.b16 %v1606
    %v2115 = vunpack.c.l.b16 %v1607
    %v2116 = vunpack.c.h.b16 %v1607
    %v2117 = vunpack.c.l.b16 %v1608
    %v2118 = vunpack.c.h.b16 %v1608
    %v2119 = vunpack.c.l.b16 %v1609
    %v2120 = vunpack.c.h.b16 %v1609
    %v2121 = vunpack.c.l.b16 %v1610
    %v2122 = vunpack.c.h.b16 %v1610
    %v2123 = vunpack.c.l.b16 %v1611
    %v2124 = vunpack.c.h.b16 %v1611
    %v2125 = vunpack.c.l.b16 %v1612
    %v2126 = vunpack.c.h.b16 %v1612
    %v2127 = vunpack.c.l.b16 %v1613
    %v2128 = vunpack.c.h.b16 %v1613
    %v2129 = vunpack.c.l.b16 %v1614
    %v2130 = vunpack.c.h.b16 %v1614
    %v2131 = vunpack.c.l.b16 %v1615
    %v2132 = vunpack.c.h.b16 %v1615
    %v2133 = vunpack.c.l.b16 %v1616
    %v2134 = vunpack.c.h.b16 %v1616
    %v2135 = vunpack.c.l.b16 %v1617
    %v2136 = vunpack.c.h.b16 %v1617
    %v2137 = vunpack.c.l.b16 %v1618
    %v2138 = vunpack.c.h.b16 %v1618
    %v2139 = vunpack.c.l.b16 %v1619
    %v2140 = vunpack.c.h.b16 %v1619
    %v2141 = vunpack.c.l.b16 %v1620
    %v2142 = vunpack.c.h.b16 %v1620
    %v2143 = vunpack.c.l.b16 %v1621
    %v2144 = vunpack.c.h.b16 %v1621
    %v2145 = vunpack.c.l.b16 %v1622
    %v2146 = vunpack.c.h.b16 %v1622
    %v2147 = vunpack.c.l.b16 %v1623
    %v2148 = vunpack.c.h.b16 %v1623
    %v2149 = vunpack.c.l.b16 %v1624
    %v2150 = vunpack.c.h.b16 %v1624
    %v2151 = vunpack.c.l.b16 %v1625
    %v2152 = vunpack.c.h.b16 %v1625
    %v2153 = vunpack.c.l.b16 %v1626
    %v2154 = vunpack.c.h.b16 %v1626
    %v2155 = vunpack.c.l.b16 %v1627
    %v2156 = vunpack.c.h.b16 %v1627
    %v2157 = vunpack.c.l.b16 %v1628
    %v2158 = vunpack.c.h.b16 %v1628
    %v2159 = vunpack.c.l.b16 %v1629
    %v2160 = vunpack.c.h.b16 %v1629
    %v2161 = vunpack.c.l.b16 %v1630
    %v2162 = vunpack.c.h.b16 %v1630
    %v2163 = vunpack.c.l.b16 %v1631
    %v2164 = vunpack.c.h.b16 %v1631
    %v2165 = vunpack.c.l.b16 %v1632
    %v2166 = vunpack.c.h.b16 %v1632
    %v2167 = vpack.c.b16 %v1977, %v1975
    %v2168 = vpack.c.b16 %v1978, %v1976
    %v2169 = vpack.c.b16 %v1981, %v1979
    %v2170 = vpack.c.b16 %v1982, %v1980
    %v2171 = vpack.c.b16 %v1985, %v1983
    %v2172 = vpack.c.b16 %v1986, %v1984
    %v2173 = vpack.c.b16 %v1989, %v1987
    %v2174 = vpack.c.b16 %v1990, %v1988
    %v2175 = vpack.c.b16 %v1993, %v1991
    %v2176 = vpack.c.b16 %v1994, %v1992
    %v2177 = vpack.c.b16 %v1997, %v1995
    %v2178 = vpack.c.b16 %v1998, %v1996
    %v2179 = vpack.c.b16 %v2001, %v1999
    %v2180 = vpack.c.b16 %v2002, %v2000
    %v2181 = vpack.c.b16 %v2005, %v2003
    %v2182 = vpack.c.b16 %v2006, %v2004
    %v2183 = vpack.c.b16 %v2009, %v2007
    %v2184 = vpack.c.b16 %v2010, %v2008
    %v2185 = vpack.c.b16 %v2013, %v2011
    %v2186 = vpack.c.b16 %v2014, %v2012
    %v2187 = vpack.c.b16 %v2017, %v2015
    %v2188 = vpack.c.b16 %v2018, %v2016
    %v2189 = vpack.c.b16 %v2021, %v2019
    %v2190 = vpack.c.b16 %v2022, %v2020
    %v2191 = vpack.c.b16 %v2025, %v2023
    %v2192 = vpack.c.b16 %v2026, %v2024
    %v2193 = vpack.c.b16 %v2029, %v2027
    %v2194 = vpack.c.b16 %v2030, %v2028
    %v2195 = vpack.c.b16 %v2033, %v2031
    %v2196 = vpack.c.b16 %v2034, %v2032
    %v2197 = vpack.c.b16 %v2037, %v2035
    %v2198 = vpack.c.b16 %v2038, %v2036
    %v2199 = vpack.c.b16 %v2041, %v2039
    %v2200 = vpack.c.b16 %v2042, %v2040
    %v2201 = vpack.c.b16 %v2045, %v2043
    %v2202 = vpack.c.b16 %v2046, %v2044
    %v2203 = vpack.c.b16 %v2049, %v2047
    %v2204 = vpack.c.b16 %v2050, %v2048
    %v2205 = vpack.c.b16 %v2053, %v2051
    %v2206 = vpack.c.b16 %v2054, %v2052
    %v2207 = vpack.c.b16 %v2057, %v2055
    %v2208 = vpack.c.b16 %v2058, %v2056
    %v2209 = vpack.c.b16 %v2061, %v2059
    %v2210 = vpack.c.b16 %v2062, %v2060
    %v2211 = vpack.c.b16 %v2065, %v2063
    %v2212 = vpack.c.b16 %v2066, %v2064
    %v2213 = vpack.c.b16 %v2069, %v2067
    %v2214 = vpack.c.b16 %v2070, %v2068
    %v2215 = vpack.c.b16 %v2073, %v2071
    %v2216 = vpack.c.b16 %v2074, %v2072
    %v2217 = vpack.c.b16 %v2077, %v2075
    %v2218 = vpack.c.b16 %v2078, %v2076
    %v2219 = vpack.c.b16 %v2081, %v2079
    %v2220 = vpack.c.b16 %v2082, %v2080
    %v2221 = vpack.c.b16 %v2085, %v2083
    %v2222 = vpack.c.b16 %v2086, %v2084
    %v2223 = vpack.c.b16 %v2089, %v2087
    %v2224 = vpack.c.b16 %v2090, %v2088
    %v2225 = vpack.c.b16 %v2093, %v2091
    %v2226 = vpack.c.b16 %v2094, %v2092
    %v2227 = vpack.c.b16 %v2097, %v2095
    %v2228 = vpack.c.b16 %v2098, %v2096
    %v2229 = vpack.c.b16 %v2101, %v2099
    %v2230 = vpack.c.b16 %v2102, %v2100
    %v2231 = vpack.c.b16 %v2105, %v2103
    %v2232 = vpack.c.b16 %v2106, %v2104
    %v2233 = vpack.c.b16 %v2109, %v2107
    %v2234 = vpack.c.b16 %v2110, %v2108
    %v2235 = vpack.c.b16 %v2113, %v2111
    %v2236 = vpack.c.b16 %v2114, %v2112
    %v2237 = vpack.c.b16 %v2117, %v2115
    %v2238 = vpack.c.b16 %v2118, %v2116
    %v2239 = vpack.c.b16 %v2121, %v2119
    %v2240 = vpack.c.b16 %v2122, %v2120
    %v2241 = vpack.c.b16 %v2125, %v2123
    %v2242 = vpack.c.b16 %v2126, %v2124
    %v2243 = vpack.c.b16 %v2129, %v2127
    %v2244 = vpack.c.b16 %v2130, %v2128
    %v2245 = vpack.c.b16 %v2133, %v2131
    %v2246 = vpack.c.b16 %v2134, %v2132
    %v2247 = vpack.c.b16 %v2137, %v2135
    %v2248 = vpack.c.b16 %v2138, %v2136
    %v2249 = vpack.c.b16 %v2141, %v2139
    %v2250 = vpack.c.b16 %v2142, %v2140
    %v2251 = vpack.c.b16 %v2145, %v2143
    %v2252 = vpack.c.b16 %v2146, %v2144
    %v2253 = vpack.c.b16 %v2149, %v2147
    %v2254 = vpack.c.b16 %v2150, %v2148
    %v2255 = vpack.c.b16 %v2153, %v2151
    %v2256 = vpack.c.b16 %v2154, %v2152
    %v2257 = vpack.c.b16 %v2157, %v2155
    %v2258 = vpack.c.b16 %v2158, %v2156
    %v2259 = vpack.c.b16 %v2161, %v2159
    %v2260 = vpack.c.b16 %v2162, %v2160
    %v2261 = vpack.c.b16 %v2165, %v2163
    %v2262 = vpack.c.b16 %v2166, %v2164
    %2359 = vmatpush.bf16.msra.mxu0 %v2181
    %2360 = vmatpush.bf16.msra.mxu0 %v2179
    %2361 = vmatpush.bf16.msra.mxu0 %v2177
    %2362 = vmatpush.bf16.msra.mxu0 %v2175
    %2363 = vmatpush.bf16.msra.mxu0 %v2173
    %2364 = vmatpush.bf16.msra.mxu0 %v2171
    %2365 = vmatpush.bf16.msra.mxu0 %v2169
    %2366 = vmatpush.bf16.msra.mxu0 %v2167
    %2367 = vmatmul.bf16.gmra.mxu0 %v1783
    %v2368 = vpop.f32.mrf.mxu0
    %v2369 = vadd.f32 %v1635, %v2368
    %v2370 = vpop.f32.mrf.mxu0
    %v2371 = vadd.f32 %v1635, %v2370
    %2372 = vmatmul.bf16.gmra.mxu0 %v1789
    %v2373 = vpop.f32.mrf.mxu0
    %v2374 = vadd.f32 %v1635, %v2373
    %v2375 = vpop.f32.mrf.mxu0
    %v2376 = vadd.f32 %v1635, %v2375
    %2377 = vmatmul.bf16.gmra.mxu0 %v1795
    %v2378 = vpop.f32.mrf.mxu0
    %v2379 = vadd.f32 %v1635, %v2378
    %v2380 = vpop.f32.mrf.mxu0
    %v2381 = vadd.f32 %v1635, %v2380
    %2382 = vmatmul.bf16.gmra.mxu0 %v1801
    %v2383 = vpop.f32.mrf.mxu0
    %v2384 = vadd.f32 %v1635, %v2383
    %v2385 = vpop.f32.mrf.mxu0
    %v2386 = vadd.f32 %v1635, %v2385
    %2387 = vmatmul.bf16.gmra.mxu0 %v1807
    %v2388 = vpop.f32.mrf.mxu0
    %v2389 = vadd.f32 %v1635, %v2388
    %v2390 = vpop.f32.mrf.mxu0
    %v2391 = vadd.f32 %v1635, %v2390
    %2392 = vmatmul.bf16.gmra.mxu0 %v1813
    %v2393 = vpop.f32.mrf.mxu0
    %v2394 = vadd.f32 %v1635, %v2393
    %v2395 = vpop.f32.mrf.mxu0
    %v2396 = vadd.f32 %v1635, %v2395
    %2397 = vmatmul.bf16.gmra.mxu0 %v1819
    %v2398 = vpop.f32.mrf.mxu0
    %v2399 = vadd.f32 %v1635, %v2398
    %v2400 = vpop.f32.mrf.mxu0
    %v2401 = vadd.f32 %v1635, %v2400
    %2402 = vmatmul.bf16.gmra.mxu0 %v1825
    %v2403 = vpop.f32.mrf.mxu0
    %v2404 = vadd.f32 %v1635, %v2403
    %v2405 = vpop.f32.mrf.mxu0
    %v2406 = vadd.f32 %v1635, %v2405
    %2407 = vdwg.mxu0
    %2408 = vmatpush.bf16.msra.mxu0 %v2197
    %2409 = vmatpush.bf16.msra.mxu0 %v2195
    %2410 = vmatpush.bf16.msra.mxu0 %v2193
    %2411 = vmatpush.bf16.msra.mxu0 %v2191
    %2412 = vmatpush.bf16.msra.mxu0 %v2189
    %2413 = vmatpush.bf16.msra.mxu0 %v2187
    %2414 = vmatpush.bf16.msra.mxu0 %v2185
    %2415 = vmatpush.bf16.msra.mxu0 %v2183
    %2416 = vmatmul.bf16.gmra.mxu0 %v1784
    %v2417 = vpop.f32.mrf.mxu0
    %v2418 = vadd.f32 %v2369, %v2417
    %v2419 = vpop.f32.mrf.mxu0
    %v2420 = vadd.f32 %v2371, %v2419
    %2421 = vmatmul.bf16.gmra.mxu0 %v1790
    %v2422 = vpop.f32.mrf.mxu0
    %v2423 = vadd.f32 %v2374, %v2422
    %v2424 = vpop.f32.mrf.mxu0
    %v2425 = vadd.f32 %v2376, %v2424
    %2426 = vmatmul.bf16.gmra.mxu0 %v1796
    %v2427 = vpop.f32.mrf.mxu0
    %v2428 = vadd.f32 %v2379, %v2427
    %v2429 = vpop.f32.mrf.mxu0
    %v2430 = vadd.f32 %v2381, %v2429
    %2431 = vmatmul.bf16.gmra.mxu0 %v1802
    %v2432 = vpop.f32.mrf.mxu0
    %v2433 = vadd.f32 %v2384, %v2432
    %v2434 = vpop.f32.mrf.mxu0
    %v2435 = vadd.f32 %v2386, %v2434
    %2436 = vmatmul.bf16.gmra.mxu0 %v1808
    %v2437 = vpop.f32.mrf.mxu0
    %v2438 = vadd.f32 %v2389, %v2437
    %v2439 = vpop.f32.mrf.mxu0
    %v2440 = vadd.f32 %v2391, %v2439
    %2441 = vmatmul.bf16.gmra.mxu0 %v1814
    %v2442 = vpop.f32.mrf.mxu0
    %v2443 = vadd.f32 %v2394, %v2442
    %v2444 = vpop.f32.mrf.mxu0
    %v2445 = vadd.f32 %v2396, %v2444
    %2446 = vmatmul.bf16.gmra.mxu0 %v1820
    %v2447 = vpop.f32.mrf.mxu0
    %v2448 = vadd.f32 %v2399, %v2447
    %v2449 = vpop.f32.mrf.mxu0
    %v2450 = vadd.f32 %v2401, %v2449
    %2451 = vmatmul.bf16.gmra.mxu0 %v1826
    %v2452 = vpop.f32.mrf.mxu0
    %v2453 = vadd.f32 %v2404, %v2452
    %v2454 = vpop.f32.mrf.mxu0
    %v2455 = vadd.f32 %v2406, %v2454
    %2456 = vdwg.mxu0
    %2457 = vmatpush.bf16.msra.mxu0 %v2213
    %2458 = vmatpush.bf16.msra.mxu0 %v2211
    %2459 = vmatpush.bf16.msra.mxu0 %v2209
    %2460 = vmatpush.bf16.msra.mxu0 %v2207
    %2461 = vmatpush.bf16.msra.mxu0 %v2205
    %2462 = vmatpush.bf16.msra.mxu0 %v2203
    %2463 = vmatpush.bf16.msra.mxu0 %v2201
    %2464 = vmatpush.bf16.msra.mxu0 %v2199
    %2465 = vmatmul.bf16.gmra.mxu0 %v1785
    %v2466 = vpop.f32.mrf.mxu0
    %v2467 = vadd.f32 %v2418, %v2466
    %v2468 = vpop.f32.mrf.mxu0
    %v2469 = vadd.f32 %v2420, %v2468
    %2470 = vmatmul.bf16.gmra.mxu0 %v1791
    %v2471 = vpop.f32.mrf.mxu0
    %v2472 = vadd.f32 %v2423, %v2471
    %v2473 = vpop.f32.mrf.mxu0
    %v2474 = vadd.f32 %v2425, %v2473
    %2475 = vmatmul.bf16.gmra.mxu0 %v1797
    %v2476 = vpop.f32.mrf.mxu0
    %v2477 = vadd.f32 %v2428, %v2476
    %v2478 = vpop.f32.mrf.mxu0
    %v2479 = vadd.f32 %v2430, %v2478
    %2480 = vmatmul.bf16.gmra.mxu0 %v1803
    %v2481 = vpop.f32.mrf.mxu0
    %v2482 = vadd.f32 %v2433, %v2481
    %v2483 = vpop.f32.mrf.mxu0
    %v2484 = vadd.f32 %v2435, %v2483
    %2485 = vmatmul.bf16.gmra.mxu0 %v1809
    %v2486 = vpop.f32.mrf.mxu0
    %v2487 = vadd.f32 %v2438, %v2486
    %v2488 = vpop.f32.mrf.mxu0
    %v2489 = vadd.f32 %v2440, %v2488
    %2490 = vmatmul.bf16.gmra.mxu0 %v1815
    %v2491 = vpop.f32.mrf.mxu0
    %v2492 = vadd.f32 %v2443, %v2491
    %v2493 = vpop.f32.mrf.mxu0
    %v2494 = vadd.f32 %v2445, %v2493
    %2495 = vmatmul.bf16.gmra.mxu0 %v1821
    %v2496 = vpop.f32.mrf.mxu0
    %v2497 = vadd.f32 %v2448, %v2496
    %v2498 = vpop.f32.mrf.mxu0
    %v2499 = vadd.f32 %v2450, %v2498
    %2500 = vmatmul.bf16.gmra.mxu0 %v1827
    %v2501 = vpop.f32.mrf.mxu0
    %v2502 = vadd.f32 %v2453, %v2501
    %v2503 = vpop.f32.mrf.mxu0
    %v2504 = vadd.f32 %v2455, %v2503
    %2505 = vdwg.mxu0
    %2506 = vmatpush.bf16.msra.mxu0 %v2229
    %2507 = vmatpush.bf16.msra.mxu0 %v2227
    %2508 = vmatpush.bf16.msra.mxu0 %v2225
    %2509 = vmatpush.bf16.msra.mxu0 %v2223
    %2510 = vmatpush.bf16.msra.mxu0 %v2221
    %2511 = vmatpush.bf16.msra.mxu0 %v2219
    %2512 = vmatpush.bf16.msra.mxu0 %v2217
    %2513 = vmatpush.bf16.msra.mxu0 %v2215
    %2514 = vmatmul.bf16.gmra.mxu0 %v1786
    %v2515 = vpop.f32.mrf.mxu0
    %v2516 = vadd.f32 %v2467, %v2515
    %v2517 = vpop.f32.mrf.mxu0
    %v2518 = vadd.f32 %v2469, %v2517
    %2519 = vmatmul.bf16.gmra.mxu0 %v1792
    %v2520 = vpop.f32.mrf.mxu0
    %v2521 = vadd.f32 %v2472, %v2520
    %v2522 = vpop.f32.mrf.mxu0
    %v2523 = vadd.f32 %v2474, %v2522
    %2524 = vmatmul.bf16.gmra.mxu0 %v1798
    %v2525 = vpop.f32.mrf.mxu0
    %v2526 = vadd.f32 %v2477, %v2525
    %v2527 = vpop.f32.mrf.mxu0
    %v2528 = vadd.f32 %v2479, %v2527
    %2529 = vmatmul.bf16.gmra.mxu0 %v1804
    %v2530 = vpop.f32.mrf.mxu0
    %v2531 = vadd.f32 %v2482, %v2530
    %v2532 = vpop.f32.mrf.mxu0
    %v2533 = vadd.f32 %v2484, %v2532
    %2534 = vmatmul.bf16.gmra.mxu0 %v1810
    %v2535 = vpop.f32.mrf.mxu0
    %v2536 = vadd.f32 %v2487, %v2535
    %v2537 = vpop.f32.mrf.mxu0
    %v2538 = vadd.f32 %v2489, %v2537
    %2539 = vmatmul.bf16.gmra.mxu0 %v1816
    %v2540 = vpop.f32.mrf.mxu0
    %v2541 = vadd.f32 %v2492, %v2540
    %v2542 = vpop.f32.mrf.mxu0
    %v2543 = vadd.f32 %v2494, %v2542
    %2544 = vmatmul.bf16.gmra.mxu0 %v1822
    %v2545 = vpop.f32.mrf.mxu0
    %v2546 = vadd.f32 %v2497, %v2545
    %v2547 = vpop.f32.mrf.mxu0
    %v2548 = vadd.f32 %v2499, %v2547
    %2549 = vmatmul.bf16.gmra.mxu0 %v1828
    %v2550 = vpop.f32.mrf.mxu0
    %v2551 = vadd.f32 %v2502, %v2550
    %v2552 = vpop.f32.mrf.mxu0
    %v2553 = vadd.f32 %v2504, %v2552
    %2554 = vdwg.mxu0
    %2555 = vmatpush.bf16.msra.mxu0 %v2245
    %2556 = vmatpush.bf16.msra.mxu0 %v2243
    %2557 = vmatpush.bf16.msra.mxu0 %v2241
    %2558 = vmatpush.bf16.msra.mxu0 %v2239
    %2559 = vmatpush.bf16.msra.mxu0 %v2237
    %2560 = vmatpush.bf16.msra.mxu0 %v2235
    %2561 = vmatpush.bf16.msra.mxu0 %v2233
    %2562 = vmatpush.bf16.msra.mxu0 %v2231
    %2563 = vmatmul.bf16.gmra.mxu0 %v1787
    %v2564 = vpop.f32.mrf.mxu0
    %v2565 = vadd.f32 %v2516, %v2564
    %v2566 = vpop.f32.mrf.mxu0
    %v2567 = vadd.f32 %v2518, %v2566
    %2568 = vmatmul.bf16.gmra.mxu0 %v1793
    %v2569 = vpop.f32.mrf.mxu0
    %v2570 = vadd.f32 %v2521, %v2569
    %v2571 = vpop.f32.mrf.mxu0
    %v2572 = vadd.f32 %v2523, %v2571
    %2573 = vmatmul.bf16.gmra.mxu0 %v1799
    %v2574 = vpop.f32.mrf.mxu0
    %v2575 = vadd.f32 %v2526, %v2574
    %v2576 = vpop.f32.mrf.mxu0
    %v2577 = vadd.f32 %v2528, %v2576
    %2578 = vmatmul.bf16.gmra.mxu0 %v1805
    %v2579 = vpop.f32.mrf.mxu0
    %v2580 = vadd.f32 %v2531, %v2579
    %v2581 = vpop.f32.mrf.mxu0
    %v2582 = vadd.f32 %v2533, %v2581
    %2583 = vmatmul.bf16.gmra.mxu0 %v1811
    %v2584 = vpop.f32.mrf.mxu0
    %v2585 = vadd.f32 %v2536, %v2584
    %v2586 = vpop.f32.mrf.mxu0
    %v2587 = vadd.f32 %v2538, %v2586
    %2588 = vmatmul.bf16.gmra.mxu0 %v1817
    %v2589 = vpop.f32.mrf.mxu0
    %v2590 = vadd.f32 %v2541, %v2589
    %v2591 = vpop.f32.mrf.mxu0
    %v2592 = vadd.f32 %v2543, %v2591
    %2593 = vmatmul.bf16.gmra.mxu0 %v1823
    %v2594 = vpop.f32.mrf.mxu0
    %v2595 = vadd.f32 %v2546, %v2594
    %v2596 = vpop.f32.mrf.mxu0
    %v2597 = vadd.f32 %v2548, %v2596
    %2598 = vmatmul.bf16.gmra.mxu0 %v1829
    %v2599 = vpop.f32.mrf.mxu0
    %v2600 = vadd.f32 %v2551, %v2599
    %v2601 = vpop.f32.mrf.mxu0
    %v2602 = vadd.f32 %v2553, %v2601
    %2603 = vdwg.mxu0
    %2604 = vmatpush.bf16.msra.mxu0 %v2261
    %2605 = vmatpush.bf16.msra.mxu0 %v2259
    %2606 = vmatpush.bf16.msra.mxu0 %v2257
    %2607 = vmatpush.bf16.msra.mxu0 %v2255
    %2608 = vmatpush.bf16.msra.mxu0 %v2253
    %2609 = vmatpush.bf16.msra.mxu0 %v2251
    %2610 = vmatpush.bf16.msra.mxu0 %v2249
    %2611 = vmatpush.bf16.msra.mxu0 %v2247
    %2612 = vmatmul.bf16.gmra.mxu0 %v1788
    %v2613 = vpop.f32.mrf.mxu0
    %v2614 = vadd.f32 %v2565, %v2613
    %v2615 = vpop.f32.mrf.mxu0
    %v2616 = vadd.f32 %v2567, %v2615
    %2617 = vmatmul.bf16.gmra.mxu0 %v1794
    %v2618 = vpop.f32.mrf.mxu0
    %v2619 = vadd.f32 %v2570, %v2618
    %v2620 = vpop.f32.mrf.mxu0
    %v2621 = vadd.f32 %v2572, %v2620
    %2622 = vmatmul.bf16.gmra.mxu0 %v1800
    %v2623 = vpop.f32.mrf.mxu0
    %v2624 = vadd.f32 %v2575, %v2623
    %v2625 = vpop.f32.mrf.mxu0
    %v2626 = vadd.f32 %v2577, %v2625
    %2627 = vmatmul.bf16.gmra.mxu0 %v1806
    %v2628 = vpop.f32.mrf.mxu0
    %v2629 = vadd.f32 %v2580, %v2628
    %v2630 = vpop.f32.mrf.mxu0
    %v2631 = vadd.f32 %v2582, %v2630
    %2632 = vmatmul.bf16.gmra.mxu0 %v1812
    %v2633 = vpop.f32.mrf.mxu0
    %v2634 = vadd.f32 %v2585, %v2633
    %v2635 = vpop.f32.mrf.mxu0
    %v2636 = vadd.f32 %v2587, %v2635
    %2637 = vmatmul.bf16.gmra.mxu0 %v1818
    %v2638 = vpop.f32.mrf.mxu0
    %v2639 = vadd.f32 %v2590, %v2638
    %v2640 = vpop.f32.mrf.mxu0
    %v2641 = vadd.f32 %v2592, %v2640
    %2642 = vmatmul.bf16.gmra.mxu0 %v1824
    %v2643 = vpop.f32.mrf.mxu0
    %v2644 = vadd.f32 %v2595, %v2643
    %v2645 = vpop.f32.mrf.mxu0
    %v2646 = vadd.f32 %v2597, %v2645
    %2647 = vmatmul.bf16.gmra.mxu0 %v1830
    %v2648 = vpop.f32.mrf.mxu0
    %v2649 = vadd.f32 %v2600, %v2648
    %v2650 = vpop.f32.mrf.mxu0
    %v2651 = vadd.f32 %v2602, %v2650
    %2652 = vdwg.mxu0
    %2653 = vmatpush.bf16.msra.mxu0 %v2182
    %2654 = vmatpush.bf16.msra.mxu0 %v2180
    %2655 = vmatpush.bf16.msra.mxu0 %v2178
    %2656 = vmatpush.bf16.msra.mxu0 %v2176
    %2657 = vmatpush.bf16.msra.mxu0 %v2174
    %2658 = vmatpush.bf16.msra.mxu0 %v2172
    %2659 = vmatpush.bf16.msra.mxu0 %v2170
    %2660 = vmatpush.bf16.msra.mxu0 %v2168
    %2661 = vmatmul.bf16.gmra.mxu0 %v1783
    %v2662 = vpop.f32.mrf.mxu0
    %v2663 = vadd.f32 %v1636, %v2662
    %v2664 = vpop.f32.mrf.mxu0
    %v2665 = vadd.f32 %v1636, %v2664
    %2666 = vmatmul.bf16.gmra.mxu0 %v1789
    %v2667 = vpop.f32.mrf.mxu0
    %v2668 = vadd.f32 %v1636, %v2667
    %v2669 = vpop.f32.mrf.mxu0
    %v2670 = vadd.f32 %v1636, %v2669
    %2671 = vmatmul.bf16.gmra.mxu0 %v1795
    %v2672 = vpop.f32.mrf.mxu0
    %v2673 = vadd.f32 %v1636, %v2672
    %v2674 = vpop.f32.mrf.mxu0
    %v2675 = vadd.f32 %v1636, %v2674
    %2676 = vmatmul.bf16.gmra.mxu0 %v1801
    %v2677 = vpop.f32.mrf.mxu0
    %v2678 = vadd.f32 %v1636, %v2677
    %v2679 = vpop.f32.mrf.mxu0
    %v2680 = vadd.f32 %v1636, %v2679
    %2681 = vmatmul.bf16.gmra.mxu0 %v1807
    %v2682 = vpop.f32.mrf.mxu0
    %v2683 = vadd.f32 %v1636, %v2682
    %v2684 = vpop.f32.mrf.mxu0
    %v2685 = vadd.f32 %v1636, %v2684
    %2686 = vmatmul.bf16.gmra.mxu0 %v1813
    %v2687 = vpop.f32.mrf.mxu0
    %v2688 = vadd.f32 %v1636, %v2687
    %v2689 = vpop.f32.mrf.mxu0
    %v2690 = vadd.f32 %v1636, %v2689
    %2691 = vmatmul.bf16.gmra.mxu0 %v1819
    %v2692 = vpop.f32.mrf.mxu0
    %v2693 = vadd.f32 %v1636, %v2692
    %v2694 = vpop.f32.mrf.mxu0
    %v2695 = vadd.f32 %v1636, %v2694
    %2696 = vmatmul.bf16.gmra.mxu0 %v1825
    %v2697 = vpop.f32.mrf.mxu0
    %v2698 = vadd.f32 %v1636, %v2697
    %v2699 = vpop.f32.mrf.mxu0
    %v2700 = vadd.f32 %v1636, %v2699
    %2701 = vdwg.mxu0
    %2702 = vmatpush.bf16.msra.mxu0 %v2198
    %2703 = vmatpush.bf16.msra.mxu0 %v2196
    %2704 = vmatpush.bf16.msra.mxu0 %v2194
    %2705 = vmatpush.bf16.msra.mxu0 %v2192
    %2706 = vmatpush.bf16.msra.mxu0 %v2190
    %2707 = vmatpush.bf16.msra.mxu0 %v2188
    %2708 = vmatpush.bf16.msra.mxu0 %v2186
    %2709 = vmatpush.bf16.msra.mxu0 %v2184
    %2710 = vmatmul.bf16.gmra.mxu0 %v1784
    %v2711 = vpop.f32.mrf.mxu0
    %v2712 = vadd.f32 %v2663, %v2711
    %v2713 = vpop.f32.mrf.mxu0
    %v2714 = vadd.f32 %v2665, %v2713
    %2715 = vmatmul.bf16.gmra.mxu0 %v1790
    %v2716 = vpop.f32.mrf.mxu0
    %v2717 = vadd.f32 %v2668, %v2716
    %v2718 = vpop.f32.mrf.mxu0
    %v2719 = vadd.f32 %v2670, %v2718
    %2720 = vmatmul.bf16.gmra.mxu0 %v1796
    %v2721 = vpop.f32.mrf.mxu0
    %v2722 = vadd.f32 %v2673, %v2721
    %v2723 = vpop.f32.mrf.mxu0
    %v2724 = vadd.f32 %v2675, %v2723
    %2725 = vmatmul.bf16.gmra.mxu0 %v1802
    %v2726 = vpop.f32.mrf.mxu0
    %v2727 = vadd.f32 %v2678, %v2726
    %v2728 = vpop.f32.mrf.mxu0
    %v2729 = vadd.f32 %v2680, %v2728
    %2730 = vmatmul.bf16.gmra.mxu0 %v1808
    %v2731 = vpop.f32.mrf.mxu0
    %v2732 = vadd.f32 %v2683, %v2731
    %v2733 = vpop.f32.mrf.mxu0
    %v2734 = vadd.f32 %v2685, %v2733
    %2735 = vmatmul.bf16.gmra.mxu0 %v1814
    %v2736 = vpop.f32.mrf.mxu0
    %v2737 = vadd.f32 %v2688, %v2736
    %v2738 = vpop.f32.mrf.mxu0
    %v2739 = vadd.f32 %v2690, %v2738
    %2740 = vmatmul.bf16.gmra.mxu0 %v1820
    %v2741 = vpop.f32.mrf.mxu0
    %v2742 = vadd.f32 %v2693, %v2741
    %v2743 = vpop.f32.mrf.mxu0
    %v2744 = vadd.f32 %v2695, %v2743
    %2745 = vmatmul.bf16.gmra.mxu0 %v1826
    %v2746 = vpop.f32.mrf.mxu0
    %v2747 = vadd.f32 %v2698, %v2746
    %v2748 = vpop.f32.mrf.mxu0
    %v2749 = vadd.f32 %v2700, %v2748
    %2750 = vdwg.mxu0
    %2751 = vmatpush.bf16.msra.mxu0 %v2214
    %2752 = vmatpush.bf16.msra.mxu0 %v2212
    %2753 = vmatpush.bf16.msra.mxu0 %v2210
    %2754 = vmatpush.bf16.msra.mxu0 %v2208
    %2755 = vmatpush.bf16.msra.mxu0 %v2206
    %2756 = vmatpush.bf16.msra.mxu0 %v2204
    %2757 = vmatpush.bf16.msra.mxu0 %v2202
    %2758 = vmatpush.bf16.msra.mxu0 %v2200
    %2759 = vmatmul.bf16.gmra.mxu0 %v1785
    %v2760 = vpop.f32.mrf.mxu0
    %v2761 = vadd.f32 %v2712, %v2760
    %v2762 = vpop.f32.mrf.mxu0
    %v2763 = vadd.f32 %v2714, %v2762
    %2764 = vmatmul.bf16.gmra.mxu0 %v1791
    %v2765 = vpop.f32.mrf.mxu0
    %v2766 = vadd.f32 %v2717, %v2765
    %v2767 = vpop.f32.mrf.mxu0
    %v2768 = vadd.f32 %v2719, %v2767
    %2769 = vmatmul.bf16.gmra.mxu0 %v1797
    %v2770 = vpop.f32.mrf.mxu0
    %v2771 = vadd.f32 %v2722, %v2770
    %v2772 = vpop.f32.mrf.mxu0
    %v2773 = vadd.f32 %v2724, %v2772
    %2774 = vmatmul.bf16.gmra.mxu0 %v1803
    %v2775 = vpop.f32.mrf.mxu0
    %v2776 = vadd.f32 %v2727, %v2775
    %v2777 = vpop.f32.mrf.mxu0
    %v2778 = vadd.f32 %v2729, %v2777
    %2779 = vmatmul.bf16.gmra.mxu0 %v1809
    %v2780 = vpop.f32.mrf.mxu0
    %v2781 = vadd.f32 %v2732, %v2780
    %v2782 = vpop.f32.mrf.mxu0
    %v2783 = vadd.f32 %v2734, %v2782
    %2784 = vmatmul.bf16.gmra.mxu0 %v1815
    %v2785 = vpop.f32.mrf.mxu0
    %v2786 = vadd.f32 %v2737, %v2785
    %v2787 = vpop.f32.mrf.mxu0
    %v2788 = vadd.f32 %v2739, %v2787
    %2789 = vmatmul.bf16.gmra.mxu0 %v1821
    %v2790 = vpop.f32.mrf.mxu0
    %v2791 = vadd.f32 %v2742, %v2790
    %v2792 = vpop.f32.mrf.mxu0
    %v2793 = vadd.f32 %v2744, %v2792
    %2794 = vmatmul.bf16.gmra.mxu0 %v1827
    %v2795 = vpop.f32.mrf.mxu0
    %v2796 = vadd.f32 %v2747, %v2795
    %v2797 = vpop.f32.mrf.mxu0
    %v2798 = vadd.f32 %v2749, %v2797
    %2799 = vdwg.mxu0
    %2800 = vmatpush.bf16.msra.mxu0 %v2230
    %2801 = vmatpush.bf16.msra.mxu0 %v2228
    %2802 = vmatpush.bf16.msra.mxu0 %v2226
    %2803 = vmatpush.bf16.msra.mxu0 %v2224
    %2804 = vmatpush.bf16.msra.mxu0 %v2222
    %2805 = vmatpush.bf16.msra.mxu0 %v2220
    %2806 = vmatpush.bf16.msra.mxu0 %v2218
    %2807 = vmatpush.bf16.msra.mxu0 %v2216
    %2808 = vmatmul.bf16.gmra.mxu0 %v1786
    %v2809 = vpop.f32.mrf.mxu0
    %v2810 = vadd.f32 %v2761, %v2809
    %v2811 = vpop.f32.mrf.mxu0
    %v2812 = vadd.f32 %v2763, %v2811
    %2813 = vmatmul.bf16.gmra.mxu0 %v1792
    %v2814 = vpop.f32.mrf.mxu0
    %v2815 = vadd.f32 %v2766, %v2814
    %v2816 = vpop.f32.mrf.mxu0
    %v2817 = vadd.f32 %v2768, %v2816
    %2818 = vmatmul.bf16.gmra.mxu0 %v1798
    %v2819 = vpop.f32.mrf.mxu0
    %v2820 = vadd.f32 %v2771, %v2819
    %v2821 = vpop.f32.mrf.mxu0
    %v2822 = vadd.f32 %v2773, %v2821
    %2823 = vmatmul.bf16.gmra.mxu0 %v1804
    %v2824 = vpop.f32.mrf.mxu0
    %v2825 = vadd.f32 %v2776, %v2824
    %v2826 = vpop.f32.mrf.mxu0
    %v2827 = vadd.f32 %v2778, %v2826
    %2828 = vmatmul.bf16.gmra.mxu0 %v1810
    %v2829 = vpop.f32.mrf.mxu0
    %v2830 = vadd.f32 %v2781, %v2829
    %v2831 = vpop.f32.mrf.mxu0
    %v2832 = vadd.f32 %v2783, %v2831
    %2833 = vmatmul.bf16.gmra.mxu0 %v1816
    %v2834 = vpop.f32.mrf.mxu0
    %v2835 = vadd.f32 %v2786, %v2834
    %v2836 = vpop.f32.mrf.mxu0
    %v2837 = vadd.f32 %v2788, %v2836
    %2838 = vmatmul.bf16.gmra.mxu0 %v1822
    %v2839 = vpop.f32.mrf.mxu0
    %v2840 = vadd.f32 %v2791, %v2839
    %v2841 = vpop.f32.mrf.mxu0
    %v2842 = vadd.f32 %v2793, %v2841
    %2843 = vmatmul.bf16.gmra.mxu0 %v1828
    %v2844 = vpop.f32.mrf.mxu0
    %v2845 = vadd.f32 %v2796, %v2844
    %v2846 = vpop.f32.mrf.mxu0
    %v2847 = vadd.f32 %v2798, %v2846
    %2848 = vdwg.mxu0
    %2849 = vmatpush.bf16.msra.mxu0 %v2246
    %2850 = vmatpush.bf16.msra.mxu0 %v2244
    %2851 = vmatpush.bf16.msra.mxu0 %v2242
    %2852 = vmatpush.bf16.msra.mxu0 %v2240
    %2853 = vmatpush.bf16.msra.mxu0 %v2238
    %2854 = vmatpush.bf16.msra.mxu0 %v2236
    %2855 = vmatpush.bf16.msra.mxu0 %v2234
    %2856 = vmatpush.bf16.msra.mxu0 %v2232
    %2857 = vmatmul.bf16.gmra.mxu0 %v1787
    %v2858 = vpop.f32.mrf.mxu0
    %v2859 = vadd.f32 %v2810, %v2858
    %v2860 = vpop.f32.mrf.mxu0
    %v2861 = vadd.f32 %v2812, %v2860
    %2862 = vmatmul.bf16.gmra.mxu0 %v1793
    %v2863 = vpop.f32.mrf.mxu0
    %v2864 = vadd.f32 %v2815, %v2863
    %v2865 = vpop.f32.mrf.mxu0
    %v2866 = vadd.f32 %v2817, %v2865
    %2867 = vmatmul.bf16.gmra.mxu0 %v1799
    %v2868 = vpop.f32.mrf.mxu0
    %v2869 = vadd.f32 %v2820, %v2868
    %v2870 = vpop.f32.mrf.mxu0
    %v2871 = vadd.f32 %v2822, %v2870
    %2872 = vmatmul.bf16.gmra.mxu0 %v1805
    %v2873 = vpop.f32.mrf.mxu0
    %v2874 = vadd.f32 %v2825, %v2873
    %v2875 = vpop.f32.mrf.mxu0
    %v2876 = vadd.f32 %v2827, %v2875
    %2877 = vmatmul.bf16.gmra.mxu0 %v1811
    %v2878 = vpop.f32.mrf.mxu0
    %v2879 = vadd.f32 %v2830, %v2878
    %v2880 = vpop.f32.mrf.mxu0
    %v2881 = vadd.f32 %v2832, %v2880
    %2882 = vmatmul.bf16.gmra.mxu0 %v1817
    %v2883 = vpop.f32.mrf.mxu0
    %v2884 = vadd.f32 %v2835, %v2883
    %v2885 = vpop.f32.mrf.mxu0
    %v2886 = vadd.f32 %v2837, %v2885
    %2887 = vmatmul.bf16.gmra.mxu0 %v1823
    %v2888 = vpop.f32.mrf.mxu0
    %v2889 = vadd.f32 %v2840, %v2888
    %v2890 = vpop.f32.mrf.mxu0
    %v2891 = vadd.f32 %v2842, %v2890
    %2892 = vmatmul.bf16.gmra.mxu0 %v1829
    %v2893 = vpop.f32.mrf.mxu0
    %v2894 = vadd.f32 %v2845, %v2893
    %v2895 = vpop.f32.mrf.mxu0
    %v2896 = vadd.f32 %v2847, %v2895
    %2897 = vdwg.mxu0
    %2898 = vmatpush.bf16.msra.mxu0 %v2262
    %2899 = vmatpush.bf16.msra.mxu0 %v2260
    %2900 = vmatpush.bf16.msra.mxu0 %v2258
    %2901 = vmatpush.bf16.msra.mxu0 %v2256
    %2902 = vmatpush.bf16.msra.mxu0 %v2254
    %2903 = vmatpush.bf16.msra.mxu0 %v2252
    %2904 = vmatpush.bf16.msra.mxu0 %v2250
    %2905 = vmatpush.bf16.msra.mxu0 %v2248
    %2906 = vmatmul.bf16.gmra.mxu0 %v1788
    %v2907 = vpop.f32.mrf.mxu0
    %v2908 = vadd.f32 %v2859, %v2907
    %v2909 = vpop.f32.mrf.mxu0
    %v2910 = vadd.f32 %v2861, %v2909
    %2911 = vmatmul.bf16.gmra.mxu0 %v1794
    %v2912 = vpop.f32.mrf.mxu0
    %v2913 = vadd.f32 %v2864, %v2912
    %v2914 = vpop.f32.mrf.mxu0
    %v2915 = vadd.f32 %v2866, %v2914
    %2916 = vmatmul.bf16.gmra.mxu0 %v1800
    %v2917 = vpop.f32.mrf.mxu0
    %v2918 = vadd.f32 %v2869, %v2917
    %v2919 = vpop.f32.mrf.mxu0
    %v2920 = vadd.f32 %v2871, %v2919
    %2921 = vmatmul.bf16.gmra.mxu0 %v1806
    %v2922 = vpop.f32.mrf.mxu0
    %v2923 = vadd.f32 %v2874, %v2922
    %v2924 = vpop.f32.mrf.mxu0
    %v2925 = vadd.f32 %v2876, %v2924
    %2926 = vmatmul.bf16.gmra.mxu0 %v1812
    %v2927 = vpop.f32.mrf.mxu0
    %v2928 = vadd.f32 %v2879, %v2927
    %v2929 = vpop.f32.mrf.mxu0
    %v2930 = vadd.f32 %v2881, %v2929
    %2931 = vmatmul.bf16.gmra.mxu0 %v1818
    %v2932 = vpop.f32.mrf.mxu0
    %v2933 = vadd.f32 %v2884, %v2932
    %v2934 = vpop.f32.mrf.mxu0
    %v2935 = vadd.f32 %v2886, %v2934
    %2936 = vmatmul.bf16.gmra.mxu0 %v1824
    %v2937 = vpop.f32.mrf.mxu0
    %v2938 = vadd.f32 %v2889, %v2937
    %v2939 = vpop.f32.mrf.mxu0
    %v2940 = vadd.f32 %v2891, %v2939
    %2941 = vmatmul.bf16.gmra.mxu0 %v1830
    %v2942 = vpop.f32.mrf.mxu0
    %v2943 = vadd.f32 %v2894, %v2942
    %v2944 = vpop.f32.mrf.mxu0
    %v2945 = vadd.f32 %v2896, %v2944
    %2946 = vdwg.mxu0
    %v2947 = vpack.c.bf16 %v2616, %v2614
    %v2948 = vpack.c.bf16 %v2910, %v2908
    %v2949 = vpack.c.bf16 %v2621, %v2619
    %v2950 = vpack.c.bf16 %v2915, %v2913
    %v2951 = vpack.c.bf16 %v2626, %v2624
    %v2952 = vpack.c.bf16 %v2920, %v2918
    %v2953 = vpack.c.bf16 %v2631, %v2629
    %v2954 = vpack.c.bf16 %v2925, %v2923
    %v2955 = vpack.c.bf16 %v2636, %v2634
    %v2956 = vpack.c.bf16 %v2930, %v2928
    %v2957 = vpack.c.bf16 %v2641, %v2639
    %v2958 = vpack.c.bf16 %v2935, %v2933
    %v2959 = vpack.c.bf16 %v2646, %v2644
    %v2960 = vpack.c.bf16 %v2940, %v2938
    %v2961 = vpack.c.bf16 %v2651, %v2649
    %v2962 = vpack.c.bf16 %v2945, %v2943
    %v2963 = vld [vmem:[#allocation19] sm:$0xf]
    %v2964 = vld [vmem:[#allocation19 + $0x4] sm:$0xf]
    %v2965 = vld [vmem:[#allocation19 + $0x8] sm:$0xf]
    %v2966 = vld [vmem:[#allocation19 + $0xc] sm:$0xf]
    %v2967 = vld [vmem:[#allocation19 + $0x10] sm:$0xf]
    %v2968 = vld [vmem:[#allocation19 + $0x14] sm:$0xf]
    %v2969 = vld [vmem:[#allocation19 + $0x18] sm:$0xf]
    %v2970 = vld [vmem:[#allocation19 + $0x1c] sm:$0xf]
    %v2971 = vld [vmem:[#allocation19 + $0x20] sm:$0xf]
    %v2972 = vld [vmem:[#allocation19 + $0x24] sm:$0xf]
    %v2973 = vld [vmem:[#allocation19 + $0x28] sm:$0xf]
    %v2974 = vld [vmem:[#allocation19 + $0x2c] sm:$0xf]
    %v2975 = vld [vmem:[#allocation19 + $0x30] sm:$0xf]
    %v2976 = vld [vmem:[#allocation19 + $0x34] sm:$0xf]
    %v2977 = vld [vmem:[#allocation19 + $0x38] sm:$0xf]
    %v2978 = vld [vmem:[#allocation19 + $0x3c] sm:$0xf]
    %v2979 = vld [vmem:[#allocation19 + $0x40] sm:$0xf]
    %v2980 = vld [vmem:[#allocation19 + $0x44] sm:$0xf]
    %v2981 = vld [vmem:[#allocation19 + $0x48] sm:$0xf]
    %v2982 = vld [vmem:[#allocation19 + $0x4c] sm:$0xf]
    %v2983 = vld [vmem:[#allocation19 + $0x50] sm:$0xf]
    %v2984 = vld [vmem:[#allocation19 + $0x54] sm:$0xf]
    %v2985 = vld [vmem:[#allocation19 + $0x58] sm:$0xf]
    %v2986 = vld [vmem:[#allocation19 + $0x5c] sm:$0xf]
    %v2987 = vld [vmem:[#allocation19 + $0x60] sm:$0xf]
    %v2988 = vld [vmem:[#allocation19 + $0x64] sm:$0xf]
    %v2989 = vld [vmem:[#allocation19 + $0x68] sm:$0xf]
    %v2990 = vld [vmem:[#allocation19 + $0x6c] sm:$0xf]
    %v2991 = vld [vmem:[#allocation19 + $0x70] sm:$0xf]
    %v2992 = vld [vmem:[#allocation19 + $0x74] sm:$0xf]
    %v2993 = vld [vmem:[#allocation19 + $0x78] sm:$0xf]
    %v2994 = vld [vmem:[#allocation19 + $0x7c] sm:$0xf]
    %v2995 = vld [vmem:[#allocation20] sm:$0x1]
    %v2997 = vperm.slane %v2995, 0
    %v3031 = vunpack.c.l.b16 %v2963
    %v3032 = vunpack.c.l.b16 %v2964
    %v3033 = vunpack.c.l.b16 %v2965
    %v3034 = vunpack.c.l.b16 %v2966
    %v3035 = vunpack.c.l.b16 %v2967
    %v3036 = vunpack.c.l.b16 %v2968
    %v3037 = vunpack.c.l.b16 %v2969
    %v3038 = vunpack.c.l.b16 %v2970
    %v3039 = vunpack.c.l.b16 %v2971
    %v3040 = vunpack.c.l.b16 %v2972
    %v3041 = vunpack.c.l.b16 %v2973
    %v3042 = vunpack.c.l.b16 %v2974
    %v3043 = vunpack.c.l.b16 %v2975
    %v3044 = vunpack.c.l.b16 %v2976
    %v3045 = vunpack.c.l.b16 %v2977
    %v3046 = vunpack.c.l.b16 %v2978
    %v3047 = vunpack.c.l.b16 %v2979
    %v3048 = vunpack.c.l.b16 %v2980
    %v3049 = vunpack.c.l.b16 %v2981
    %v3050 = vunpack.c.l.b16 %v2982
    %v3051 = vunpack.c.l.b16 %v2983
    %v3052 = vunpack.c.l.b16 %v2984
    %v3053 = vunpack.c.l.b16 %v2985
    %v3054 = vunpack.c.l.b16 %v2986
    %v3055 = vunpack.c.l.b16 %v2987
    %v3056 = vunpack.c.l.b16 %v2988
    %v3057 = vunpack.c.l.b16 %v2989
    %v3058 = vunpack.c.l.b16 %v2990
    %v3059 = vunpack.c.l.b16 %v2991
    %v3060 = vunpack.c.l.b16 %v2992
    %v3061 = vunpack.c.l.b16 %v2993
    %v3062 = vunpack.c.l.b16 %v2994
    %v3063 = vpack.c.b16 %v3032, %v3031
    %v3064 = vpack.c.b16 %v3034, %v3033
    %v3065 = vpack.c.b16 %v3036, %v3035
    %v3066 = vpack.c.b16 %v3038, %v3037
    %v3067 = vpack.c.b16 %v3040, %v3039
    %v3068 = vpack.c.b16 %v3042, %v3041
    %v3069 = vpack.c.b16 %v3044, %v3043
    %v3070 = vpack.c.b16 %v3046, %v3045
    %v3071 = vpack.c.b16 %v3048, %v3047
    %v3072 = vpack.c.b16 %v3050, %v3049
    %v3073 = vpack.c.b16 %v3052, %v3051
    %v3074 = vpack.c.b16 %v3054, %v3053
    %v3075 = vpack.c.b16 %v3056, %v3055
    %v3076 = vpack.c.b16 %v3058, %v3057
    %v3077 = vpack.c.b16 %v3060, %v3059
    %v3078 = vpack.c.b16 %v3062, %v3061
    %3095 = vmatpush.bf16.msra.mxu0 %v3070
    %3096 = vmatpush.bf16.msra.mxu0 %v3069
    %3097 = vmatpush.bf16.msra.mxu0 %v3068
    %3098 = vmatpush.bf16.msra.mxu0 %v3067
    %3099 = vmatpush.bf16.msra.mxu0 %v3066
    %3100 = vmatpush.bf16.msra.mxu0 %v3065
    %3101 = vmatpush.bf16.msra.mxu0 %v3064
    %3102 = vmatpush.bf16.msra.mxu0 %v3063
    %3103 = vmatmul.bf16.gmra.mxu0 %v2947
    %v3104 = vpop.f32.mrf.mxu0
    %v3105 = vadd.f32 %v2997, %v3104
    %v3106 = vpop.f32.mrf.mxu0
    %v3107 = vadd.f32 %v2997, %v3106
    %3108 = vmatmul.bf16.gmra.mxu0 %v2949
    %v3109 = vpop.f32.mrf.mxu0
    %v3110 = vadd.f32 %v2997, %v3109
    %v3111 = vpop.f32.mrf.mxu0
    %v3112 = vadd.f32 %v2997, %v3111
    %3113 = vmatmul.bf16.gmra.mxu0 %v2951
    %v3114 = vpop.f32.mrf.mxu0
    %v3115 = vadd.f32 %v2997, %v3114
    %v3116 = vpop.f32.mrf.mxu0
    %v3117 = vadd.f32 %v2997, %v3116
    %3118 = vmatmul.bf16.gmra.mxu0 %v2953
    %v3119 = vpop.f32.mrf.mxu0
    %v3120 = vadd.f32 %v2997, %v3119
    %v3121 = vpop.f32.mrf.mxu0
    %v3122 = vadd.f32 %v2997, %v3121
    %3123 = vmatmul.bf16.gmra.mxu0 %v2955
    %v3124 = vpop.f32.mrf.mxu0
    %v3125 = vadd.f32 %v2997, %v3124
    %v3126 = vpop.f32.mrf.mxu0
    %v3127 = vadd.f32 %v2997, %v3126
    %3128 = vmatmul.bf16.gmra.mxu0 %v2957
    %v3129 = vpop.f32.mrf.mxu0
    %v3130 = vadd.f32 %v2997, %v3129
    %v3131 = vpop.f32.mrf.mxu0
    %v3132 = vadd.f32 %v2997, %v3131
    %3133 = vmatmul.bf16.gmra.mxu0 %v2959
    %v3134 = vpop.f32.mrf.mxu0
    %v3135 = vadd.f32 %v2997, %v3134
    %v3136 = vpop.f32.mrf.mxu0
    %v3137 = vadd.f32 %v2997, %v3136
    %3138 = vmatmul.bf16.gmra.mxu0 %v2961
    %v3139 = vpop.f32.mrf.mxu0
    %v3140 = vadd.f32 %v2997, %v3139
    %v3141 = vpop.f32.mrf.mxu0
    %v3142 = vadd.f32 %v2997, %v3141
    %3143 = vdwg.mxu0
    %3144 = vmatpush.bf16.msra.mxu0 %v3078
    %3145 = vmatpush.bf16.msra.mxu0 %v3077
    %3146 = vmatpush.bf16.msra.mxu0 %v3076
    %3147 = vmatpush.bf16.msra.mxu0 %v3075
    %3148 = vmatpush.bf16.msra.mxu0 %v3074
    %3149 = vmatpush.bf16.msra.mxu0 %v3073
    %3150 = vmatpush.bf16.msra.mxu0 %v3072
    %3151 = vmatpush.bf16.msra.mxu0 %v3071
    %3152 = vmatmul.bf16.gmra.mxu0 %v2948
    %v3153 = vpop.f32.mrf.mxu0
    %v3154 = vadd.f32 %v3105, %v3153
    %v3155 = vpop.f32.mrf.mxu0
    %v3156 = vadd.f32 %v3107, %v3155
    %3157 = vmatmul.bf16.gmra.mxu0 %v2950
    %v3158 = vpop.f32.mrf.mxu0
    %v3159 = vadd.f32 %v3110, %v3158
    %v3160 = vpop.f32.mrf.mxu0
    %v3161 = vadd.f32 %v3112, %v3160
    %3162 = vmatmul.bf16.gmra.mxu0 %v2952
    %v3163 = vpop.f32.mrf.mxu0
    %v3164 = vadd.f32 %v3115, %v3163
    %v3165 = vpop.f32.mrf.mxu0
    %v3166 = vadd.f32 %v3117, %v3165
    %3167 = vmatmul.bf16.gmra.mxu0 %v2954
    %v3168 = vpop.f32.mrf.mxu0
    %v3169 = vadd.f32 %v3120, %v3168
    %v3170 = vpop.f32.mrf.mxu0
    %v3171 = vadd.f32 %v3122, %v3170
    %3172 = vmatmul.bf16.gmra.mxu0 %v2956
    %v3173 = vpop.f32.mrf.mxu0
    %v3174 = vadd.f32 %v3125, %v3173
    %v3175 = vpop.f32.mrf.mxu0
    %v3176 = vadd.f32 %v3127, %v3175
    %3177 = vmatmul.bf16.gmra.mxu0 %v2958
    %v3178 = vpop.f32.mrf.mxu0
    %v3179 = vadd.f32 %v3130, %v3178
    %v3180 = vpop.f32.mrf.mxu0
    %v3181 = vadd.f32 %v3132, %v3180
    %3182 = vmatmul.bf16.gmra.mxu0 %v2960
    %v3183 = vpop.f32.mrf.mxu0
    %v3184 = vadd.f32 %v3135, %v3183
    %v3185 = vpop.f32.mrf.mxu0
    %v3186 = vadd.f32 %v3137, %v3185
    %3187 = vmatmul.bf16.gmra.mxu0 %v2962
    %v3188 = vpop.f32.mrf.mxu0
    %v3189 = vadd.f32 %v3140, %v3188
    %v3190 = vpop.f32.mrf.mxu0
    %v3191 = vadd.f32 %v3142, %v3190
    %3192 = vdwg.mxu0
    %v3193 = vld [vmem:[#allocation10] sm:$0xf]
    %v3194 = vld [vmem:[#allocation10 + $0x4] sm:$0xf]
    %v3195 = vld [vmem:[#allocation10 + $0x8] sm:$0xf]
    %v3196 = vld [vmem:[#allocation10 + $0xc] sm:$0xf]
    %v3197 = vld [vmem:[#allocation10 + $0x10] sm:$0xf]
    %v3198 = vld [vmem:[#allocation10 + $0x14] sm:$0xf]
    %v3199 = vld [vmem:[#allocation10 + $0x18] sm:$0xf]
    %v3200 = vld [vmem:[#allocation10 + $0x1c] sm:$0xf]
    %v3201 = vld [vmem:[#allocation10 + $0x20] sm:$0xf]
    %v3202 = vld [vmem:[#allocation10 + $0x24] sm:$0xf]
    %v3203 = vld [vmem:[#allocation10 + $0x28] sm:$0xf]
    %v3204 = vld [vmem:[#allocation10 + $0x2c] sm:$0xf]
    %v3205 = vld [vmem:[#allocation10 + $0x30] sm:$0xf]
    %v3206 = vld [vmem:[#allocation10 + $0x34] sm:$0xf]
    %v3207 = vld [vmem:[#allocation10 + $0x38] sm:$0xf]
    %v3208 = vld [vmem:[#allocation10 + $0x3c] sm:$0xf]
    %v3209 = vunpack.c.l.bf16 %v3193
    %v3210 = vunpack.c.l.bf16 %v3194
    %v3211 = vunpack.c.l.bf16 %v3195
    %v3212 = vunpack.c.l.bf16 %v3196
    %v3213 = vunpack.c.l.bf16 %v3197
    %v3214 = vunpack.c.l.bf16 %v3198
    %v3215 = vunpack.c.l.bf16 %v3199
    %v3216 = vunpack.c.l.bf16 %v3200
    %v3217 = vunpack.c.l.bf16 %v3201
    %v3218 = vunpack.c.l.bf16 %v3202
    %v3219 = vunpack.c.l.bf16 %v3203
    %v3220 = vunpack.c.l.bf16 %v3204
    %v3221 = vunpack.c.l.bf16 %v3205
    %v3222 = vunpack.c.l.bf16 %v3206
    %v3223 = vunpack.c.l.bf16 %v3207
    %v3224 = vunpack.c.l.bf16 %v3208
    %v3225 = vadd.f32 %v3154, %v3209
    %v3226 = vadd.f32 %v3156, %v3210
    %v3227 = vadd.f32 %v3159, %v3211
    %v3228 = vadd.f32 %v3161, %v3212
    %v3229 = vadd.f32 %v3164, %v3213
    %v3230 = vadd.f32 %v3166, %v3214
    %v3231 = vadd.f32 %v3169, %v3215
    %v3232 = vadd.f32 %v3171, %v3216
    %v3233 = vadd.f32 %v3174, %v3217
    %v3234 = vadd.f32 %v3176, %v3218
    %v3235 = vadd.f32 %v3179, %v3219
    %v3236 = vadd.f32 %v3181, %v3220
    %v3237 = vadd.f32 %v3184, %v3221
    %v3238 = vadd.f32 %v3186, %v3222
    %v3239 = vadd.f32 %v3189, %v3223
    %v3240 = vadd.f32 %v3191, %v3224
    %v3241 = vpack.c.bf16 %v3226, %v3225
    %v3242 = vpack.c.bf16 %v3228, %v3227
    %v3243 = vpack.c.bf16 %v3230, %v3229
    %v3244 = vpack.c.bf16 %v3232, %v3231
    %v3245 = vpack.c.bf16 %v3234, %v3233
    %v3246 = vpack.c.bf16 %v3236, %v3235
    %v3247 = vpack.c.bf16 %v3238, %v3237
    %v3248 = vpack.c.bf16 %v3240, %v3239
    %v3249 = vld [vmem:[#allocation26] sm:$0xff]
    %v3250 = vld [vmem:[#allocation26 + $0x8] sm:$0xff]
    %v3251 = vld [vmem:[#allocation26 + $0x10] sm:$0xff]
    %v3252 = vld [vmem:[#allocation26 + $0x18] sm:$0xff]
    %v3253 = vld [vmem:[#allocation26 + $0x20] sm:$0xff]
    %v3254 = vld [vmem:[#allocation26 + $0x28] sm:$0xff]
    %v3255 = vld [vmem:[#allocation26 + $0x30] sm:$0xff]
    %v3256 = vld [vmem:[#allocation26 + $0x38] sm:$0xff]
    %v3257 = vld [vmem:[#allocation26 + $0x40] sm:$0xff]
    %v3258 = vld [vmem:[#allocation26 + $0x48] sm:$0xff]
    %v3259 = vld [vmem:[#allocation26 + $0x50] sm:$0xff]
    %v3260 = vld [vmem:[#allocation26 + $0x58] sm:$0xff]
    %v3261 = vld [vmem:[#allocation26 + $0x60] sm:$0xff]
    %v3262 = vld [vmem:[#allocation26 + $0x68] sm:$0xff]
    %v3263 = vld [vmem:[#allocation26 + $0x70] sm:$0xff]
    %v3264 = vld [vmem:[#allocation26 + $0x78] sm:$0xff]
    %v3265 = vld [vmem:[#allocation28] sm:$0x3]
    %v3267 = vperm.slane %v3265, 0
    %v3268 = vperm.slane %v3265, 1
    %v3287 = vunpack.c.l.b16 %v3249
    %v3288 = vunpack.c.h.b16 %v3249
    %v3289 = vunpack.c.l.b16 %v3250
    %v3290 = vunpack.c.h.b16 %v3250
    %v3291 = vunpack.c.l.b16 %v3251
    %v3292 = vunpack.c.h.b16 %v3251
    %v3293 = vunpack.c.l.b16 %v3252
    %v3294 = vunpack.c.h.b16 %v3252
    %v3295 = vunpack.c.l.b16 %v3253
    %v3296 = vunpack.c.h.b16 %v3253
    %v3297 = vunpack.c.l.b16 %v3254
    %v3298 = vunpack.c.h.b16 %v3254
    %v3299 = vunpack.c.l.b16 %v3255
    %v3300 = vunpack.c.h.b16 %v3255
    %v3301 = vunpack.c.l.b16 %v3256
    %v3302 = vunpack.c.h.b16 %v3256
    %v3303 = vunpack.c.l.b16 %v3257
    %v3304 = vunpack.c.h.b16 %v3257
    %v3305 = vunpack.c.l.b16 %v3258
    %v3306 = vunpack.c.h.b16 %v3258
    %v3307 = vunpack.c.l.b16 %v3259
    %v3308 = vunpack.c.h.b16 %v3259
    %v3309 = vunpack.c.l.b16 %v3260
    %v3310 = vunpack.c.h.b16 %v3260
    %v3311 = vunpack.c.l.b16 %v3261
    %v3312 = vunpack.c.h.b16 %v3261
    %v3313 = vunpack.c.l.b16 %v3262
    %v3314 = vunpack.c.h.b16 %v3262
    %v3315 = vunpack.c.l.b16 %v3263
    %v3316 = vunpack.c.h.b16 %v3263
    %v3317 = vunpack.c.l.b16 %v3264
    %v3318 = vunpack.c.h.b16 %v3264
    %v3319 = vpack.c.b16 %v3289, %v3287
    %v3320 = vpack.c.b16 %v3290, %v3288
    %v3321 = vpack.c.b16 %v3293, %v3291
    %v3322 = vpack.c.b16 %v3294, %v3292
    %v3323 = vpack.c.b16 %v3297, %v3295
    %v3324 = vpack.c.b16 %v3298, %v3296
    %v3325 = vpack.c.b16 %v3301, %v3299
    %v3326 = vpack.c.b16 %v3302, %v3300
    %v3327 = vpack.c.b16 %v3305, %v3303
    %v3328 = vpack.c.b16 %v3306, %v3304
    %v3329 = vpack.c.b16 %v3309, %v3307
    %v3330 = vpack.c.b16 %v3310, %v3308
    %v3331 = vpack.c.b16 %v3313, %v3311
    %v3332 = vpack.c.b16 %v3314, %v3312
    %v3333 = vpack.c.b16 %v3317, %v3315
    %v3334 = vpack.c.b16 %v3318, %v3316
    %3351 = vmatpush.bf16.msra.mxu0 %v3333
    %3352 = vmatpush.bf16.msra.mxu0 %v3331
    %3353 = vmatpush.bf16.msra.mxu0 %v3329
    %3354 = vmatpush.bf16.msra.mxu0 %v3327
    %3355 = vmatpush.bf16.msra.mxu0 %v3325
    %3356 = vmatpush.bf16.msra.mxu0 %v3323
    %3357 = vmatpush.bf16.msra.mxu0 %v3321
    %3358 = vmatpush.bf16.msra.mxu0 %v3319
    %3359 = vmatmul.bf16.gmra.mxu0 %v3241
    %v3360 = vpop.f32.mrf.mxu0
    %v3361 = vadd.f32 %v3267, %v3360
    %v3362 = vpop.f32.mrf.mxu0
    %v3363 = vadd.f32 %v3267, %v3362
    %3364 = vmatmul.bf16.gmra.mxu0 %v3242
    %v3365 = vpop.f32.mrf.mxu0
    %v3366 = vadd.f32 %v3267, %v3365
    %v3367 = vpop.f32.mrf.mxu0
    %v3368 = vadd.f32 %v3267, %v3367
    %3369 = vmatmul.bf16.gmra.mxu0 %v3243
    %v3370 = vpop.f32.mrf.mxu0
    %v3371 = vadd.f32 %v3267, %v3370
    %v3372 = vpop.f32.mrf.mxu0
    %v3373 = vadd.f32 %v3267, %v3372
    %3374 = vmatmul.bf16.gmra.mxu0 %v3244
    %v3375 = vpop.f32.mrf.mxu0
    %v3376 = vadd.f32 %v3267, %v3375
    %v3377 = vpop.f32.mrf.mxu0
    %v3378 = vadd.f32 %v3267, %v3377
    %3379 = vmatmul.bf16.gmra.mxu0 %v3245
    %v3380 = vpop.f32.mrf.mxu0
    %v3381 = vadd.f32 %v3267, %v3380
    %v3382 = vpop.f32.mrf.mxu0
    %v3383 = vadd.f32 %v3267, %v3382
    %3384 = vmatmul.bf16.gmra.mxu0 %v3246
    %v3385 = vpop.f32.mrf.mxu0
    %v3386 = vadd.f32 %v3267, %v3385
    %v3387 = vpop.f32.mrf.mxu0
    %v3388 = vadd.f32 %v3267, %v3387
    %3389 = vmatmul.bf16.gmra.mxu0 %v3247
    %v3390 = vpop.f32.mrf.mxu0
    %v3391 = vadd.f32 %v3267, %v3390
    %v3392 = vpop.f32.mrf.mxu0
    %v3393 = vadd.f32 %v3267, %v3392
    %3394 = vmatmul.bf16.gmra.mxu0 %v3248
    %v3395 = vpop.f32.mrf.mxu0
    %v3396 = vadd.f32 %v3267, %v3395
    %v3397 = vpop.f32.mrf.mxu0
    %v3398 = vadd.f32 %v3267, %v3397
    %3399 = vdwg.mxu0
    %3400 = vmatpush.bf16.msra.mxu0 %v3334
    %3401 = vmatpush.bf16.msra.mxu0 %v3332
    %3402 = vmatpush.bf16.msra.mxu0 %v3330
    %3403 = vmatpush.bf16.msra.mxu0 %v3328
    %3404 = vmatpush.bf16.msra.mxu0 %v3326
    %3405 = vmatpush.bf16.msra.mxu0 %v3324
    %3406 = vmatpush.bf16.msra.mxu0 %v3322
    %3407 = vmatpush.bf16.msra.mxu0 %v3320
    %3408 = vmatmul.bf16.gmra.mxu0 %v3241
    %v3409 = vpop.f32.mrf.mxu0
    %v3410 = vadd.f32 %v3268, %v3409
    %v3411 = vpop.f32.mrf.mxu0
    %v3412 = vadd.f32 %v3268, %v3411
    %3413 = vmatmul.bf16.gmra.mxu0 %v3242
    %v3414 = vpop.f32.mrf.mxu0
    %v3415 = vadd.f32 %v3268, %v3414
    %v3416 = vpop.f32.mrf.mxu0
    %v3417 = vadd.f32 %v3268, %v3416
    %3418 = vmatmul.bf16.gmra.mxu0 %v3243
    %v3419 = vpop.f32.mrf.mxu0
    %v3420 = vadd.f32 %v3268, %v3419
    %v3421 = vpop.f32.mrf.mxu0
    %v3422 = vadd.f32 %v3268, %v3421
    %3423 = vmatmul.bf16.gmra.mxu0 %v3244
    %v3424 = vpop.f32.mrf.mxu0
    %v3425 = vadd.f32 %v3268, %v3424
    %v3426 = vpop.f32.mrf.mxu0
    %v3427 = vadd.f32 %v3268, %v3426
    %3428 = vmatmul.bf16.gmra.mxu0 %v3245
    %v3429 = vpop.f32.mrf.mxu0
    %v3430 = vadd.f32 %v3268, %v3429
    %v3431 = vpop.f32.mrf.mxu0
    %v3432 = vadd.f32 %v3268, %v3431
    %3433 = vmatmul.bf16.gmra.mxu0 %v3246
    %v3434 = vpop.f32.mrf.mxu0
    %v3435 = vadd.f32 %v3268, %v3434
    %v3436 = vpop.f32.mrf.mxu0
    %v3437 = vadd.f32 %v3268, %v3436
    %3438 = vmatmul.bf16.gmra.mxu0 %v3247
    %v3439 = vpop.f32.mrf.mxu0
    %v3440 = vadd.f32 %v3268, %v3439
    %v3441 = vpop.f32.mrf.mxu0
    %v3442 = vadd.f32 %v3268, %v3441
    %3443 = vmatmul.bf16.gmra.mxu0 %v3248
    %v3444 = vpop.f32.mrf.mxu0
    %v3445 = vadd.f32 %v3268, %v3444
    %v3446 = vpop.f32.mrf.mxu0
    %v3447 = vadd.f32 %v3268, %v3446
    %3448 = vdwg.mxu0
    %v3449 = vtanh.pop %v3361
    %v3450 = vtanh.pop %v3410
    %v3451 = vtanh.pop %v3363
    %v3452 = vtanh.pop %v3412
    %v3453 = vtanh.pop %v3366
    %v3454 = vtanh.pop %v3415
    %v3455 = vtanh.pop %v3368
    %v3456 = vtanh.pop %v3417
    %v3457 = vtanh.pop %v3371
    %v3458 = vtanh.pop %v3420
    %v3459 = vtanh.pop %v3373
    %v3460 = vtanh.pop %v3422
    %v3461 = vtanh.pop %v3376
    %v3462 = vtanh.pop %v3425
    %v3463 = vtanh.pop %v3378
    %v3464 = vtanh.pop %v3427
    %v3465 = vtanh.pop %v3381
    %v3466 = vtanh.pop %v3430
    %v3467 = vtanh.pop %v3383
    %v3468 = vtanh.pop %v3432
    %v3469 = vtanh.pop %v3386
    %v3470 = vtanh.pop %v3435
    %v3471 = vtanh.pop %v3388
    %v3472 = vtanh.pop %v3437
    %v3473 = vtanh.pop %v3391
    %v3474 = vtanh.pop %v3440
    %v3475 = vtanh.pop %v3393
    %v3476 = vtanh.pop %v3442
    %v3477 = vtanh.pop %v3396
    %v3478 = vtanh.pop %v3445
    %v3479 = vtanh.pop %v3398
    %v3480 = vtanh.pop %v3447
    %v3481 = vpack.c.bf16 %v3451, %v3449
    %v3482 = vpack.c.bf16 %v3452, %v3450
    %v3483 = vpack.c.bf16 %v3455, %v3453
    %v3484 = vpack.c.bf16 %v3456, %v3454
    %v3485 = vpack.c.bf16 %v3459, %v3457
    %v3486 = vpack.c.bf16 %v3460, %v3458
    %v3487 = vpack.c.bf16 %v3463, %v3461
    %v3488 = vpack.c.bf16 %v3464, %v3462
    %v3489 = vpack.c.bf16 %v3467, %v3465
    %v3490 = vpack.c.bf16 %v3468, %v3466
    %v3491 = vpack.c.bf16 %v3471, %v3469
    %v3492 = vpack.c.bf16 %v3472, %v3470
    %v3493 = vpack.c.bf16 %v3475, %v3473
    %v3494 = vpack.c.bf16 %v3476, %v3474
    %v3495 = vpack.c.bf16 %v3479, %v3477
    %v3496 = vpack.c.bf16 %v3480, %v3478
    %v3497 = vld [vmem:[#allocation29] sm:$0xff]
    %v3498 = vld [vmem:[#allocation29 + $0x8] sm:$0xff]
    %v3499 = vld [vmem:[#allocation29 + $0x10] sm:$0xff]
    %v3500 = vld [vmem:[#allocation29 + $0x18] sm:$0xff]
    %v3501 = vld [vmem:[#allocation29 + $0x20] sm:$0xff]
    %v3502 = vld [vmem:[#allocation29 + $0x28] sm:$0xff]
    %v3503 = vld [vmem:[#allocation29 + $0x30] sm:$0xff]
    %v3504 = vld [vmem:[#allocation29 + $0x38] sm:$0xff]
    %v3505 = vld [vmem:[#allocation29 + $0x40] sm:$0xff]
    %v3506 = vld [vmem:[#allocation29 + $0x48] sm:$0xff]
    %v3507 = vld [vmem:[#allocation29 + $0x50] sm:$0xff]
    %v3508 = vld [vmem:[#allocation29 + $0x58] sm:$0xff]
    %v3509 = vld [vmem:[#allocation29 + $0x60] sm:$0xff]
    %v3510 = vld [vmem:[#allocation29 + $0x68] sm:$0xff]
    %v3511 = vld [vmem:[#allocation29 + $0x70] sm:$0xff]
    %v3512 = vld [vmem:[#allocation29 + $0x78] sm:$0xff]
    %v3513 = vld [vmem:[#allocation29 + $0x80] sm:$0xff]
    %v3514 = vld [vmem:[#allocation29 + $0x88] sm:$0xff]
    %v3515 = vld [vmem:[#allocation29 + $0x90] sm:$0xff]
    %v3516 = vld [vmem:[#allocation29 + $0x98] sm:$0xff]
    %v3517 = vld [vmem:[#allocation29 + $0xa0] sm:$0xff]
    %v3518 = vld [vmem:[#allocation29 + $0xa8] sm:$0xff]
    %v3519 = vld [vmem:[#allocation29 + $0xb0] sm:$0xff]
    %v3520 = vld [vmem:[#allocation29 + $0xb8] sm:$0xff]
    %v3521 = vld [vmem:[#allocation29 + $0xc0] sm:$0xff]
    %v3522 = vld [vmem:[#allocation29 + $0xc8] sm:$0xff]
    %v3523 = vld [vmem:[#allocation29 + $0xd0] sm:$0xff]
    %v3524 = vld [vmem:[#allocation29 + $0xd8] sm:$0xff]
    %v3525 = vld [vmem:[#allocation29 + $0xe0] sm:$0xff]
    %v3526 = vld [vmem:[#allocation29 + $0xe8] sm:$0xff]
    %v3527 = vld [vmem:[#allocation29 + $0xf0] sm:$0xff]
    %v3528 = vld [vmem:[#allocation29 + $0xf8] sm:$0xff]
    %v3529 = vld [vmem:[%s22] sm:$0x3]
    %v3531 = vperm.slane %v3529, 0
    %v3532 = vperm.slane %v3529, 1
    %v3567 = vunpack.c.l.b16 %v3497
    %v3568 = vunpack.c.h.b16 %v3497
    %v3569 = vunpack.c.l.b16 %v3498
    %v3570 = vunpack.c.h.b16 %v3498
    %v3571 = vunpack.c.l.b16 %v3499
    %v3572 = vunpack.c.h.b16 %v3499
    %v3573 = vunpack.c.l.b16 %v3500
    %v3574 = vunpack.c.h.b16 %v3500
    %v3575 = vunpack.c.l.b16 %v3501
    %v3576 = vunpack.c.h.b16 %v3501
    %v3577 = vunpack.c.l.b16 %v3502
    %v3578 = vunpack.c.h.b16 %v3502
    %v3579 = vunpack.c.l.b16 %v3503
    %v3580 = vunpack.c.h.b16 %v3503
    %v3581 = vunpack.c.l.b16 %v3504
    %v3582 = vunpack.c.h.b16 %v3504
    %v3583 = vunpack.c.l.b16 %v3505
    %v3584 = vunpack.c.h.b16 %v3505
    %v3585 = vunpack.c.l.b16 %v3506
    %v3586 = vunpack.c.h.b16 %v3506
    %v3587 = vunpack.c.l.b16 %v3507
    %v3588 = vunpack.c.h.b16 %v3507
    %v3589 = vunpack.c.l.b16 %v3508
    %v3590 = vunpack.c.h.b16 %v3508
    %v3591 = vunpack.c.l.b16 %v3509
    %v3592 = vunpack.c.h.b16 %v3509
    %v3593 = vunpack.c.l.b16 %v3510
    %v3594 = vunpack.c.h.b16 %v3510
    %v3595 = vunpack.c.l.b16 %v3511
    %v3596 = vunpack.c.h.b16 %v3511
    %v3597 = vunpack.c.l.b16 %v3512
    %v3598 = vunpack.c.h.b16 %v3512
    %v3599 = vunpack.c.l.b16 %v3513
    %v3600 = vunpack.c.h.b16 %v3513
    %v3601 = vunpack.c.l.b16 %v3514
    %v3602 = vunpack.c.h.b16 %v3514
    %v3603 = vunpack.c.l.b16 %v3515
    %v3604 = vunpack.c.h.b16 %v3515
    %v3605 = vunpack.c.l.b16 %v3516
    %v3606 = vunpack.c.h.b16 %v3516
    %v3607 = vunpack.c.l.b16 %v3517
    %v3608 = vunpack.c.h.b16 %v3517
    %v3609 = vunpack.c.l.b16 %v3518
    %v3610 = vunpack.c.h.b16 %v3518
    %v3611 = vunpack.c.l.b16 %v3519
    %v3612 = vunpack.c.h.b16 %v3519
    %v3613 = vunpack.c.l.b16 %v3520
    %v3614 = vunpack.c.h.b16 %v3520
    %v3615 = vunpack.c.l.b16 %v3521
    %v3616 = vunpack.c.h.b16 %v3521
    %v3617 = vunpack.c.l.b16 %v3522
    %v3618 = vunpack.c.h.b16 %v3522
    %v3619 = vunpack.c.l.b16 %v3523
    %v3620 = vunpack.c.h.b16 %v3523
    %v3621 = vunpack.c.l.b16 %v3524
    %v3622 = vunpack.c.h.b16 %v3524
    %v3623 = vunpack.c.l.b16 %v3525
    %v3624 = vunpack.c.h.b16 %v3525
    %v3625 = vunpack.c.l.b16 %v3526
    %v3626 = vunpack.c.h.b16 %v3526
    %v3627 = vunpack.c.l.b16 %v3527
    %v3628 = vunpack.c.h.b16 %v3527
    %v3629 = vunpack.c.l.b16 %v3528
    %v3630 = vunpack.c.h.b16 %v3528
    %v3631 = vpack.c.b16 %v3569, %v3567
    %v3632 = vpack.c.b16 %v3570, %v3568
    %v3633 = vpack.c.b16 %v3573, %v3571
    %v3634 = vpack.c.b16 %v3574, %v3572
    %v3635 = vpack.c.b16 %v3577, %v3575
    %v3636 = vpack.c.b16 %v3578, %v3576
    %v3637 = vpack.c.b16 %v3581, %v3579
    %v3638 = vpack.c.b16 %v3582, %v3580
    %v3639 = vpack.c.b16 %v3585, %v3583
    %v3640 = vpack.c.b16 %v3586, %v3584
    %v3641 = vpack.c.b16 %v3589, %v3587
    %v3642 = vpack.c.b16 %v3590, %v3588
    %v3643 = vpack.c.b16 %v3593, %v3591
    %v3644 = vpack.c.b16 %v3594, %v3592
    %v3645 = vpack.c.b16 %v3597, %v3595
    %v3646 = vpack.c.b16 %v3598, %v3596
    %v3647 = vpack.c.b16 %v3601, %v3599
    %v3648 = vpack.c.b16 %v3602, %v3600
    %v3649 = vpack.c.b16 %v3605, %v3603
    %v3650 = vpack.c.b16 %v3606, %v3604
    %v3651 = vpack.c.b16 %v3609, %v3607
    %v3652 = vpack.c.b16 %v3610, %v3608
    %v3653 = vpack.c.b16 %v3613, %v3611
    %v3654 = vpack.c.b16 %v3614, %v3612
    %v3655 = vpack.c.b16 %v3617, %v3615
    %v3656 = vpack.c.b16 %v3618, %v3616
    %v3657 = vpack.c.b16 %v3621, %v3619
    %v3658 = vpack.c.b16 %v3622, %v3620
    %v3659 = vpack.c.b16 %v3625, %v3623
    %v3660 = vpack.c.b16 %v3626, %v3624
    %v3661 = vpack.c.b16 %v3629, %v3627
    %v3662 = vpack.c.b16 %v3630, %v3628
    %3695 = vmatpush.bf16.msra.mxu0 %v3645
    %3696 = vmatpush.bf16.msra.mxu0 %v3643
    %3697 = vmatpush.bf16.msra.mxu0 %v3641
    %3698 = vmatpush.bf16.msra.mxu0 %v3639
    %3699 = vmatpush.bf16.msra.mxu0 %v3637
    %3700 = vmatpush.bf16.msra.mxu0 %v3635
    %3701 = vmatpush.bf16.msra.mxu0 %v3633
    %3702 = vmatpush.bf16.msra.mxu0 %v3631
    %3703 = vmatmul.bf16.gmra.mxu0 %v3481
    %v3704 = vpop.f32.mrf.mxu0
    %v3705 = vadd.f32 %v3531, %v3704
    %v3706 = vpop.f32.mrf.mxu0
    %v3707 = vadd.f32 %v3531, %v3706
    %3708 = vmatmul.bf16.gmra.mxu0 %v3483
    %v3709 = vpop.f32.mrf.mxu0
    %v3710 = vadd.f32 %v3531, %v3709
    %v3711 = vpop.f32.mrf.mxu0
    %v3712 = vadd.f32 %v3531, %v3711
    %3713 = vmatmul.bf16.gmra.mxu0 %v3485
    %v3714 = vpop.f32.mrf.mxu0
    %v3715 = vadd.f32 %v3531, %v3714
    %v3716 = vpop.f32.mrf.mxu0
    %v3717 = vadd.f32 %v3531, %v3716
    %3718 = vmatmul.bf16.gmra.mxu0 %v3487
    %v3719 = vpop.f32.mrf.mxu0
    %v3720 = vadd.f32 %v3531, %v3719
    %v3721 = vpop.f32.mrf.mxu0
    %v3722 = vadd.f32 %v3531, %v3721
    %3723 = vmatmul.bf16.gmra.mxu0 %v3489
    %v3724 = vpop.f32.mrf.mxu0
    %v3725 = vadd.f32 %v3531, %v3724
    %v3726 = vpop.f32.mrf.mxu0
    %v3727 = vadd.f32 %v3531, %v3726
    %3728 = vmatmul.bf16.gmra.mxu0 %v3491
    %v3729 = vpop.f32.mrf.mxu0
    %v3730 = vadd.f32 %v3531, %v3729
    %v3731 = vpop.f32.mrf.mxu0
    %v3732 = vadd.f32 %v3531, %v3731
    %3733 = vmatmul.bf16.gmra.mxu0 %v3493
    %v3734 = vpop.f32.mrf.mxu0
    %v3735 = vadd.f32 %v3531, %v3734
    %v3736 = vpop.f32.mrf.mxu0
    %v3737 = vadd.f32 %v3531, %v3736
    %3738 = vmatmul.bf16.gmra.mxu0 %v3495
    %v3739 = vpop.f32.mrf.mxu0
    %v3740 = vadd.f32 %v3531, %v3739
    %v3741 = vpop.f32.mrf.mxu0
    %v3742 = vadd.f32 %v3531, %v3741
    %3743 = vdwg.mxu0
    %3744 = vmatpush.bf16.msra.mxu0 %v3661
    %3745 = vmatpush.bf16.msra.mxu0 %v3659
    %3746 = vmatpush.bf16.msra.mxu0 %v3657
    %3747 = vmatpush.bf16.msra.mxu0 %v3655
    %3748 = vmatpush.bf16.msra.mxu0 %v3653
    %3749 = vmatpush.bf16.msra.mxu0 %v3651
    %3750 = vmatpush.bf16.msra.mxu0 %v3649
    %3751 = vmatpush.bf16.msra.mxu0 %v3647
    %3752 = vmatmul.bf16.gmra.mxu0 %v3482
    %v3753 = vpop.f32.mrf.mxu0
    %v3754 = vadd.f32 %v3705, %v3753
    %v3755 = vpop.f32.mrf.mxu0
    %v3756 = vadd.f32 %v3707, %v3755
    %3757 = vmatmul.bf16.gmra.mxu0 %v3484
    %v3758 = vpop.f32.mrf.mxu0
    %v3759 = vadd.f32 %v3710, %v3758
    %v3760 = vpop.f32.mrf.mxu0
    %v3761 = vadd.f32 %v3712, %v3760
    %3762 = vmatmul.bf16.gmra.mxu0 %v3486
    %v3763 = vpop.f32.mrf.mxu0
    %v3764 = vadd.f32 %v3715, %v3763
    %v3765 = vpop.f32.mrf.mxu0
    %v3766 = vadd.f32 %v3717, %v3765
    %3767 = vmatmul.bf16.gmra.mxu0 %v3488
    %v3768 = vpop.f32.mrf.mxu0
    %v3769 = vadd.f32 %v3720, %v3768
    %v3770 = vpop.f32.mrf.mxu0
    %v3771 = vadd.f32 %v3722, %v3770
    %3772 = vmatmul.bf16.gmra.mxu0 %v3490
    %v3773 = vpop.f32.mrf.mxu0
    %v3774 = vadd.f32 %v3725, %v3773
    %v3775 = vpop.f32.mrf.mxu0
    %v3776 = vadd.f32 %v3727, %v3775
    %3777 = vmatmul.bf16.gmra.mxu0 %v3492
    %v3778 = vpop.f32.mrf.mxu0
    %v3779 = vadd.f32 %v3730, %v3778
    %v3780 = vpop.f32.mrf.mxu0
    %v3781 = vadd.f32 %v3732, %v3780
    %3782 = vmatmul.bf16.gmra.mxu0 %v3494
    %v3783 = vpop.f32.mrf.mxu0
    %v3784 = vadd.f32 %v3735, %v3783
    %v3785 = vpop.f32.mrf.mxu0
    %v3786 = vadd.f32 %v3737, %v3785
    %3787 = vmatmul.bf16.gmra.mxu0 %v3496
    %v3788 = vpop.f32.mrf.mxu0
    %v3789 = vadd.f32 %v3740, %v3788
    %v3790 = vpop.f32.mrf.mxu0
    %v3791 = vadd.f32 %v3742, %v3790
    %3792 = vdwg.mxu0
    %3793 = vmatpush.bf16.msra.mxu0 %v3646
    %3794 = vmatpush.bf16.msra.mxu0 %v3644
    %3795 = vmatpush.bf16.msra.mxu0 %v3642
    %3796 = vmatpush.bf16.msra.mxu0 %v3640
    %3797 = vmatpush.bf16.msra.mxu0 %v3638
    %3798 = vmatpush.bf16.msra.mxu0 %v3636
    %3799 = vmatpush.bf16.msra.mxu0 %v3634
    %3800 = vmatpush.bf16.msra.mxu0 %v3632
    %3801 = vmatmul.bf16.gmra.mxu0 %v3481
    %v3802 = vpop.f32.mrf.mxu0
    %v3803 = vadd.f32 %v3532, %v3802
    %v3804 = vpop.f32.mrf.mxu0
    %v3805 = vadd.f32 %v3532, %v3804
    %3806 = vmatmul.bf16.gmra.mxu0 %v3483
    %v3807 = vpop.f32.mrf.mxu0
    %v3808 = vadd.f32 %v3532, %v3807
    %v3809 = vpop.f32.mrf.mxu0
    %v3810 = vadd.f32 %v3532, %v3809
    %3811 = vmatmul.bf16.gmra.mxu0 %v3485
    %v3812 = vpop.f32.mrf.mxu0
    %v3813 = vadd.f32 %v3532, %v3812
    %v3814 = vpop.f32.mrf.mxu0
    %v3815 = vadd.f32 %v3532, %v3814
    %3816 = vmatmul.bf16.gmra.mxu0 %v3487
    %v3817 = vpop.f32.mrf.mxu0
    %v3818 = vadd.f32 %v3532, %v3817
    %v3819 = vpop.f32.mrf.mxu0
    %v3820 = vadd.f32 %v3532, %v3819
    %3821 = vmatmul.bf16.gmra.mxu0 %v3489
    %v3822 = vpop.f32.mrf.mxu0
    %v3823 = vadd.f32 %v3532, %v3822
    %v3824 = vpop.f32.mrf.mxu0
    %v3825 = vadd.f32 %v3532, %v3824
    %3826 = vmatmul.bf16.gmra.mxu0 %v3491
    %v3827 = vpop.f32.mrf.mxu0
    %v3828 = vadd.f32 %v3532, %v3827
    %v3829 = vpop.f32.mrf.mxu0
    %v3830 = vadd.f32 %v3532, %v3829
    %3831 = vmatmul.bf16.gmra.mxu0 %v3493
    %v3832 = vpop.f32.mrf.mxu0
    %v3833 = vadd.f32 %v3532, %v3832
    %v3834 = vpop.f32.mrf.mxu0
    %v3835 = vadd.f32 %v3532, %v3834
    %3836 = vmatmul.bf16.gmra.mxu0 %v3495
    %v3837 = vpop.f32.mrf.mxu0
    %v3838 = vadd.f32 %v3532, %v3837
    %v3839 = vpop.f32.mrf.mxu0
    %v3840 = vadd.f32 %v3532, %v3839
    %3841 = vdwg.mxu0
    %3842 = vmatpush.bf16.msra.mxu0 %v3662
    %3843 = vmatpush.bf16.msra.mxu0 %v3660
    %3844 = vmatpush.bf16.msra.mxu0 %v3658
    %3845 = vmatpush.bf16.msra.mxu0 %v3656
    %3846 = vmatpush.bf16.msra.mxu0 %v3654
    %3847 = vmatpush.bf16.msra.mxu0 %v3652
    %3848 = vmatpush.bf16.msra.mxu0 %v3650
    %3849 = vmatpush.bf16.msra.mxu0 %v3648
    %3850 = vmatmul.bf16.gmra.mxu0 %v3482
    %v3851 = vpop.f32.mrf.mxu0
    %v3852 = vadd.f32 %v3803, %v3851
    %v3853 = vpop.f32.mrf.mxu0
    %v3854 = vadd.f32 %v3805, %v3853
    %3855 = vmatmul.bf16.gmra.mxu0 %v3484
    %v3856 = vpop.f32.mrf.mxu0
    %v3857 = vadd.f32 %v3808, %v3856
    %v3858 = vpop.f32.mrf.mxu0
    %v3859 = vadd.f32 %v3810, %v3858
    %3860 = vmatmul.bf16.gmra.mxu0 %v3486
    %v3861 = vpop.f32.mrf.mxu0
    %v3862 = vadd.f32 %v3813, %v3861
    %v3863 = vpop.f32.mrf.mxu0
    %v3864 = vadd.f32 %v3815, %v3863
    %3865 = vmatmul.bf16.gmra.mxu0 %v3488
    %v3866 = vpop.f32.mrf.mxu0
    %v3867 = vadd.f32 %v3818, %v3866
    %v3868 = vpop.f32.mrf.mxu0
    %v3869 = vadd.f32 %v3820, %v3868
    %3870 = vmatmul.bf16.gmra.mxu0 %v3490
    %v3871 = vpop.f32.mrf.mxu0
    %v3872 = vadd.f32 %v3823, %v3871
    %v3873 = vpop.f32.mrf.mxu0
    %v3874 = vadd.f32 %v3825, %v3873
    %3875 = vmatmul.bf16.gmra.mxu0 %v3492
    %v3876 = vpop.f32.mrf.mxu0
    %v3877 = vadd.f32 %v3828, %v3876
    %v3878 = vpop.f32.mrf.mxu0
    %v3879 = vadd.f32 %v3830, %v3878
    %3880 = vmatmul.bf16.gmra.mxu0 %v3494
    %v3881 = vpop.f32.mrf.mxu0
    %v3882 = vadd.f32 %v3833, %v3881
    %v3883 = vpop.f32.mrf.mxu0
    %v3884 = vadd.f32 %v3835, %v3883
    %3885 = vmatmul.bf16.gmra.mxu0 %v3496
    %v3886 = vpop.f32.mrf.mxu0
    %v3887 = vadd.f32 %v3838, %v3886
    %v3888 = vpop.f32.mrf.mxu0
    %v3889 = vadd.f32 %v3840, %v3888
    %3890 = vdwg.mxu0
    %v3891 = vtanh.pop %v3754
    %v3892 = vtanh.pop %v3852
    %v3893 = vtanh.pop %v3756
    %v3894 = vtanh.pop %v3854
    %v3895 = vtanh.pop %v3759
    %v3896 = vtanh.pop %v3857
    %v3897 = vtanh.pop %v3761
    %v3898 = vtanh.pop %v3859
    %v3899 = vtanh.pop %v3764
    %v3900 = vtanh.pop %v3862
    %v3901 = vtanh.pop %v3766
    %v3902 = vtanh.pop %v3864
    %v3903 = vtanh.pop %v3769
    %v3904 = vtanh.pop %v3867
    %v3905 = vtanh.pop %v3771
    %v3906 = vtanh.pop %v3869
    %v3907 = vtanh.pop %v3774
    %v3908 = vtanh.pop %v3872
    %v3909 = vtanh.pop %v3776
    %v3910 = vtanh.pop %v3874
    %v3911 = vtanh.pop %v3779
    %v3912 = vtanh.pop %v3877
    %v3913 = vtanh.pop %v3781
    %v3914 = vtanh.pop %v3879
    %v3915 = vtanh.pop %v3784
    %v3916 = vtanh.pop %v3882
    %v3917 = vtanh.pop %v3786
    %v3918 = vtanh.pop %v3884
    %v3919 = vtanh.pop %v3789
    %v3920 = vtanh.pop %v3887
    %v3921 = vtanh.pop %v3791
    %v3922 = vtanh.pop %v3889
    %v3923 = vpack.c.bf16 %v3893, %v3891
    %v3924 = vpack.c.bf16 %v3894, %v3892
    %v3925 = vpack.c.bf16 %v3897, %v3895
    %v3926 = vpack.c.bf16 %v3898, %v3896
    %v3927 = vpack.c.bf16 %v3901, %v3899
    %v3928 = vpack.c.bf16 %v3902, %v3900
    %v3929 = vpack.c.bf16 %v3905, %v3903
    %v3930 = vpack.c.bf16 %v3906, %v3904
    %v3931 = vpack.c.bf16 %v3909, %v3907
    %v3932 = vpack.c.bf16 %v3910, %v3908
    %v3933 = vpack.c.bf16 %v3913, %v3911
    %v3934 = vpack.c.bf16 %v3914, %v3912
    %v3935 = vpack.c.bf16 %v3917, %v3915
    %v3936 = vpack.c.bf16 %v3918, %v3916
    %v3937 = vpack.c.bf16 %v3921, %v3919
    %v3938 = vpack.c.bf16 %v3922, %v3920
    %v3939 = vld [vmem:[#allocation31] sm:$0xf]
    %v3940 = vld [vmem:[#allocation31 + $0x4] sm:$0xf]
    %v3941 = vld [vmem:[#allocation31 + $0x8] sm:$0xf]
    %v3942 = vld [vmem:[#allocation31 + $0xc] sm:$0xf]
    %v3943 = vld [vmem:[#allocation31 + $0x10] sm:$0xf]
    %v3944 = vld [vmem:[#allocation31 + $0x14] sm:$0xf]
    %v3945 = vld [vmem:[#allocation31 + $0x18] sm:$0xf]
    %v3946 = vld [vmem:[#allocation31 + $0x1c] sm:$0xf]
    %v3947 = vld [vmem:[#allocation31 + $0x20] sm:$0xf]
    %v3948 = vld [vmem:[#allocation31 + $0x24] sm:$0xf]
    %v3949 = vld [vmem:[#allocation31 + $0x28] sm:$0xf]
    %v3950 = vld [vmem:[#allocation31 + $0x2c] sm:$0xf]
    %v3951 = vld [vmem:[#allocation31 + $0x30] sm:$0xf]
    %v3952 = vld [vmem:[#allocation31 + $0x34] sm:$0xf]
    %v3953 = vld [vmem:[#allocation31 + $0x38] sm:$0xf]
    %v3954 = vld [vmem:[#allocation31 + $0x3c] sm:$0xf]
    %v3955 = vld [vmem:[#allocation31 + $0x40] sm:$0xf]
    %v3956 = vld [vmem:[#allocation31 + $0x44] sm:$0xf]
    %v3957 = vld [vmem:[#allocation31 + $0x48] sm:$0xf]
    %v3958 = vld [vmem:[#allocation31 + $0x4c] sm:$0xf]
    %v3959 = vld [vmem:[#allocation31 + $0x50] sm:$0xf]
    %v3960 = vld [vmem:[#allocation31 + $0x54] sm:$0xf]
    %v3961 = vld [vmem:[#allocation31 + $0x58] sm:$0xf]
    %v3962 = vld [vmem:[#allocation31 + $0x5c] sm:$0xf]
    %v3963 = vld [vmem:[#allocation31 + $0x60] sm:$0xf]
    %v3964 = vld [vmem:[#allocation31 + $0x64] sm:$0xf]
    %v3965 = vld [vmem:[#allocation31 + $0x68] sm:$0xf]
    %v3966 = vld [vmem:[#allocation31 + $0x6c] sm:$0xf]
    %v3967 = vld [vmem:[#allocation31 + $0x70] sm:$0xf]
    %v3968 = vld [vmem:[#allocation31 + $0x74] sm:$0xf]
    %v3969 = vld [vmem:[#allocation31 + $0x78] sm:$0xf]
    %v3970 = vld [vmem:[#allocation31 + $0x7c] sm:$0xf]
    %v3971 = vld [vmem:[#allocation32] sm:$0x1]
    %v3973 = vperm.slane %v3971, 0
    %v4007 = vunpack.c.l.b16 %v3939
    %v4008 = vunpack.c.l.b16 %v3940
    %v4009 = vunpack.c.l.b16 %v3941
    %v4010 = vunpack.c.l.b16 %v3942
    %v4011 = vunpack.c.l.b16 %v3943
    %v4012 = vunpack.c.l.b16 %v3944
    %v4013 = vunpack.c.l.b16 %v3945
    %v4014 = vunpack.c.l.b16 %v3946
    %v4015 = vunpack.c.l.b16 %v3947
    %v4016 = vunpack.c.l.b16 %v3948
    %v4017 = vunpack.c.l.b16 %v3949
    %v4018 = vunpack.c.l.b16 %v3950
    %v4019 = vunpack.c.l.b16 %v3951
    %v4020 = vunpack.c.l.b16 %v3952
    %v4021 = vunpack.c.l.b16 %v3953
    %v4022 = vunpack.c.l.b16 %v3954
    %v4023 = vunpack.c.l.b16 %v3955
    %v4024 = vunpack.c.l.b16 %v3956
    %v4025 = vunpack.c.l.b16 %v3957
    %v4026 = vunpack.c.l.b16 %v3958
    %v4027 = vunpack.c.l.b16 %v3959
    %v4028 = vunpack.c.l.b16 %v3960
    %v4029 = vunpack.c.l.b16 %v3961
    %v4030 = vunpack.c.l.b16 %v3962
    %v4031 = vunpack.c.l.b16 %v3963
    %v4032 = vunpack.c.l.b16 %v3964
    %v4033 = vunpack.c.l.b16 %v3965
    %v4034 = vunpack.c.l.b16 %v3966
    %v4035 = vunpack.c.l.b16 %v3967
    %v4036 = vunpack.c.l.b16 %v3968
    %v4037 = vunpack.c.l.b16 %v3969
    %v4038 = vunpack.c.l.b16 %v3970
    %v4039 = vpack.c.b16 %v4008, %v4007
    %v4040 = vpack.c.b16 %v4010, %v4009
    %v4041 = vpack.c.b16 %v4012, %v4011
    %v4042 = vpack.c.b16 %v4014, %v4013
    %v4043 = vpack.c.b16 %v4016, %v4015
    %v4044 = vpack.c.b16 %v4018, %v4017
    %v4045 = vpack.c.b16 %v4020, %v4019
    %v4046 = vpack.c.b16 %v4022, %v4021
    %v4047 = vpack.c.b16 %v4024, %v4023
    %v4048 = vpack.c.b16 %v4026, %v4025
    %v4049 = vpack.c.b16 %v4028, %v4027
    %v4050 = vpack.c.b16 %v4030, %v4029
    %v4051 = vpack.c.b16 %v4032, %v4031
    %v4052 = vpack.c.b16 %v4034, %v4033
    %v4053 = vpack.c.b16 %v4036, %v4035
    %v4054 = vpack.c.b16 %v4038, %v4037
    %4071 = vmatpush.bf16.msra.mxu0 %v4046
    %4072 = vmatpush.bf16.msra.mxu0 %v4045
    %4073 = vmatpush.bf16.msra.mxu0 %v4044
    %4074 = vmatpush.bf16.msra.mxu0 %v4043
    %4075 = vmatpush.bf16.msra.mxu0 %v4042
    %4076 = vmatpush.bf16.msra.mxu0 %v4041
    %4077 = vmatpush.bf16.msra.mxu0 %v4040
    %4078 = vmatpush.bf16.msra.mxu0 %v4039
    %4079 = vmatmul.bf16.gmra.mxu0 %v3923
    %v4080 = vpop.f32.mrf.mxu0
    %v4081 = vadd.f32 %v3973, %v4080
    %v4082 = vpop.f32.mrf.mxu0
    %v4083 = vadd.f32 %v3973, %v4082
    %4084 = vmatmul.bf16.gmra.mxu0 %v3925
    %v4085 = vpop.f32.mrf.mxu0
    %v4086 = vadd.f32 %v3973, %v4085
    %v4087 = vpop.f32.mrf.mxu0
    %v4088 = vadd.f32 %v3973, %v4087
    %4089 = vmatmul.bf16.gmra.mxu0 %v3927
    %v4090 = vpop.f32.mrf.mxu0
    %v4091 = vadd.f32 %v3973, %v4090
    %v4092 = vpop.f32.mrf.mxu0
    %v4093 = vadd.f32 %v3973, %v4092
    %4094 = vmatmul.bf16.gmra.mxu0 %v3929
    %v4095 = vpop.f32.mrf.mxu0
    %v4096 = vadd.f32 %v3973, %v4095
    %v4097 = vpop.f32.mrf.mxu0
    %v4098 = vadd.f32 %v3973, %v4097
    %4099 = vmatmul.bf16.gmra.mxu0 %v3931
    %v4100 = vpop.f32.mrf.mxu0
    %v4101 = vadd.f32 %v3973, %v4100
    %v4102 = vpop.f32.mrf.mxu0
    %v4103 = vadd.f32 %v3973, %v4102
    %4104 = vmatmul.bf16.gmra.mxu0 %v3933
    %v4105 = vpop.f32.mrf.mxu0
    %v4106 = vadd.f32 %v3973, %v4105
    %v4107 = vpop.f32.mrf.mxu0
    %v4108 = vadd.f32 %v3973, %v4107
    %4109 = vmatmul.bf16.gmra.mxu0 %v3935
    %v4110 = vpop.f32.mrf.mxu0
    %v4111 = vadd.f32 %v3973, %v4110
    %v4112 = vpop.f32.mrf.mxu0
    %v4113 = vadd.f32 %v3973, %v4112
    %4114 = vmatmul.bf16.gmra.mxu0 %v3937
    %v4115 = vpop.f32.mrf.mxu0
    %v4116 = vadd.f32 %v3973, %v4115
    %v4117 = vpop.f32.mrf.mxu0
    %v4118 = vadd.f32 %v3973, %v4117
    %4119 = vdwg.mxu0
    %4120 = vmatpush.bf16.msra.mxu0 %v4054
    %4121 = vmatpush.bf16.msra.mxu0 %v4053
    %4122 = vmatpush.bf16.msra.mxu0 %v4052
    %4123 = vmatpush.bf16.msra.mxu0 %v4051
    %4124 = vmatpush.bf16.msra.mxu0 %v4050
    %4125 = vmatpush.bf16.msra.mxu0 %v4049
    %4126 = vmatpush.bf16.msra.mxu0 %v4048
    %4127 = vmatpush.bf16.msra.mxu0 %v4047
    %4128 = vmatmul.bf16.gmra.mxu0 %v3924
    %v4129 = vpop.f32.mrf.mxu0
    %v4130 = vadd.f32 %v4081, %v4129
    %v4131 = vpop.f32.mrf.mxu0
    %v4132 = vadd.f32 %v4083, %v4131
    %4133 = vmatmul.bf16.gmra.mxu0 %v3926
    %v4134 = vpop.f32.mrf.mxu0
    %v4135 = vadd.f32 %v4086, %v4134
    %v4136 = vpop.f32.mrf.mxu0
    %v4137 = vadd.f32 %v4088, %v4136
    %4138 = vmatmul.bf16.gmra.mxu0 %v3928
    %v4139 = vpop.f32.mrf.mxu0
    %v4140 = vadd.f32 %v4091, %v4139
    %v4141 = vpop.f32.mrf.mxu0
    %v4142 = vadd.f32 %v4093, %v4141
    %4143 = vmatmul.bf16.gmra.mxu0 %v3930
    %v4144 = vpop.f32.mrf.mxu0
    %v4145 = vadd.f32 %v4096, %v4144
    %v4146 = vpop.f32.mrf.mxu0
    %v4147 = vadd.f32 %v4098, %v4146
    %4148 = vmatmul.bf16.gmra.mxu0 %v3932
    %v4149 = vpop.f32.mrf.mxu0
    %v4150 = vadd.f32 %v4101, %v4149
    %v4151 = vpop.f32.mrf.mxu0
    %v4152 = vadd.f32 %v4103, %v4151
    %4153 = vmatmul.bf16.gmra.mxu0 %v3934
    %v4154 = vpop.f32.mrf.mxu0
    %v4155 = vadd.f32 %v4106, %v4154
    %v4156 = vpop.f32.mrf.mxu0
    %v4157 = vadd.f32 %v4108, %v4156
    %4158 = vmatmul.bf16.gmra.mxu0 %v3936
    %v4159 = vpop.f32.mrf.mxu0
    %v4160 = vadd.f32 %v4111, %v4159
    %v4161 = vpop.f32.mrf.mxu0
    %v4162 = vadd.f32 %v4113, %v4161
    %4163 = vmatmul.bf16.gmra.mxu0 %v3938
    %v4164 = vpop.f32.mrf.mxu0
    %v4165 = vadd.f32 %v4116, %v4164
    %v4166 = vpop.f32.mrf.mxu0
    %v4167 = vadd.f32 %v4118, %v4166
    %4168 = vdwg.mxu0
    %v4169 = vld [vmem:[#allocation2] sm:$0xff]
    %v4170 = vpack.c.bf16 %v4169, %v4169
    %vm4171 = vcmask 261120
    %v4173 = vsel %vm4171, %v4170, 0
    %4175 = vmatpush.bf16.msra.mxu0 0
    %4176 = vmatpush.bf16.msra.mxu0 0
    %4177 = vmatpush.bf16.msra.mxu0 0
    %4178 = vmatpush.bf16.msra.mxu0 0
    %4179 = vmatpush.bf16.msra.mxu0 0
    %4180 = vmatpush.bf16.msra.mxu0 0
    %4181 = vmatpush.bf16.msra.mxu0 %v1488
    %4182 = vmatpush.bf16.msra.mxu0 %v1487
    %4183 = vmatmul.bf16.gmra.mxu0 %v4173
    %v4184 = vpop.f32.mrf.mxu0
    %v4185 = vadd.f32 0.0, %v4184
    %v4186 = vpop.f32.mrf.mxu0
    %4187 = vdwg.mxu0
    %v4188 = vpack.c.bf16 %v4185, %v4185
    %v4189 = vld [vmem:[#allocation22] sm:$0xff]
    %v4190 = vld [vmem:[#allocation22 + $0x8] sm:$0xff]
    %v4191 = vld [vmem:[#allocation22 + $0x10] sm:$0xff]
    %v4192 = vld [vmem:[#allocation22 + $0x18] sm:$0xff]
    %v4193 = vld [vmem:[#allocation22 + $0x20] sm:$0xff]
    %v4194 = vld [vmem:[#allocation22 + $0x28] sm:$0xff]
    %v4195 = vld [vmem:[#allocation22 + $0x30] sm:$0xff]
    %v4196 = vld [vmem:[#allocation22 + $0x38] sm:$0xff]
    %v4197 = vld [vmem:[#allocation22 + $0x40] sm:$0xff]
    %v4198 = vld [vmem:[#allocation22 + $0x48] sm:$0xff]
    %v4199 = vld [vmem:[#allocation22 + $0x50] sm:$0xff]
    %v4200 = vld [vmem:[#allocation22 + $0x58] sm:$0xff]
    %v4201 = vld [vmem:[#allocation22 + $0x60] sm:$0xff]
    %v4202 = vld [vmem:[#allocation22 + $0x68] sm:$0xff]
    %v4203 = vld [vmem:[#allocation22 + $0x70] sm:$0xff]
    %v4204 = vld [vmem:[#allocation22 + $0x78] sm:$0xff]
    %v4205 = vld [vmem:[%s14] sm:$0x3]
    %v4207 = vperm.slane %v4205, 0
    %v4208 = vperm.slane %v4205, 1
    %v4227 = vunpack.c.l.b16 %v4189
    %v4228 = vunpack.c.h.b16 %v4189
    %v4229 = vunpack.c.l.b16 %v4190
    %v4230 = vunpack.c.h.b16 %v4190
    %v4231 = vunpack.c.l.b16 %v4191
    %v4232 = vunpack.c.h.b16 %v4191
    %v4233 = vunpack.c.l.b16 %v4192
    %v4234 = vunpack.c.h.b16 %v4192
    %v4235 = vunpack.c.l.b16 %v4193
    %v4236 = vunpack.c.h.b16 %v4193
    %v4237 = vunpack.c.l.b16 %v4194
    %v4238 = vunpack.c.h.b16 %v4194
    %v4239 = vunpack.c.l.b16 %v4195
    %v4240 = vunpack.c.h.b16 %v4195
    %v4241 = vunpack.c.l.b16 %v4196
    %v4242 = vunpack.c.h.b16 %v4196
    %v4243 = vunpack.c.l.b16 %v4197
    %v4244 = vunpack.c.h.b16 %v4197
    %v4245 = vunpack.c.l.b16 %v4198
    %v4246 = vunpack.c.h.b16 %v4198
    %v4247 = vunpack.c.l.b16 %v4199
    %v4248 = vunpack.c.h.b16 %v4199
    %v4249 = vunpack.c.l.b16 %v4200
    %v4250 = vunpack.c.h.b16 %v4200
    %v4251 = vunpack.c.l.b16 %v4201
    %v4252 = vunpack.c.h.b16 %v4201
    %v4253 = vunpack.c.l.b16 %v4202
    %v4254 = vunpack.c.h.b16 %v4202
    %v4255 = vunpack.c.l.b16 %v4203
    %v4256 = vunpack.c.h.b16 %v4203
    %v4257 = vunpack.c.l.b16 %v4204
    %v4258 = vunpack.c.h.b16 %v4204
    %v4259 = vpack.c.b16 %v4229, %v4227
    %v4260 = vpack.c.b16 %v4230, %v4228
    %v4261 = vpack.c.b16 %v4233, %v4231
    %v4262 = vpack.c.b16 %v4234, %v4232
    %v4263 = vpack.c.b16 %v4237, %v4235
    %v4264 = vpack.c.b16 %v4238, %v4236
    %v4265 = vpack.c.b16 %v4241, %v4239
    %v4266 = vpack.c.b16 %v4242, %v4240
    %v4267 = vpack.c.b16 %v4245, %v4243
    %v4268 = vpack.c.b16 %v4246, %v4244
    %v4269 = vpack.c.b16 %v4249, %v4247
    %v4270 = vpack.c.b16 %v4250, %v4248
    %v4271 = vpack.c.b16 %v4253, %v4251
    %v4272 = vpack.c.b16 %v4254, %v4252
    %v4273 = vpack.c.b16 %v4257, %v4255
    %v4274 = vpack.c.b16 %v4258, %v4256
    %4291 = vmatpush.bf16.msra.mxu0 %v4273
    %4292 = vmatpush.bf16.msra.mxu0 %v4271
    %4293 = vmatpush.bf16.msra.mxu0 %v4269
    %4294 = vmatpush.bf16.msra.mxu0 %v4267
    %4295 = vmatpush.bf16.msra.mxu0 %v4265
    %4296 = vmatpush.bf16.msra.mxu0 %v4263
    %4297 = vmatpush.bf16.msra.mxu0 %v4261
    %4298 = vmatpush.bf16.msra.mxu0 %v4259
    %4299 = vmatmul.bf16.gmra.mxu0 %v4188
    %v4300 = vpop.f32.mrf.mxu0
    %v4301 = vadd.f32 %v4207, %v4300
    %v4302 = vpop.f32.mrf.mxu0
    %4303 = vdwg.mxu0
    %4304 = vmatpush.bf16.msra.mxu0 %v4274
    %4305 = vmatpush.bf16.msra.mxu0 %v4272
    %4306 = vmatpush.bf16.msra.mxu0 %v4270
    %4307 = vmatpush.bf16.msra.mxu0 %v4268
    %4308 = vmatpush.bf16.msra.mxu0 %v4266
    %4309 = vmatpush.bf16.msra.mxu0 %v4264
    %4310 = vmatpush.bf16.msra.mxu0 %v4262
    %4311 = vmatpush.bf16.msra.mxu0 %v4260
    %4312 = vmatmul.bf16.gmra.mxu0 %v4188
    %v4313 = vpop.f32.mrf.mxu0
    %v4314 = vadd.f32 %v4208, %v4313
    %v4315 = vpop.f32.mrf.mxu0
    %4316 = vdwg.mxu0
    %v4317 = vtanh.pop %v4301
    %v4318 = vtanh.pop %v4314
    %v4319 = vpack.c.bf16 %v4317, %v4317
    %v4320 = vpack.c.bf16 %v4318, %v4318
    %v4321 = vld [vmem:[#allocation23] sm:$0xff]
    %v4322 = vld [vmem:[#allocation23 + $0x8] sm:$0xff]
    %v4323 = vld [vmem:[#allocation23 + $0x10] sm:$0xff]
    %v4324 = vld [vmem:[#allocation23 + $0x18] sm:$0xff]
    %v4325 = vld [vmem:[#allocation23 + $0x20] sm:$0xff]
    %v4326 = vld [vmem:[#allocation23 + $0x28] sm:$0xff]
    %v4327 = vld [vmem:[#allocation23 + $0x30] sm:$0xff]
    %v4328 = vld [vmem:[#allocation23 + $0x38] sm:$0xff]
    %v4329 = vld [vmem:[#allocation23 + $0x40] sm:$0xff]
    %v4330 = vld [vmem:[#allocation23 + $0x48] sm:$0xff]
    %v4331 = vld [vmem:[#allocation23 + $0x50] sm:$0xff]
    %v4332 = vld [vmem:[#allocation23 + $0x58] sm:$0xff]
    %v4333 = vld [vmem:[#allocation23 + $0x60] sm:$0xff]
    %v4334 = vld [vmem:[#allocation23 + $0x68] sm:$0xff]
    %v4335 = vld [vmem:[#allocation23 + $0x70] sm:$0xff]
    %v4336 = vld [vmem:[#allocation23 + $0x78] sm:$0xff]
    %v4337 = vld [vmem:[#allocation23 + $0x80] sm:$0xff]
    %v4338 = vld [vmem:[#allocation23 + $0x88] sm:$0xff]
    %v4339 = vld [vmem:[#allocation23 + $0x90] sm:$0xff]
    %v4340 = vld [vmem:[#allocation23 + $0x98] sm:$0xff]
    %v4341 = vld [vmem:[#allocation23 + $0xa0] sm:$0xff]
    %v4342 = vld [vmem:[#allocation23 + $0xa8] sm:$0xff]
    %v4343 = vld [vmem:[#allocation23 + $0xb0] sm:$0xff]
    %v4344 = vld [vmem:[#allocation23 + $0xb8] sm:$0xff]
    %v4345 = vld [vmem:[#allocation23 + $0xc0] sm:$0xff]
    %v4346 = vld [vmem:[#allocation23 + $0xc8] sm:$0xff]
    %v4347 = vld [vmem:[#allocation23 + $0xd0] sm:$0xff]
    %v4348 = vld [vmem:[#allocation23 + $0xd8] sm:$0xff]
    %v4349 = vld [vmem:[#allocation23 + $0xe0] sm:$0xff]
    %v4350 = vld [vmem:[#allocation23 + $0xe8] sm:$0xff]
    %v4351 = vld [vmem:[#allocation23 + $0xf0] sm:$0xff]
    %v4352 = vld [vmem:[#allocation23 + $0xf8] sm:$0xff]
    %v4353 = vld [vmem:[%s16] sm:$0x3]
    %v4355 = vperm.slane %v4353, 0
    %v4356 = vperm.slane %v4353, 1
    %v4391 = vunpack.c.l.b16 %v4321
    %v4392 = vunpack.c.h.b16 %v4321
    %v4393 = vunpack.c.l.b16 %v4322
    %v4394 = vunpack.c.h.b16 %v4322
    %v4395 = vunpack.c.l.b16 %v4323
    %v4396 = vunpack.c.h.b16 %v4323
    %v4397 = vunpack.c.l.b16 %v4324
    %v4398 = vunpack.c.h.b16 %v4324
    %v4399 = vunpack.c.l.b16 %v4325
    %v4400 = vunpack.c.h.b16 %v4325
    %v4401 = vunpack.c.l.b16 %v4326
    %v4402 = vunpack.c.h.b16 %v4326
    %v4403 = vunpack.c.l.b16 %v4327
    %v4404 = vunpack.c.h.b16 %v4327
    %v4405 = vunpack.c.l.b16 %v4328
    %v4406 = vunpack.c.h.b16 %v4328
    %v4407 = vunpack.c.l.b16 %v4329
    %v4408 = vunpack.c.h.b16 %v4329
    %v4409 = vunpack.c.l.b16 %v4330
    %v4410 = vunpack.c.h.b16 %v4330
    %v4411 = vunpack.c.l.b16 %v4331
    %v4412 = vunpack.c.h.b16 %v4331
    %v4413 = vunpack.c.l.b16 %v4332
    %v4414 = vunpack.c.h.b16 %v4332
    %v4415 = vunpack.c.l.b16 %v4333
    %v4416 = vunpack.c.h.b16 %v4333
    %v4417 = vunpack.c.l.b16 %v4334
    %v4418 = vunpack.c.h.b16 %v4334
    %v4419 = vunpack.c.l.b16 %v4335
    %v4420 = vunpack.c.h.b16 %v4335
    %v4421 = vunpack.c.l.b16 %v4336
    %v4422 = vunpack.c.h.b16 %v4336
    %v4423 = vunpack.c.l.b16 %v4337
    %v4424 = vunpack.c.h.b16 %v4337
    %v4425 = vunpack.c.l.b16 %v4338
    %v4426 = vunpack.c.h.b16 %v4338
    %v4427 = vunpack.c.l.b16 %v4339
    %v4428 = vunpack.c.h.b16 %v4339
    %v4429 = vunpack.c.l.b16 %v4340
    %v4430 = vunpack.c.h.b16 %v4340
    %v4431 = vunpack.c.l.b16 %v4341
    %v4432 = vunpack.c.h.b16 %v4341
    %v4433 = vunpack.c.l.b16 %v4342
    %v4434 = vunpack.c.h.b16 %v4342
    %v4435 = vunpack.c.l.b16 %v4343
    %v4436 = vunpack.c.h.b16 %v4343
    %v4437 = vunpack.c.l.b16 %v4344
    %v4438 = vunpack.c.h.b16 %v4344
    %v4439 = vunpack.c.l.b16 %v4345
    %v4440 = vunpack.c.h.b16 %v4345
    %v4441 = vunpack.c.l.b16 %v4346
    %v4442 = vunpack.c.h.b16 %v4346
    %v4443 = vunpack.c.l.b16 %v4347
    %v4444 = vunpack.c.h.b16 %v4347
    %v4445 = vunpack.c.l.b16 %v4348
    %v4446 = vunpack.c.h.b16 %v4348
    %v4447 = vunpack.c.l.b16 %v4349
    %v4448 = vunpack.c.h.b16 %v4349
    %v4449 = vunpack.c.l.b16 %v4350
    %v4450 = vunpack.c.h.b16 %v4350
    %v4451 = vunpack.c.l.b16 %v4351
    %v4452 = vunpack.c.h.b16 %v4351
    %v4453 = vunpack.c.l.b16 %v4352
    %v4454 = vunpack.c.h.b16 %v4352
    %v4455 = vpack.c.b16 %v4393, %v4391
    %v4456 = vpack.c.b16 %v4394, %v4392
    %v4457 = vpack.c.b16 %v4397, %v4395
    %v4458 = vpack.c.b16 %v4398, %v4396
    %v4459 = vpack.c.b16 %v4401, %v4399
    %v4460 = vpack.c.b16 %v4402, %v4400
    %v4461 = vpack.c.b16 %v4405, %v4403
    %v4462 = vpack.c.b16 %v4406, %v4404
    %v4463 = vpack.c.b16 %v4409, %v4407
    %v4464 = vpack.c.b16 %v4410, %v4408
    %v4465 = vpack.c.b16 %v4413, %v4411
    %v4466 = vpack.c.b16 %v4414, %v4412
    %v4467 = vpack.c.b16 %v4417, %v4415
    %v4468 = vpack.c.b16 %v4418, %v4416
    %v4469 = vpack.c.b16 %v4421, %v4419
    %v4470 = vpack.c.b16 %v4422, %v4420
    %v4471 = vpack.c.b16 %v4425, %v4423
    %v4472 = vpack.c.b16 %v4426, %v4424
    %v4473 = vpack.c.b16 %v4429, %v4427
    %v4474 = vpack.c.b16 %v4430, %v4428
    %v4475 = vpack.c.b16 %v4433, %v4431
    %v4476 = vpack.c.b16 %v4434, %v4432
    %v4477 = vpack.c.b16 %v4437, %v4435
    %v4478 = vpack.c.b16 %v4438, %v4436
    %v4479 = vpack.c.b16 %v4441, %v4439
    %v4480 = vpack.c.b16 %v4442, %v4440
    %v4481 = vpack.c.b16 %v4445, %v4443
    %v4482 = vpack.c.b16 %v4446, %v4444
    %v4483 = vpack.c.b16 %v4449, %v4447
    %v4484 = vpack.c.b16 %v4450, %v4448
    %v4485 = vpack.c.b16 %v4453, %v4451
    %v4486 = vpack.c.b16 %v4454, %v4452
    %4519 = vmatpush.bf16.msra.mxu0 %v4469
    %4520 = vmatpush.bf16.msra.mxu0 %v4467
    %4521 = vmatpush.bf16.msra.mxu0 %v4465
    %4522 = vmatpush.bf16.msra.mxu0 %v4463
    %4523 = vmatpush.bf16.msra.mxu0 %v4461
    %4524 = vmatpush.bf16.msra.mxu0 %v4459
    %4525 = vmatpush.bf16.msra.mxu0 %v4457
    %4526 = vmatpush.bf16.msra.mxu0 %v4455
    %4527 = vmatmul.bf16.gmra.mxu0 %v4319
    %v4528 = vpop.f32.mrf.mxu0
    %v4529 = vadd.f32 %v4355, %v4528
    %v4530 = vpop.f32.mrf.mxu0
    %4531 = vdwg.mxu0
    %4532 = vmatpush.bf16.msra.mxu0 %v4485
    %4533 = vmatpush.bf16.msra.mxu0 %v4483
    %4534 = vmatpush.bf16.msra.mxu0 %v4481
    %4535 = vmatpush.bf16.msra.mxu0 %v4479
    %4536 = vmatpush.bf16.msra.mxu0 %v4477
    %4537 = vmatpush.bf16.msra.mxu0 %v4475
    %4538 = vmatpush.bf16.msra.mxu0 %v4473
    %4539 = vmatpush.bf16.msra.mxu0 %v4471
    %4540 = vmatmul.bf16.gmra.mxu0 %v4320
    %v4541 = vpop.f32.mrf.mxu0
    %v4542 = vadd.f32 %v4529, %v4541
    %v4543 = vpop.f32.mrf.mxu0
    %4544 = vdwg.mxu0
    %4545 = vmatpush.bf16.msra.mxu0 %v4470
    %4546 = vmatpush.bf16.msra.mxu0 %v4468
    %4547 = vmatpush.bf16.msra.mxu0 %v4466
    %4548 = vmatpush.bf16.msra.mxu0 %v4464
    %4549 = vmatpush.bf16.msra.mxu0 %v4462
    %4550 = vmatpush.bf16.msra.mxu0 %v4460
    %4551 = vmatpush.bf16.msra.mxu0 %v4458
    %4552 = vmatpush.bf16.msra.mxu0 %v4456
    %4553 = vmatmul.bf16.gmra.mxu0 %v4319
    %v4554 = vpop.f32.mrf.mxu0
    %v4555 = vadd.f32 %v4356, %v4554
    %v4556 = vpop.f32.mrf.mxu0
    %4557 = vdwg.mxu0
    %4558 = vmatpush.bf16.msra.mxu0 %v4486
    %4559 = vmatpush.bf16.msra.mxu0 %v4484
    %4560 = vmatpush.bf16.msra.mxu0 %v4482
    %4561 = vmatpush.bf16.msra.mxu0 %v4480
    %4562 = vmatpush.bf16.msra.mxu0 %v4478
    %4563 = vmatpush.bf16.msra.mxu0 %v4476
    %4564 = vmatpush.bf16.msra.mxu0 %v4474
    %4565 = vmatpush.bf16.msra.mxu0 %v4472
    %4566 = vmatmul.bf16.gmra.mxu0 %v4320
    %v4567 = vpop.f32.mrf.mxu0
    %v4568 = vadd.f32 %v4555, %v4567
    %v4569 = vpop.f32.mrf.mxu0
    %4570 = vdwg.mxu0
    %v4571 = vtanh.pop %v4542
    %v4572 = vtanh.pop %v4568
    %v4573 = vpack.c.bf16 %v4571, %v4571
    %v4574 = vpack.c.bf16 %v4572, %v4572
    %v4575 = vld [vmem:[#allocation25] sm:$0xf]
    %v4576 = vld [vmem:[#allocation25 + $0x4] sm:$0xf]
    %v4577 = vld [vmem:[#allocation25 + $0x8] sm:$0xf]
    %v4578 = vld [vmem:[#allocation25 + $0xc] sm:$0xf]
    %v4579 = vld [vmem:[#allocation25 + $0x10] sm:$0xf]
    %v4580 = vld [vmem:[#allocation25 + $0x14] sm:$0xf]
    %v4581 = vld [vmem:[#allocation25 + $0x18] sm:$0xf]
    %v4582 = vld [vmem:[#allocation25 + $0x1c] sm:$0xf]
    %v4583 = vld [vmem:[#allocation25 + $0x20] sm:$0xf]
    %v4584 = vld [vmem:[#allocation25 + $0x24] sm:$0xf]
    %v4585 = vld [vmem:[#allocation25 + $0x28] sm:$0xf]
    %v4586 = vld [vmem:[#allocation25 + $0x2c] sm:$0xf]
    %v4587 = vld [vmem:[#allocation25 + $0x30] sm:$0xf]
    %v4588 = vld [vmem:[#allocation25 + $0x34] sm:$0xf]
    %v4589 = vld [vmem:[#allocation25 + $0x38] sm:$0xf]
    %v4590 = vld [vmem:[#allocation25 + $0x3c] sm:$0xf]
    %v4591 = vld [vmem:[#allocation25 + $0x40] sm:$0xf]
    %v4592 = vld [vmem:[#allocation25 + $0x44] sm:$0xf]
    %v4593 = vld [vmem:[#allocation25 + $0x48] sm:$0xf]
    %v4594 = vld [vmem:[#allocation25 + $0x4c] sm:$0xf]
    %v4595 = vld [vmem:[#allocation25 + $0x50] sm:$0xf]
    %v4596 = vld [vmem:[#allocation25 + $0x54] sm:$0xf]
    %v4597 = vld [vmem:[#allocation25 + $0x58] sm:$0xf]
    %v4598 = vld [vmem:[#allocation25 + $0x5c] sm:$0xf]
    %v4599 = vld [vmem:[#allocation25 + $0x60] sm:$0xf]
    %v4600 = vld [vmem:[#allocation25 + $0x64] sm:$0xf]
    %v4601 = vld [vmem:[#allocation25 + $0x68] sm:$0xf]
    %v4602 = vld [vmem:[#allocation25 + $0x6c] sm:$0xf]
    %v4603 = vld [vmem:[#allocation25 + $0x70] sm:$0xf]
    %v4604 = vld [vmem:[#allocation25 + $0x74] sm:$0xf]
    %v4605 = vld [vmem:[#allocation25 + $0x78] sm:$0xf]
    %v4606 = vld [vmem:[#allocation25 + $0x7c] sm:$0xf]
    %v4607 = vld [vmem:[%s18] sm:$0x1]
    %v4609 = vperm.slane %v4607, 0
    %v4643 = vunpack.c.l.b16 %v4575
    %v4644 = vunpack.c.l.b16 %v4576
    %v4645 = vunpack.c.l.b16 %v4577
    %v4646 = vunpack.c.l.b16 %v4578
    %v4647 = vunpack.c.l.b16 %v4579
    %v4648 = vunpack.c.l.b16 %v4580
    %v4649 = vunpack.c.l.b16 %v4581
    %v4650 = vunpack.c.l.b16 %v4582
    %v4651 = vunpack.c.l.b16 %v4583
    %v4652 = vunpack.c.l.b16 %v4584
    %v4653 = vunpack.c.l.b16 %v4585
    %v4654 = vunpack.c.l.b16 %v4586
    %v4655 = vunpack.c.l.b16 %v4587
    %v4656 = vunpack.c.l.b16 %v4588
    %v4657 = vunpack.c.l.b16 %v4589
    %v4658 = vunpack.c.l.b16 %v4590
    %v4659 = vunpack.c.l.b16 %v4591
    %v4660 = vunpack.c.l.b16 %v4592
    %v4661 = vunpack.c.l.b16 %v4593
    %v4662 = vunpack.c.l.b16 %v4594
    %v4663 = vunpack.c.l.b16 %v4595
    %v4664 = vunpack.c.l.b16 %v4596
    %v4665 = vunpack.c.l.b16 %v4597
    %v4666 = vunpack.c.l.b16 %v4598
    %v4667 = vunpack.c.l.b16 %v4599
    %v4668 = vunpack.c.l.b16 %v4600
    %v4669 = vunpack.c.l.b16 %v4601
    %v4670 = vunpack.c.l.b16 %v4602
    %v4671 = vunpack.c.l.b16 %v4603
    %v4672 = vunpack.c.l.b16 %v4604
    %v4673 = vunpack.c.l.b16 %v4605
    %v4674 = vunpack.c.l.b16 %v4606
    %v4675 = vpack.c.b16 %v4644, %v4643
    %v4676 = vpack.c.b16 %v4646, %v4645
    %v4677 = vpack.c.b16 %v4648, %v4647
    %v4678 = vpack.c.b16 %v4650, %v4649
    %v4679 = vpack.c.b16 %v4652, %v4651
    %v4680 = vpack.c.b16 %v4654, %v4653
    %v4681 = vpack.c.b16 %v4656, %v4655
    %v4682 = vpack.c.b16 %v4658, %v4657
    %v4683 = vpack.c.b16 %v4660, %v4659
    %v4684 = vpack.c.b16 %v4662, %v4661
    %v4685 = vpack.c.b16 %v4664, %v4663
    %v4686 = vpack.c.b16 %v4666, %v4665
    %v4687 = vpack.c.b16 %v4668, %v4667
    %v4688 = vpack.c.b16 %v4670, %v4669
    %v4689 = vpack.c.b16 %v4672, %v4671
    %v4690 = vpack.c.b16 %v4674, %v4673
    %4707 = vmatpush.bf16.msra.mxu0 %v4682
    %4708 = vmatpush.bf16.msra.mxu0 %v4681
    %4709 = vmatpush.bf16.msra.mxu0 %v4680
    %4710 = vmatpush.bf16.msra.mxu0 %v4679
    %4711 = vmatpush.bf16.msra.mxu0 %v4678
    %4712 = vmatpush.bf16.msra.mxu0 %v4677
    %4713 = vmatpush.bf16.msra.mxu0 %v4676
    %4714 = vmatpush.bf16.msra.mxu0 %v4675
    %4715 = vmatmul.bf16.gmra.mxu0 %v4573
    %v4716 = vpop.f32.mrf.mxu0
    %v4717 = vadd.f32 %v4609, %v4716
    %v4718 = vpop.f32.mrf.mxu0
    %4719 = vdwg.mxu0
    %4720 = vmatpush.bf16.msra.mxu0 %v4690
    %4721 = vmatpush.bf16.msra.mxu0 %v4689
    %4722 = vmatpush.bf16.msra.mxu0 %v4688
    %4723 = vmatpush.bf16.msra.mxu0 %v4687
    %4724 = vmatpush.bf16.msra.mxu0 %v4686
    %4725 = vmatpush.bf16.msra.mxu0 %v4685
    %4726 = vmatpush.bf16.msra.mxu0 %v4684
    %4727 = vmatpush.bf16.msra.mxu0 %v4683
    %4728 = vmatmul.bf16.gmra.mxu0 %v4574
    %v4729 = vpop.f32.mrf.mxu0
    %v4730 = vadd.f32 %v4717, %v4729
    %v4731 = vpop.f32.mrf.mxu0
    %4732 = vdwg.mxu0
    %v4733 = vpack.c.bf16 %v4730, %v4730
    %v4734 = vpack.c.bf16 %v4132, %v4130
    %v4735 = vpack.c.bf16 %v4137, %v4135
    %v4736 = vpack.c.bf16 %v4142, %v4140
    %v4737 = vpack.c.bf16 %v4147, %v4145
    %v4738 = vpack.c.bf16 %v4152, %v4150
    %v4739 = vpack.c.bf16 %v4157, %v4155
    %v4740 = vpack.c.bf16 %v4162, %v4160
    %v4741 = vpack.c.bf16 %v4167, %v4165
    %4742 = vmatpush.bf16.xpose.msra.mxu0 %v4741
    %4743 = vmatpush.bf16.xpose.msra.mxu0 %v4740
    %4744 = vmatpush.bf16.xpose.msra.mxu0 %v4739
    %4745 = vmatpush.bf16.xpose.msra.mxu0 %v4738
    %4746 = vmatpush.bf16.xpose.msra.mxu0 %v4737
    %4747 = vmatpush.bf16.xpose.msra.mxu0 %v4736
    %4748 = vmatpush.bf16.xpose.msra.mxu0 %v4735
    %4749 = vmatpush.bf16.xpose.msra.mxu0 %v4734
    %4750 = vmatmul.bf16.gmra.mxu0 %v4733
    %v4751 = vpop.f32.mrf.mxu0
    %v4752 = vadd.f32 0.0, %v4751
    %v4753 = vpop.f32.mrf.mxu0
    %4754 = vdwg.mxu0
    %4755 = vst [vmem:[#allocation37] sm:$0xff] %v4752
    %v4756 = vpack.c.bf16 %v4752, %v4752
    %v4757 = vld [vmem:[#allocation34] sm:$0xf]
    %v4758 = vld [vmem:[#allocation34 + $0x4] sm:$0xf]
    %v4759 = vld [vmem:[#allocation34 + $0x8] sm:$0xf]
    %v4760 = vld [vmem:[#allocation34 + $0xc] sm:$0xf]
    %v4761 = vld [vmem:[#allocation34 + $0x10] sm:$0xf]
    %v4762 = vld [vmem:[#allocation34 + $0x14] sm:$0xf]
    %v4763 = vld [vmem:[#allocation34 + $0x18] sm:$0xf]
    %v4764 = vld [vmem:[#allocation34 + $0x1c] sm:$0xf]
    %v4765 = vld [vmem:[#allocation34 + $0x20] sm:$0xf]
    %v4766 = vld [vmem:[#allocation34 + $0x24] sm:$0xf]
    %v4767 = vld [vmem:[#allocation34 + $0x28] sm:$0xf]
    %v4768 = vld [vmem:[#allocation34 + $0x2c] sm:$0xf]
    %v4769 = vld [vmem:[#allocation34 + $0x30] sm:$0xf]
    %v4770 = vld [vmem:[#allocation34 + $0x34] sm:$0xf]
    %v4771 = vld [vmem:[#allocation34 + $0x38] sm:$0xf]
    %v4772 = vld [vmem:[#allocation34 + $0x3c] sm:$0xf]
    %v4773 = vld [vmem:[#allocation35] sm:$0x1]
    %v4775 = vperm.slane %v4773, 0
    %v4793 = vunpack.c.l.b16 %v4757
    %v4794 = vunpack.c.l.b16 %v4758
    %v4795 = vunpack.c.l.b16 %v4759
    %v4796 = vunpack.c.l.b16 %v4760
    %v4797 = vunpack.c.l.b16 %v4761
    %v4798 = vunpack.c.l.b16 %v4762
    %v4799 = vunpack.c.l.b16 %v4763
    %v4800 = vunpack.c.l.b16 %v4764
    %v4801 = vunpack.c.l.b16 %v4765
    %v4802 = vunpack.c.l.b16 %v4766
    %v4803 = vunpack.c.l.b16 %v4767
    %v4804 = vunpack.c.l.b16 %v4768
    %v4805 = vunpack.c.l.b16 %v4769
    %v4806 = vunpack.c.l.b16 %v4770
    %v4807 = vunpack.c.l.b16 %v4771
    %v4808 = vunpack.c.l.b16 %v4772
    %v4809 = vpack.c.b16 %v4794, %v4793
    %v4810 = vpack.c.b16 %v4796, %v4795
    %v4811 = vpack.c.b16 %v4798, %v4797
    %v4812 = vpack.c.b16 %v4800, %v4799
    %v4813 = vpack.c.b16 %v4802, %v4801
    %v4814 = vpack.c.b16 %v4804, %v4803
    %v4815 = vpack.c.b16 %v4806, %v4805
    %v4816 = vpack.c.b16 %v4808, %v4807
    %4825 = vmatpush.bf16.msra.mxu0 %v4816
    %4826 = vmatpush.bf16.msra.mxu0 %v4815
    %4827 = vmatpush.bf16.msra.mxu0 %v4814
    %4828 = vmatpush.bf16.msra.mxu0 %v4813
    %4829 = vmatpush.bf16.msra.mxu0 %v4812
    %4830 = vmatpush.bf16.msra.mxu0 %v4811
    %4831 = vmatpush.bf16.msra.mxu0 %v4810
    %4832 = vmatpush.bf16.msra.mxu0 %v4809
    %4833 = vmatmul.bf16.gmra.mxu0 %v4756
    %v4834 = vpop.f32.mrf.mxu0
    %v4835 = vadd.f32 %v4775, %v4834
    %v4836 = vpop.f32.mrf.mxu0
    %4837 = vdwg.mxu0
    %v4838 = vmax.f32 %v4835, 0.0
    %v4839 = vpack.c.bf16 %v4838, %v4838
    %4840 = vmatpush.bf16.msra.mxu0 %v4816
    %4841 = vmatpush.bf16.msra.mxu0 %v4815
    %4842 = vmatpush.bf16.msra.mxu0 %v4814
    %4843 = vmatpush.bf16.msra.mxu0 %v4813
    %4844 = vmatpush.bf16.msra.mxu0 %v4812
    %4845 = vmatpush.bf16.msra.mxu0 %v4811
    %4846 = vmatpush.bf16.msra.mxu0 %v4810
    %4847 = vmatpush.bf16.msra.mxu0 %v4809
    %4848 = vmatmul.bf16.gmra.mxu0 %v4839
    %v4849 = vpop.f32.mrf.mxu0
    %v4850 = vadd.f32 %v4775, %v4849
    %v4851 = vpop.f32.mrf.mxu0
    %4852 = vdwg.mxu0
    %4853 = vst [vmem:[#allocation38] sm:$0xff] %v4850
    // Predicated region
    $region198: #{presrecrf_forward.1} parent=1 // pred_check
      _
    $region199: #{presrecrf_forward.1} parent=1 // pred_check_branch
      %4855 = sbr.rel (0) target = $region201
    $region200: #{presrecrf_forward.1} parent=1 // pred_region
      %4857 = vsyncadd [#allocation4], 0
      %s4859 = sshll.u32 [#allocation37], 4
      %s4860 = int_to_ptr.vmem [resolvable:$true] %s4859
      %s4861 = sshll.u32 %s27, 4
      %s4862 = int_to_ptr.hbm [resolvable:$true] %s4861
      %4864 = dma.vmem_to_hbm [thread:$0]  %s4860, 128, %s4862, [#allocation4]
    $region201: #{presrecrf_forward.1} parent=1 // pred_fallthru
      _
    // Predicated region
    $region202: #{presrecrf_forward.1} parent=1 // pred_check
      _
    $region203: #{presrecrf_forward.1} parent=1 // pred_check_branch
      %4866 = sbr.rel (0) target = $region205
    $region204: #{presrecrf_forward.1} parent=1 // pred_region
      %4868 = vsyncadd [#allocation39], 0
      %s4870 = sshll.u32 [#allocation38], 4
      %s4871 = int_to_ptr.vmem [resolvable:$true] %s4870
      %s4872 = sshll.u32 %s28, 4
      %s4873 = int_to_ptr.hbm [resolvable:$true] %s4872
      %4875 = dma.vmem_to_hbm [thread:$0]  %s4871, 128, %s4873, [#allocation39]
    $region205: #{presrecrf_forward.1} parent=1 // pred_fallthru
      _
    // Predicated region
    $region206: #{presrecrf_forward.1} parent=1 // pred_check
      _
    $region207: #{presrecrf_forward.1} parent=1 // pred_check_branch
      %4877 = sbr.rel (0) target = $region209
    $region208: #{presrecrf_forward.1} parent=1 // pred_region
      %4879 = dma.done [#allocation4], 128
    $region209: #{presrecrf_forward.1} parent=1 // pred_fallthru
      _
    // Predicated region
    $region210: #{presrecrf_forward.1} parent=1 // pred_check
      _
    $region211: #{presrecrf_forward.1} parent=1 // pred_check_branch
      %4881 = sbr.rel (0) target = $region213
    $region212: #{presrecrf_forward.1} parent=1 // pred_region
      %4883 = dma.done [#allocation39], 128
    $region213: #{presrecrf_forward.1} parent=1 // pred_fallthru
      _
    %4884 = vsyncpa [#allocation3], 1
    %4885 = vsyncpa [#allocation6], 1
    %4886 = vsyncpa [#allocation9], 1
    %4887 = vsyncpa [#allocation12], 1
    %4888 = vsyncpa [#allocation15], 1
    %4889 = vsyncpa [#allocation18], 1
    %4890 = vsyncpa [#allocation21], 1
    %4891 = vsyncpa [#allocation24], 1
    %4892 = vsyncpa [#allocation27], 1
    %4893 = vsyncpa [#allocation30], 1
    %4894 = vsyncpa [#allocation33], 1
    %4895 = vsyncpa [#allocation36], 1
    %4896 = vsyncpa [#allocation4], 1
    %4897 = vsyncpa [#allocation39], 1

</llo_original>
